<compile_context>
chip_gen: v7x
topology: tpu7x:2x2x1
jax: 0.10.0
libtpu: 0.0.40
codegen_flags: <defaults>
</compile_context>

<pallas_src>
import functools
import math

import jax
import jax.numpy as jnp
from jax import lax
from jax.experimental import pallas as pl
from jax.experimental.pallas import tpu as pltpu

LATENT_DIM = 100
LATENT_PAD = 128                      # latent dim zero-padded to a lane multiple
IMG_SHAPE = (2, 32, 12)
IMG_FLAT = IMG_SHAPE[0] * IMG_SHAPE[1] * IMG_SHAPE[2]   # 768
BN_EPS = 0.8                          # nn.BatchNorm1d(out_feat, 0.8): eps=0.8
LEAKY_SLOPE = 0.2
FUSED_MAX = 256                       # whole-network single-kernel path for n <= this
VMEM_LIMIT = 32 * 1024 * 1024


# ----------------------------- kernel helpers ------------------------------

def _leaky(x):
    return jnp.where(x > 0, x, LEAKY_SLOPE * x)


def _bf16_dot(x, w_ref, b_ref):
    # bf16 x bf16 -> f32 accumulate on the MXU; bias add in f32.
    return jnp.dot(x.astype(jnp.bfloat16), w_ref[...],
                   preferred_element_type=jnp.float32) + b_ref[...]


def _row_mask(n_rows, n_valid):
    # 1.0 for rows belonging to the true batch, 0.0 for padding rows.
    row = pl.program_id(0) * n_rows + lax.broadcasted_iota(
        jnp.int32, (n_rows, 1), 0)
    return (row < n_valid).astype(jnp.float32)


def _write_stats(a, sum_ref, sq_ref, n_valid):
    # Single-pass sum / sum-of-squares (E[x^2]-E[x]^2 form), padding masked,
    # computed from the f32 pre-activations (before the bf16 store).
    m = _row_mask(a.shape[0], n_valid)
    am = a * m
    sum_ref[...] = jnp.sum(am, axis=0, keepdims=True)[None]
    sq_ref[...] = jnp.sum(am * a, axis=0, keepdims=True)[None]


def _bn_affine(sums, sqs, gamma, beta, n_valid):
    # Training-mode BN (biased batch var, eps=0.8) folded into one affine,
    # recomputed per tile inside the consuming kernel (tiny (1,feat) EUP work).
    inv_n = 1.0 / n_valid
    mean = jnp.sum(sums, axis=0) * inv_n                       # (1, feat)
    var = jnp.maximum(jnp.sum(sqs, axis=0) * inv_n - mean * mean, 0.0)
    scale = gamma * lax.rsqrt(var + BN_EPS)
    shift = beta - mean * scale
    return scale, shift


# --------------------------------- kernels ---------------------------------

def _first_stage_kernel(z_ref, w1_ref, b1_ref, w2_ref, b2_ref,
                        a2_ref, sum_ref, sq_ref, *, n_valid):
    # Linear(100->128)+LeakyReLU, then Linear(128->256) pre-activations
    # (stored bf16) + masked per-tile BN statistics for layer 2.
    h1 = _leaky(_bf16_dot(z_ref[...], w1_ref, b1_ref))
    a2 = _bf16_dot(h1, w2_ref, b2_ref)
    _write_stats(a2, sum_ref, sq_ref, n_valid)
    a2_ref[...] = a2.astype(jnp.bfloat16)


def _mid_stage_kernel(a_ref, sums_ref, sqs_ref, g_ref, be_ref, w_ref, b_ref,
                      out_ref, sum_ref, sq_ref, *, n_valid):
    # In-kernel BN fold (from cross-tile partial sums) + LeakyReLU of the
    # previous layer, then the next Linear pre-activations (stored bf16)
    # + masked per-tile BN statistics.
    scale, shift = _bn_affine(sums_ref[...], sqs_ref[...], g_ref[...],
                              be_ref[...], n_valid)
    h = _leaky(a_ref[...].astype(jnp.float32) * scale + shift)
    a = _bf16_dot(h, w_ref, b_ref)
    _write_stats(a, sum_ref, sq_ref, n_valid)
    out_ref[...] = a.astype(jnp.bfloat16)


def _last_stage_kernel(a_ref, sums_ref, sqs_ref, g_ref, be_ref, w_ref, b_ref,
                       out_ref, *, n_valid):
    # In-kernel BN fold + LeakyReLU of layer 4, then Linear(1024->768) + Tanh.
    scale, shift = _bn_affine(sums_ref[...], sqs_ref[...], g_ref[...],
                              be_ref[...], n_valid)
    h = _leaky(a_ref[...].astype(jnp.float32) * scale + shift)
    out_ref[...] = jnp.tanh(_bf16_dot(h, w_ref, b_ref))


def _fused_kernel(z_ref, w1_ref, b1_ref,
                  w2_ref, b2_ref, g2_ref, be2_ref,
                  w3_ref, b3_ref, g3_ref, be3_ref,
                  w4_ref, b4_ref, g4_ref, be4_ref,
                  w5_ref, b5_ref, out_ref, *, n_valid):
    # Whole network in one kernel (single batch tile -> BN stats are local).
    mask = _row_mask(z_ref.shape[0], n_valid)
    inv_n = 1.0 / n_valid
    h = _leaky(_bf16_dot(z_ref[...], w1_ref, b1_ref))
    for w_ref, b_ref, g_ref, be_ref in ((w2_ref, b2_ref, g2_ref, be2_ref),
                                        (w3_ref, b3_ref, g3_ref, be3_ref),
                                        (w4_ref, b4_ref, g4_ref, be4_ref)):
        a = _bf16_dot(h, w_ref, b_ref)
        am = a * mask
        mean = jnp.sum(am, axis=0, keepdims=True) * inv_n
        var = jnp.maximum(jnp.sum(am * a, axis=0, keepdims=True) * inv_n
                          - mean * mean, 0.0)
        scale = g_ref[...] * lax.rsqrt(var + BN_EPS)
        shift = be_ref[...] - mean * scale
        # Match the staged path's bf16 inter-stage storage semantics.
        a = a.astype(jnp.bfloat16).astype(jnp.float32)
        h = _leaky(a * scale + shift)
    out_ref[...] = jnp.tanh(_bf16_dot(h, w5_ref, b5_ref))


# ------------------------------ host wrappers -------------------------------

def _round_up(x, m):
    return (x + m - 1) // m * m


def _plan_tiles(n):
    """Tile plan for the staged path (n > FUSED_MAX).

    Prefers >=2 tiles (both v7x TensorCores active) and large tiles
    (HBM roofline), while keeping padded-row waste bounded."""
    if n <= 1024:
        tile = max(128, _round_up((n + 1) // 2, 16))   # exactly 2 tiles
        return tile, 2
    for tile in (512, 256):
        n_pad = _round_up(n, tile)
        if (n_pad - n) * 8 <= n_pad:                   # <= 12.5% padded rows
            return tile, n_pad // tile
    tile = 128
    return tile, _round_up(n, tile) // tile


def init_params(key):
    """PyTorch-style init U(-1/sqrt(fan_in), +1/sqrt(fan_in)).

    Linear weights are stored transposed (in_feat, out_feat) and in bfloat16
    (halves HBM weight traffic; MXU is natively bf16). Biases and BatchNorm
    affine params stay float32."""
    dims = [(LATENT_DIM, 128), (128, 256), (256, 512), (512, 1024),
            (1024, IMG_FLAT)]
    params = {}
    keys = jax.random.split(key, 2 * len(dims))
    for i, (fi, fo) in enumerate(dims):
        bound = 1.0 / math.sqrt(fi)
        w = jax.random.uniform(keys[2 * i], (fi, fo), jnp.float32, -bound, bound)
        params[f"w{i + 1}"] = w.astype(jnp.bfloat16)
        params[f"b{i + 1}"] = jax.random.uniform(
            keys[2 * i + 1], (1, fo), jnp.float32, -bound, bound)
    for layer, fo in zip((2, 3, 4), (256, 512, 1024)):
        params[f"g{layer}"] = jnp.ones((1, fo), jnp.float32)
        params[f"be{layer}"] = jnp.zeros((1, fo), jnp.float32)
    return params


def _forward_fused(z, params):
    """Single-pallas_call path for small batches (n <= FUSED_MAX)."""
    n = z.shape[0]
    tile_n = _round_up(max(n, 8), 8)
    z_p = jnp.pad(z.astype(jnp.float32),
                  ((0, tile_n - n), (0, LATENT_PAD - LATENT_DIM)))
    w1_p = jnp.pad(params["w1"], ((0, LATENT_PAD - LATENT_DIM), (0, 0)))

    def wspec(fi, fo):
        return pl.BlockSpec((fi, fo), lambda i: (0, 0))

    def vspec(fo):
        return pl.BlockSpec((1, fo), lambda i: (0, 0))

    dims = (LATENT_PAD, 128, 256, 512, 1024, IMG_FLAT)
    wsum = sum(a * b for a, b in zip(dims[:-1], dims[1:]))
    flops = 2 * tile_n * wsum
    nbytes = tile_n * LATENT_PAD * 4 + 2 * wsum + tile_n * IMG_FLAT * 4

    img = pl.pallas_call(
        functools.partial(_fused_kernel, n_valid=n),
        grid=(1,),
        in_specs=[pl.BlockSpec((tile_n, LATENT_PAD), lambda i: (0, 0)),
                  wspec(LATENT_PAD, 128), vspec(128),
                  wspec(128, 256), vspec(256), vspec(256), vspec(256),
                  wspec(256, 512), vspec(512), vspec(512), vspec(512),
                  wspec(512, 1024), vspec(1024), vspec(1024), vspec(1024),
                  wspec(1024, IMG_FLAT), vspec(IMG_FLAT)],
        out_specs=pl.BlockSpec((tile_n, IMG_FLAT), lambda i: (0, 0)),
        out_shape=jax.ShapeDtypeStruct((tile_n, IMG_FLAT), jnp.float32),
        compiler_params=pltpu.CompilerParams(
            dimension_semantics=("arbitrary",),
            vmem_limit_bytes=VMEM_LIMIT),
        cost_estimate=pl.CostEstimate(flops=flops,
                                      transcendentals=tile_n * IMG_FLAT,
                                      bytes_accessed=nbytes),
    )(z_p, w1_p, params["b1"],
      params["w2"], params["b2"], params["g2"], params["be2"],
      params["w3"], params["b3"], params["g3"], params["be3"],
      params["w4"], params["b4"], params["g4"], params["be4"],
      params["w5"], params["b5"])
    return img[:n].reshape(n, *IMG_SHAPE)


def _forward_staged(z, params):
    """Batch-tiled path: 4 pallas_calls, bf16 inter-stage activations,
    BN folded inside the consuming kernels."""
    n = z.shape[0]
    tile_n, num_tiles = _plan_tiles(n)
    n_pad = tile_n * num_tiles

    z_p = jnp.pad(z.astype(jnp.float32),
                  ((0, n_pad - n), (0, LATENT_PAD - LATENT_DIM)))
    w1_p = jnp.pad(params["w1"], ((0, LATENT_PAD - LATENT_DIM), (0, 0)))

    cp = pltpu.CompilerParams(dimension_semantics=("parallel",),
                              vmem_limit_bytes=VMEM_LIMIT)

    def wspec(fi, fo):          # weights: resident in VMEM across the grid
        return pl.BlockSpec((fi, fo), lambda i: (0, 0))

    def vspec(fo):              # (1, feat) vectors: bias / gamma / beta
        return pl.BlockSpec((1, fo), lambda i: (0, 0))

    def aspec(fo):              # activation tiles streamed over the batch
        return pl.BlockSpec((tile_n, fo), lambda i: (i, 0))

    def stat_in_spec(fo):       # full per-tile stats, resident across the grid
        return pl.BlockSpec((num_tiles, 1, fo), lambda i: (0, 0, 0))

    def stat_out_spec(fo):      # per-tile partial BN statistics
        return pl.BlockSpec((1, 1, fo), lambda i: (i, 0, 0))

    def act_shape(fo):          # bf16 inter-stage pre-activations
        return jax.ShapeDtypeStruct((n_pad, fo), jnp.bfloat16)

    def stats_shape(fo):
        return jax.ShapeDtypeStruct((num_tiles, 1, fo), jnp.float32)

    # -- Stage 1: Linear(100->128)+LeakyReLU, Linear(128->256) + BN stats -----
    d0, d1, d2 = LATENT_PAD, 128, 256
    flops1 = 2 * n_pad * (d0 * d1 + d1 * d2)
    bytes1 = (n_pad * d0 * 4 + (d0 * d1 + d1 * d2) * 2 + (d1 + d2) * 4
              + n_pad * d2 * 2 + 2 * num_tiles * d2 * 4)
    a, sums, sqs = pl.pallas_call(
        functools.partial(_first_stage_kernel, n_valid=n),
        grid=(num_tiles,),
        in_specs=[aspec(d0), wspec(d0, d1), vspec(d1), wspec(d1, d2), vspec(d2)],
        out_specs=[aspec(d2), stat_out_spec(d2), stat_out_spec(d2)],
        out_shape=[act_shape(d2), stats_shape(d2), stats_shape(d2)],
        compiler_params=cp,
        cost_estimate=pl.CostEstimate(flops=flops1, transcendentals=0,
                                      bytes_accessed=bytes1),
    )(z_p, w1_p, params["b1"], params["w2"], params["b2"])

    # -- Stages 2 & 3: in-kernel BN+LeakyReLU fused with next Linear + stats --
    for bn_layer, din, dout in ((2, 256, 512), (3, 512, 1024)):
        flops = 2 * n_pad * din * dout
        nbytes = (n_pad * din * 2 + 2 * num_tiles * din * 4 + 2 * din * 4
                  + din * dout * 2 + dout * 4
                  + n_pad * dout * 2 + 2 * num_tiles * dout * 4)
        a, sums, sqs = pl.pallas_call(
            functools.partial(_mid_stage_kernel, n_valid=n),
            grid=(num_tiles,),
            in_specs=[aspec(din), stat_in_spec(din), stat_in_spec(din),
                      vspec(din), vspec(din), wspec(din, dout), vspec(dout)],
            out_specs=[aspec(dout), stat_out_spec(dout), stat_out_spec(dout)],
            out_shape=[act_shape(dout), stats_shape(dout), stats_shape(dout)],
            compiler_params=cp,
            cost_estimate=pl.CostEstimate(flops=flops, transcendentals=0,
                                          bytes_accessed=nbytes),
        )(a, sums, sqs, params[f"g{bn_layer}"], params[f"be{bn_layer}"],
          params[f"w{bn_layer + 1}"], params[f"b{bn_layer + 1}"])

    # -- Final stage: BN(layer4)+LeakyReLU, Linear(1024->768), Tanh -----------
    din, dout = 1024, IMG_FLAT
    flops = 2 * n_pad * din * dout
    nbytes = (n_pad * din * 2 + 2 * num_tiles * din * 4 + 2 * din * 4
              + din * dout * 2 + dout * 4 + n_pad * dout * 4)
    img = pl.pallas_call(
        functools.partial(_last_stage_kernel, n_valid=n),
        grid=(num_tiles,),
        in_specs=[aspec(din), stat_in_spec(din), stat_in_spec(din),
                  vspec(din), vspec(din), wspec(din, dout), vspec(dout)],
        out_specs=aspec(dout),
        out_shape=jax.ShapeDtypeStruct((n_pad, dout), jnp.float32),
        compiler_params=cp,
        cost_estimate=pl.CostEstimate(flops=flops,
                                      transcendentals=n_pad * dout,
                                      bytes_accessed=nbytes),
    )(a, sums, sqs, params["g4"], params["be4"], params["w5"], params["b5"])

    return img[:n].reshape(n, *IMG_SHAPE)


def generator_forward(z, params):
    if z.shape[0] <= FUSED_MAX:
        return _forward_fused(z, params)
    return _forward_staged(z, params)


def reference_forward(z, params):
    """Plain-JAX reference mirroring the kernel math: bf16 weights, f32->bf16
    rounded inter-stage pre-activations (stats computed from the f32 values),
    training-mode BN with biased var and eps=0.8, f32-accumulating bf16 dots."""
    def dot(x, w, b):
        return jnp.dot(x.astype(jnp.bfloat16), w,
                       preferred_element_type=jnp.float32) + b

    h = _leaky(dot(z.astype(jnp.float32), params["w1"], params["b1"]))
    for layer in (2, 3, 4):
        a = dot(h, params[f"w{layer}"], params[f"b{layer}"])
        mean = jnp.mean(a, axis=0, keepdims=True)
        var = jnp.maximum(jnp.mean(a * a, axis=0, keepdims=True) - mean * mean,
                          0.0)
        scale = params[f"g{layer}"] * lax.rsqrt(var + BN_EPS)
        shift = params[f"be{layer}"] - mean * scale
        a = a.astype(jnp.bfloat16).astype(jnp.float32)   # bf16 inter-stage store
        h = _leaky(a * scale + shift)
    out = jnp.tanh(dot(h, params["w5"], params["b5"]))
    return out.reshape(z.shape[0], *IMG_SHAPE)


if __name__ == "__main__":
    key = jax.random.PRNGKey(0)
    k_params, k_z = jax.random.split(key)
    params = init_params(k_params)

    # Small batch -> fully fused single-kernel path.
    n_small = 8
    z_small = jax.random.normal(k_z, (n_small, LATENT_DIM), jnp.float32)
    img_small = generator_forward(z_small, params)
    jax.block_until_ready(img_small)
    assert img_small.shape == (n_small, *IMG_SHAPE), img_small.shape
    ref_small = reference_forward(z_small, params)
    assert jnp.allclose(img_small, ref_small, atol=3e-3, rtol=3e-3), \
        float(jnp.max(jnp.abs(img_small - ref_small)))

    # Larger batch -> staged path (2 batch tiles, cross-tile BN statistics).
    n_big = 384
    z_big = jax.random.normal(jax.random.PRNGKey(1), (n_big, LATENT_DIM),
                              jnp.float32)
    img_big = generator_forward(z_big, params)
    jax.block_until_ready(img_big)
    assert img_big.shape == (n_big, *IMG_SHAPE), img_big.shape
    ref_big = reference_forward(z_big, params)
    assert jnp.allclose(img_big, ref_big, atol=3e-3, rtol=3e-3), \
        float(jnp.max(jnp.abs(img_big - ref_big)))

    print("KERNEL_OK")
</pallas_src>

<mosaic_0001>
module attributes {stable_mosaic.version = 11 : i64} {
  func.func @_fused_kernel(%arg0: i32, %arg1: memref<8x128xf32, #tpu.memory_space<vmem>>, %arg2: memref<128x128xbf16, #tpu.memory_space<vmem>>, %arg3: memref<1x128xf32, #tpu.memory_space<vmem>>, %arg4: memref<128x256xbf16, #tpu.memory_space<vmem>>, %arg5: memref<1x256xf32, #tpu.memory_space<vmem>>, %arg6: memref<1x256xf32, #tpu.memory_space<vmem>>, %arg7: memref<1x256xf32, #tpu.memory_space<vmem>>, %arg8: memref<256x512xbf16, #tpu.memory_space<vmem>>, %arg9: memref<1x512xf32, #tpu.memory_space<vmem>>, %arg10: memref<1x512xf32, #tpu.memory_space<vmem>>, %arg11: memref<1x512xf32, #tpu.memory_space<vmem>>, %arg12: memref<512x1024xbf16, #tpu.memory_space<vmem>>, %arg13: memref<1x1024xf32, #tpu.memory_space<vmem>>, %arg14: memref<1x1024xf32, #tpu.memory_space<vmem>>, %arg15: memref<1x1024xf32, #tpu.memory_space<vmem>>, %arg16: memref<1024x768xbf16, #tpu.memory_space<vmem>>, %arg17: memref<1x768xf32, #tpu.memory_space<vmem>>, %arg18: memref<8x768xf32, #tpu.memory_space<vmem>>) attributes {dimension_semantics = [#tpu.dimension_semantics<arbitrary>], iteration_bounds = array<i64: 1>, scalar_prefetch = 0 : i64, scratch_operands = 0 : i64, tpu.core_type = #tpu.core_type<tc>, window_params = [{pipeline_mode = #tpu.pipeline_mode<synchronous>, transform_indices = @transform_0, window_bounds = array<i64: 8, 128>}, {pipeline_mode = #tpu.pipeline_mode<synchronous>, transform_indices = @transform_1, window_bounds = array<i64: 128, 128>}, {pipeline_mode = #tpu.pipeline_mode<synchronous>, transform_indices = @transform_2, window_bounds = array<i64: 1, 128>}, {pipeline_mode = #tpu.pipeline_mode<synchronous>, transform_indices = @transform_3, window_bounds = array<i64: 128, 256>}, {pipeline_mode = #tpu.pipeline_mode<synchronous>, transform_indices = @transform_4, window_bounds = array<i64: 1, 256>}, {pipeline_mode = #tpu.pipeline_mode<synchronous>, transform_indices = @transform_5, window_bounds = array<i64: 1, 256>}, {pipeline_mode = #tpu.pipeline_mode<synchronous>, transform_indices = @transform_6, window_bounds = array<i64: 1, 256>}, {pipeline_mode = #tpu.pipeline_mode<synchronous>, transform_indices = @transform_7, window_bounds = array<i64: 256, 512>}, {pipeline_mode = #tpu.pipeline_mode<synchronous>, transform_indices = @transform_8, window_bounds = array<i64: 1, 512>}, {pipeline_mode = #tpu.pipeline_mode<synchronous>, transform_indices = @transform_9, window_bounds = array<i64: 1, 512>}, {pipeline_mode = #tpu.pipeline_mode<synchronous>, transform_indices = @transform_10, window_bounds = array<i64: 1, 512>}, {pipeline_mode = #tpu.pipeline_mode<synchronous>, transform_indices = @transform_11, window_bounds = array<i64: 512, 1024>}, {pipeline_mode = #tpu.pipeline_mode<synchronous>, transform_indices = @transform_12, window_bounds = array<i64: 1, 1024>}, {pipeline_mode = #tpu.pipeline_mode<synchronous>, transform_indices = @transform_13, window_bounds = array<i64: 1, 1024>}, {pipeline_mode = #tpu.pipeline_mode<synchronous>, transform_indices = @transform_14, window_bounds = array<i64: 1, 1024>}, {pipeline_mode = #tpu.pipeline_mode<synchronous>, transform_indices = @transform_15, window_bounds = array<i64: 1024, 768>}, {pipeline_mode = #tpu.pipeline_mode<synchronous>, transform_indices = @transform_16, window_bounds = array<i64: 1, 768>}, {pipeline_mode = #tpu.pipeline_mode<synchronous>, transform_indices = @transform_17, window_bounds = array<i64: 8, 768>}]} {
    %c8_i32 = arith.constant 8 : i32
    %0 = arith.muli %arg0, %c8_i32 : i32
    %1 = tpu.iota {dimensions = array<i32: 0>} : vector<8x1xi32>
    %2 = vector.broadcast %0 : i32 to vector<8x1xi32>
    %3 = arith.addi %2, %1 : vector<8x1xi32>
    %c8_i32_0 = arith.constant 8 : i32
    %4 = vector.broadcast %c8_i32_0 : i32 to vector<8x1xi32>
    %5 = arith.cmpi slt, %3, %4 : vector<8x1xi32>
    %6 = arith.extui %5 : vector<8x1xi1> to vector<8x1xi32>
    %7 = arith.sitofp %6 : vector<8x1xi32> to vector<8x1xf32>
    %c0 = arith.constant 0 : index
    %c0_1 = arith.constant 0 : index
    %8 = vector.load %arg1[%c0, %c0_1] : memref<8x128xf32, #tpu.memory_space<vmem>>, vector<8x128xf32>
    %9 = arith.truncf %8 : vector<8x128xf32> to vector<8x128xbf16>
    %c0_2 = arith.constant 0 : index
    %c0_3 = arith.constant 0 : index
    %10 = vector.load %arg2[%c0_2, %c0_3] : memref<128x128xbf16, #tpu.memory_space<vmem>>, vector<128x128xbf16>
    %cst = arith.constant dense<0.000000e+00> : vector<8x128xf32>
    %11 = tpu.matmul %9, %10, %cst {dimension_numbers = #tpu.dot_dimension_numbers<[1], [0], [0], [1], [0, 0, 1, 1], [], []>} : vector<8x128xbf16>, vector<128x128xbf16>, vector<8x128xf32> -> vector<8x128xf32>
    %c0_4 = arith.constant 0 : index
    %c0_5 = arith.constant 0 : index
    %12 = vector.load %arg3[%c0_4, %c0_5] : memref<1x128xf32, #tpu.memory_space<vmem>>, vector<1x128xf32>
    %13 = vector.broadcast %12 : vector<1x128xf32> to vector<8x128xf32>
    %14 = arith.addf %11, %13 : vector<8x128xf32>
    %cst_6 = arith.constant 0.000000e+00 : f32
    %15 = vector.broadcast %cst_6 : f32 to vector<8x128xf32>
    %16 = arith.cmpf ogt, %14, %15 : vector<8x128xf32>
    %cst_7 = arith.constant 2.000000e-01 : f32
    %17 = vector.broadcast %cst_7 : f32 to vector<8x128xf32>
    %18 = arith.mulf %17, %14 : vector<8x128xf32>
    %19 = arith.select %16, %14, %18 : vector<8x128xi1>, vector<8x128xf32>
    %20 = arith.truncf %19 : vector<8x128xf32> to vector<8x128xbf16>
    %c0_8 = arith.constant 0 : index
    %c0_9 = arith.constant 0 : index
    %21 = vector.load %arg4[%c0_8, %c0_9] : memref<128x256xbf16, #tpu.memory_space<vmem>>, vector<128x256xbf16>
    %cst_10 = arith.constant dense<0.000000e+00> : vector<8x256xf32>
    %22 = tpu.matmul %20, %21, %cst_10 {dimension_numbers = #tpu.dot_dimension_numbers<[1], [0], [0], [1], [0, 0, 1, 1], [], []>} : vector<8x128xbf16>, vector<128x256xbf16>, vector<8x256xf32> -> vector<8x256xf32>
    %c0_11 = arith.constant 0 : index
    %c0_12 = arith.constant 0 : index
    %23 = vector.load %arg5[%c0_11, %c0_12] : memref<1x256xf32, #tpu.memory_space<vmem>>, vector<1x256xf32>
    %24 = vector.broadcast %23 : vector<1x256xf32> to vector<8x256xf32>
    %25 = arith.addf %22, %24 : vector<8x256xf32>
    %26 = vector.broadcast %7 : vector<8x1xf32> to vector<8x256xf32>
    %27 = arith.mulf %25, %26 : vector<8x256xf32>
    %cst_13 = arith.constant dense<0.000000e+00> : vector<256xf32>
    %28 = vector.multi_reduction <add>, %27, %cst_13 [0] : vector<8x256xf32> to vector<256xf32>
    %29 = vector.shape_cast %28 : vector<256xf32> to vector<1x256xf32>
    %cst_14 = arith.constant 1.250000e-01 : f32
    %30 = vector.broadcast %cst_14 : f32 to vector<1x256xf32>
    %31 = arith.mulf %29, %30 : vector<1x256xf32>
    %32 = arith.mulf %27, %25 : vector<8x256xf32>
    %cst_15 = arith.constant dense<0.000000e+00> : vector<256xf32>
    %33 = vector.multi_reduction <add>, %32, %cst_15 [0] : vector<8x256xf32> to vector<256xf32>
    %34 = vector.shape_cast %33 : vector<256xf32> to vector<1x256xf32>
    %cst_16 = arith.constant 1.250000e-01 : f32
    %35 = vector.broadcast %cst_16 : f32 to vector<1x256xf32>
    %36 = arith.mulf %34, %35 : vector<1x256xf32>
    %37 = arith.mulf %31, %31 : vector<1x256xf32>
    %38 = arith.subf %36, %37 : vector<1x256xf32>
    %cst_17 = arith.constant 0.000000e+00 : f32
    %39 = vector.broadcast %cst_17 : f32 to vector<1x256xf32>
    %40 = arith.maximumf %38, %39 : vector<1x256xf32>
    %c0_18 = arith.constant 0 : index
    %c0_19 = arith.constant 0 : index
    %41 = vector.load %arg6[%c0_18, %c0_19] : memref<1x256xf32, #tpu.memory_space<vmem>>, vector<1x256xf32>
    %cst_20 = arith.constant 8.000000e-01 : f32
    %42 = vector.broadcast %cst_20 : f32 to vector<1x256xf32>
    %43 = arith.addf %40, %42 : vector<1x256xf32>
    %44 = math.rsqrt %43 : vector<1x256xf32>
    %45 = arith.mulf %41, %44 : vector<1x256xf32>
    %c0_21 = arith.constant 0 : index
    %c0_22 = arith.constant 0 : index
    %46 = vector.load %arg7[%c0_21, %c0_22] : memref<1x256xf32, #tpu.memory_space<vmem>>, vector<1x256xf32>
    %47 = arith.mulf %31, %45 : vector<1x256xf32>
    %48 = arith.subf %46, %47 : vector<1x256xf32>
    %49 = arith.truncf %25 : vector<8x256xf32> to vector<8x256xbf16>
    %50 = arith.extf %49 : vector<8x256xbf16> to vector<8x256xf32>
    %51 = vector.broadcast %45 : vector<1x256xf32> to vector<8x256xf32>
    %52 = arith.mulf %50, %51 : vector<8x256xf32>
    %53 = vector.broadcast %48 : vector<1x256xf32> to vector<8x256xf32>
    %54 = arith.addf %52, %53 : vector<8x256xf32>
    %cst_23 = arith.constant 0.000000e+00 : f32
    %55 = vector.broadcast %cst_23 : f32 to vector<8x256xf32>
    %56 = arith.cmpf ogt, %54, %55 : vector<8x256xf32>
    %cst_24 = arith.constant 2.000000e-01 : f32
    %57 = vector.broadcast %cst_24 : f32 to vector<8x256xf32>
    %58 = arith.mulf %57, %54 : vector<8x256xf32>
    %59 = arith.select %56, %54, %58 : vector<8x256xi1>, vector<8x256xf32>
    %60 = arith.truncf %59 : vector<8x256xf32> to vector<8x256xbf16>
    %c0_25 = arith.constant 0 : index
    %c0_26 = arith.constant 0 : index
    %61 = vector.load %arg8[%c0_25, %c0_26] : memref<256x512xbf16, #tpu.memory_space<vmem>>, vector<256x512xbf16>
    %cst_27 = arith.constant dense<0.000000e+00> : vector<8x512xf32>
    %62 = tpu.matmul %60, %61, %cst_27 {dimension_numbers = #tpu.dot_dimension_numbers<[1], [0], [0], [1], [0, 0, 1, 1], [], []>} : vector<8x256xbf16>, vector<256x512xbf16>, vector<8x512xf32> -> vector<8x512xf32>
    %c0_28 = arith.constant 0 : index
    %c0_29 = arith.constant 0 : index
    %63 = vector.load %arg9[%c0_28, %c0_29] : memref<1x512xf32, #tpu.memory_space<vmem>>, vector<1x512xf32>
    %64 = vector.broadcast %63 : vector<1x512xf32> to vector<8x512xf32>
    %65 = arith.addf %62, %64 : vector<8x512xf32>
    %66 = vector.broadcast %7 : vector<8x1xf32> to vector<8x512xf32>
    %67 = arith.mulf %65, %66 : vector<8x512xf32>
    %cst_30 = arith.constant dense<0.000000e+00> : vector<512xf32>
    %68 = vector.multi_reduction <add>, %67, %cst_30 [0] : vector<8x512xf32> to vector<512xf32>
    %69 = vector.shape_cast %68 : vector<512xf32> to vector<1x512xf32>
    %cst_31 = arith.constant 1.250000e-01 : f32
    %70 = vector.broadcast %cst_31 : f32 to vector<1x512xf32>
    %71 = arith.mulf %69, %70 : vector<1x512xf32>
    %72 = arith.mulf %67, %65 : vector<8x512xf32>
    %cst_32 = arith.constant dense<0.000000e+00> : vector<512xf32>
    %73 = vector.multi_reduction <add>, %72, %cst_32 [0] : vector<8x512xf32> to vector<512xf32>
    %74 = vector.shape_cast %73 : vector<512xf32> to vector<1x512xf32>
    %cst_33 = arith.constant 1.250000e-01 : f32
    %75 = vector.broadcast %cst_33 : f32 to vector<1x512xf32>
    %76 = arith.mulf %74, %75 : vector<1x512xf32>
    %77 = arith.mulf %71, %71 : vector<1x512xf32>
    %78 = arith.subf %76, %77 : vector<1x512xf32>
    %cst_34 = arith.constant 0.000000e+00 : f32
    %79 = vector.broadcast %cst_34 : f32 to vector<1x512xf32>
    %80 = arith.maximumf %78, %79 : vector<1x512xf32>
    %c0_35 = arith.constant 0 : index
    %c0_36 = arith.constant 0 : index
    %81 = vector.load %arg10[%c0_35, %c0_36] : memref<1x512xf32, #tpu.memory_space<vmem>>, vector<1x512xf32>
    %cst_37 = arith.constant 8.000000e-01 : f32
    %82 = vector.broadcast %cst_37 : f32 to vector<1x512xf32>
    %83 = arith.addf %80, %82 : vector<1x512xf32>
    %84 = math.rsqrt %83 : vector<1x512xf32>
    %85 = arith.mulf %81, %84 : vector<1x512xf32>
    %c0_38 = arith.constant 0 : index
    %c0_39 = arith.constant 0 : index
    %86 = vector.load %arg11[%c0_38, %c0_39] : memref<1x512xf32, #tpu.memory_space<vmem>>, vector<1x512xf32>
    %87 = arith.mulf %71, %85 : vector<1x512xf32>
    %88 = arith.subf %86, %87 : vector<1x512xf32>
    %89 = arith.truncf %65 : vector<8x512xf32> to vector<8x512xbf16>
    %90 = arith.extf %89 : vector<8x512xbf16> to vector<8x512xf32>
    %91 = vector.broadcast %85 : vector<1x512xf32> to vector<8x512xf32>
    %92 = arith.mulf %90, %91 : vector<8x512xf32>
    %93 = vector.broadcast %88 : vector<1x512xf32> to vector<8x512xf32>
    %94 = arith.addf %92, %93 : vector<8x512xf32>
    %cst_40 = arith.constant 0.000000e+00 : f32
    %95 = vector.broadcast %cst_40 : f32 to vector<8x512xf32>
    %96 = arith.cmpf ogt, %94, %95 : vector<8x512xf32>
    %cst_41 = arith.constant 2.000000e-01 : f32
    %97 = vector.broadcast %cst_41 : f32 to vector<8x512xf32>
    %98 = arith.mulf %97, %94 : vector<8x512xf32>
    %99 = arith.select %96, %94, %98 : vector<8x512xi1>, vector<8x512xf32>
    %100 = arith.truncf %99 : vector<8x512xf32> to vector<8x512xbf16>
    %c0_42 = arith.constant 0 : index
    %c0_43 = arith.constant 0 : index
    %101 = vector.load %arg12[%c0_42, %c0_43] : memref<512x1024xbf16, #tpu.memory_space<vmem>>, vector<512x1024xbf16>
    %cst_44 = arith.constant dense<0.000000e+00> : vector<8x1024xf32>
    %102 = tpu.matmul %100, %101, %cst_44 {dimension_numbers = #tpu.dot_dimension_numbers<[1], [0], [0], [1], [0, 0, 1, 1], [], []>} : vector<8x512xbf16>, vector<512x1024xbf16>, vector<8x1024xf32> -> vector<8x1024xf32>
    %c0_45 = arith.constant 0 : index
    %c0_46 = arith.constant 0 : index
    %103 = vector.load %arg13[%c0_45, %c0_46] : memref<1x1024xf32, #tpu.memory_space<vmem>>, vector<1x1024xf32>
    %104 = vector.broadcast %103 : vector<1x1024xf32> to vector<8x1024xf32>
    %105 = arith.addf %102, %104 : vector<8x1024xf32>
    %106 = vector.broadcast %7 : vector<8x1xf32> to vector<8x1024xf32>
    %107 = arith.mulf %105, %106 : vector<8x1024xf32>
    %cst_47 = arith.constant dense<0.000000e+00> : vector<1024xf32>
    %108 = vector.multi_reduction <add>, %107, %cst_47 [0] : vector<8x1024xf32> to vector<1024xf32>
    %109 = vector.shape_cast %108 : vector<1024xf32> to vector<1x1024xf32>
    %cst_48 = arith.constant 1.250000e-01 : f32
    %110 = vector.broadcast %cst_48 : f32 to vector<1x1024xf32>
    %111 = arith.mulf %109, %110 : vector<1x1024xf32>
    %112 = arith.mulf %107, %105 : vector<8x1024xf32>
    %cst_49 = arith.constant dense<0.000000e+00> : vector<1024xf32>
    %113 = vector.multi_reduction <add>, %112, %cst_49 [0] : vector<8x1024xf32> to vector<1024xf32>
    %114 = vector.shape_cast %113 : vector<1024xf32> to vector<1x1024xf32>
    %cst_50 = arith.constant 1.250000e-01 : f32
    %115 = vector.broadcast %cst_50 : f32 to vector<1x1024xf32>
    %116 = arith.mulf %114, %115 : vector<1x1024xf32>
    %117 = arith.mulf %111, %111 : vector<1x1024xf32>
    %118 = arith.subf %116, %117 : vector<1x1024xf32>
    %cst_51 = arith.constant 0.000000e+00 : f32
    %119 = vector.broadcast %cst_51 : f32 to vector<1x1024xf32>
    %120 = arith.maximumf %118, %119 : vector<1x1024xf32>
    %c0_52 = arith.constant 0 : index
    %c0_53 = arith.constant 0 : index
    %121 = vector.load %arg14[%c0_52, %c0_53] : memref<1x1024xf32, #tpu.memory_space<vmem>>, vector<1x1024xf32>
    %cst_54 = arith.constant 8.000000e-01 : f32
    %122 = vector.broadcast %cst_54 : f32 to vector<1x1024xf32>
    %123 = arith.addf %120, %122 : vector<1x1024xf32>
    %124 = math.rsqrt %123 : vector<1x1024xf32>
    %125 = arith.mulf %121, %124 : vector<1x1024xf32>
    %c0_55 = arith.constant 0 : index
    %c0_56 = arith.constant 0 : index
    %126 = vector.load %arg15[%c0_55, %c0_56] : memref<1x1024xf32, #tpu.memory_space<vmem>>, vector<1x1024xf32>
    %127 = arith.mulf %111, %125 : vector<1x1024xf32>
    %128 = arith.subf %126, %127 : vector<1x1024xf32>
    %129 = arith.truncf %105 : vector<8x1024xf32> to vector<8x1024xbf16>
    %130 = arith.extf %129 : vector<8x1024xbf16> to vector<8x1024xf32>
    %131 = vector.broadcast %125 : vector<1x1024xf32> to vector<8x1024xf32>
    %132 = arith.mulf %130, %131 : vector<8x1024xf32>
    %133 = vector.broadcast %128 : vector<1x1024xf32> to vector<8x1024xf32>
    %134 = arith.addf %132, %133 : vector<8x1024xf32>
    %cst_57 = arith.constant 0.000000e+00 : f32
    %135 = vector.broadcast %cst_57 : f32 to vector<8x1024xf32>
    %136 = arith.cmpf ogt, %134, %135 : vector<8x1024xf32>
    %cst_58 = arith.constant 2.000000e-01 : f32
    %137 = vector.broadcast %cst_58 : f32 to vector<8x1024xf32>
    %138 = arith.mulf %137, %134 : vector<8x1024xf32>
    %139 = arith.select %136, %134, %138 : vector<8x1024xi1>, vector<8x1024xf32>
    %140 = arith.truncf %139 : vector<8x1024xf32> to vector<8x1024xbf16>
    %c0_59 = arith.constant 0 : index
    %c0_60 = arith.constant 0 : index
    %141 = vector.load %arg16[%c0_59, %c0_60] : memref<1024x768xbf16, #tpu.memory_space<vmem>>, vector<1024x768xbf16>
    %cst_61 = arith.constant dense<0.000000e+00> : vector<8x768xf32>
    %142 = tpu.matmul %140, %141, %cst_61 {dimension_numbers = #tpu.dot_dimension_numbers<[1], [0], [0], [1], [0, 0, 1, 1], [], []>} : vector<8x1024xbf16>, vector<1024x768xbf16>, vector<8x768xf32> -> vector<8x768xf32>
    %c0_62 = arith.constant 0 : index
    %c0_63 = arith.constant 0 : index
    %143 = vector.load %arg17[%c0_62, %c0_63] : memref<1x768xf32, #tpu.memory_space<vmem>>, vector<1x768xf32>
    %144 = vector.broadcast %143 : vector<1x768xf32> to vector<8x768xf32>
    %145 = arith.addf %142, %144 : vector<8x768xf32>
    %146 = math.tanh %145 : vector<8x768xf32>
    %c0_64 = arith.constant 0 : index
    %c0_65 = arith.constant 0 : index
    %147 = vector.load %arg18[%c0_64, %c0_65] : memref<8x768xf32, #tpu.memory_space<vmem>>, vector<8x768xf32>
    tpu.vector_store %arg18[%c0_64, %c0_65], %146 {strides = array<i32>} : memref<8x768xf32, #tpu.memory_space<vmem>>, vector<8x768xf32>,
    return
  }
  func.func @transform_0(%arg0: i32) -> (i32, i32) {
    %c0_i32 = arith.constant 0 : i32
    %c0_i32_0 = arith.constant 0 : i32
    %c0_i32_1 = arith.constant 0 : i32
    return %c0_i32, %c0_i32_0 : i32, i32
  }
  func.func @transform_1(%arg0: i32) -> (i32, i32) {
    %c0_i32 = arith.constant 0 : i32
    %c0_i32_0 = arith.constant 0 : i32
    %c0_i32_1 = arith.constant 0 : i32
    return %c0_i32, %c0_i32_0 : i32, i32
  }
  func.func @transform_2(%arg0: i32) -> (i32, i32) {
    %c0_i32 = arith.constant 0 : i32
    %c0_i32_0 = arith.constant 0 : i32
    %c0_i32_1 = arith.constant 0 : i32
    return %c0_i32, %c0_i32_0 : i32, i32
  }
  func.func @transform_3(%arg0: i32) -> (i32, i32) {
    %c0_i32 = arith.constant 0 : i32
    %c0_i32_0 = arith.constant 0 : i32
    %c0_i32_1 = arith.constant 0 : i32
    return %c0_i32, %c0_i32_0 : i32, i32
  }
  func.func @transform_4(%arg0: i32) -> (i32, i32) {
    %c0_i32 = arith.constant 0 : i32
    %c0_i32_0 = arith.constant 0 : i32
    %c0_i32_1 = arith.constant 0 : i32
    return %c0_i32, %c0_i32_0 : i32, i32
  }
  func.func @transform_5(%arg0: i32) -> (i32, i32) {
    %c0_i32 = arith.constant 0 : i32
    %c0_i32_0 = arith.constant 0 : i32
    %c0_i32_1 = arith.constant 0 : i32
    return %c0_i32, %c0_i32_0 : i32, i32
  }
  func.func @transform_6(%arg0: i32) -> (i32, i32) {
    %c0_i32 = arith.constant 0 : i32
    %c0_i32_0 = arith.constant 0 : i32
    %c0_i32_1 = arith.constant 0 : i32
    return %c0_i32, %c0_i32_0 : i32, i32
  }
  func.func @transform_7(%arg0: i32) -> (i32, i32) {
    %c0_i32 = arith.constant 0 : i32
    %c0_i32_0 = arith.constant 0 : i32
    %c0_i32_1 = arith.constant 0 : i32
    return %c0_i32, %c0_i32_0 : i32, i32
  }
  func.func @transform_8(%arg0: i32) -> (i32, i32) {
    %c0_i32 = arith.constant 0 : i32
    %c0_i32_0 = arith.constant 0 : i32
    %c0_i32_1 = arith.constant 0 : i32
    return %c0_i32, %c0_i32_0 : i32, i32
  }
  func.func @transform_9(%arg0: i32) -> (i32, i32) {
    %c0_i32 = arith.constant 0 : i32
    %c0_i32_0 = arith.constant 0 : i32
    %c0_i32_1 = arith.constant 0 : i32
    return %c0_i32, %c0_i32_0 : i32, i32
  }
  func.func @transform_10(%arg0: i32) -> (i32, i32) {
    %c0_i32 = arith.constant 0 : i32
    %c0_i32_0 = arith.constant 0 : i32
    %c0_i32_1 = arith.constant 0 : i32
    return %c0_i32, %c0_i32_0 : i32, i32
  }
  func.func @transform_11(%arg0: i32) -> (i32, i32) {
    %c0_i32 = arith.constant 0 : i32
    %c0_i32_0 = arith.constant 0 : i32
    %c0_i32_1 = arith.constant 0 : i32
    return %c0_i32, %c0_i32_0 : i32, i32
  }
  func.func @transform_12(%arg0: i32) -> (i32, i32) {
    %c0_i32 = arith.constant 0 : i32
    %c0_i32_0 = arith.constant 0 : i32
    %c0_i32_1 = arith.constant 0 : i32
    return %c0_i32, %c0_i32_0 : i32, i32
  }
  func.func @transform_13(%arg0: i32) -> (i32, i32) {
    %c0_i32 = arith.constant 0 : i32
    %c0_i32_0 = arith.constant 0 : i32
    %c0_i32_1 = arith.constant 0 : i32
    return %c0_i32, %c0_i32_0 : i32, i32
  }
  func.func @transform_14(%arg0: i32) -> (i32, i32) {
    %c0_i32 = arith.constant 0 : i32
    %c0_i32_0 = arith.constant 0 : i32
    %c0_i32_1 = arith.constant 0 : i32
    return %c0_i32, %c0_i32_0 : i32, i32
  }
  func.func @transform_15(%arg0: i32) -> (i32, i32) {
    %c0_i32 = arith.constant 0 : i32
    %c0_i32_0 = arith.constant 0 : i32
    %c0_i32_1 = arith.constant 0 : i32
    return %c0_i32, %c0_i32_0 : i32, i32
  }
  func.func @transform_16(%arg0: i32) -> (i32, i32) {
    %c0_i32 = arith.constant 0 : i32
    %c0_i32_0 = arith.constant 0 : i32
    %c0_i32_1 = arith.constant 0 : i32
    return %c0_i32, %c0_i32_0 : i32, i32
  }
  func.func @transform_17(%arg0: i32) -> (i32, i32) {
    %c0_i32 = arith.constant 0 : i32
    %c0_i32_0 = arith.constant 0 : i32
    %c0_i32_1 = arith.constant 0 : i32
    return %c0_i32, %c0_i32_0 : i32, i32
  }
}

</mosaic_0001>

<llo_original>
// kernel: tpu_custom_call.1
$region0: #{tpu_custom_call.1}
  #allocation0 [shape = 'u32[]', space=smem, size = 0x4, offset = 0x4, fixed_abs, tag = 'smem constant byte address 0x4 - core index']
  #allocation1 [shape = 'u32[144,128]{1,0:T(1,128)}', space=vmem, size = 0x12000, scoped, tag = 'internal scratch']
  %s0 = inlined_call_operand.hbm [shape: f32[8,128], index: 0, kind: input, shape index: {}]
  %s1 = inlined_call_operand.hbm [shape: bf16[128,128], index: 1, kind: input, shape index: {}]
  %s2 = inlined_call_operand.hbm [shape: f32[1,128], index: 2, kind: input, shape index: {}]
  %s3 = inlined_call_operand.hbm [shape: bf16[128,256], index: 3, kind: input, shape index: {}]
  %s4 = inlined_call_operand.hbm [shape: f32[1,256], index: 4, kind: input, shape index: {}]
  %s5 = inlined_call_operand.hbm [shape: f32[1,256], index: 5, kind: input, shape index: {}]
  %s6 = inlined_call_operand.hbm [shape: f32[1,256], index: 6, kind: input, shape index: {}]
  %s7 = inlined_call_operand.hbm [shape: bf16[256,512], index: 7, kind: input, shape index: {}]
  %s8 = inlined_call_operand.hbm [shape: f32[1,512], index: 8, kind: input, shape index: {}]
  %s9 = inlined_call_operand.hbm [shape: f32[1,512], index: 9, kind: input, shape index: {}]
  %s10 = inlined_call_operand.hbm [shape: f32[1,512], index: 10, kind: input, shape index: {}]
  %s11 = inlined_call_operand.hbm [shape: bf16[512,1024], index: 11, kind: input, shape index: {}]
  %s12 = inlined_call_operand.hbm [shape: f32[1,1024], index: 12, kind: input, shape index: {}]
  %s13 = inlined_call_operand.hbm [shape: f32[1,1024], index: 13, kind: input, shape index: {}]
  %s14 = inlined_call_operand.hbm [shape: f32[1,1024], index: 14, kind: input, shape index: {}]
  %s15 = inlined_call_operand.hbm [shape: bf16[1024,768], index: 15, kind: input, shape index: {}]
  %s16 = inlined_call_operand.hbm [shape: f32[1,768], index: 16, kind: input, shape index: {}]
  %s17 = inlined_call_operand.hbm [shape: f32[8,768], index: 17, kind: output, shape index: {}]
  %s18 = sld [smem:[#allocation0]]
  $region146: #{tpu_custom_call.1} parent=0
    _
  %s20 = ssub.s32 1, %s18
  %s21 = scalar_select 0, %s20, %s18
  $region1: #{tpu_custom_call.1} parent=0
    #allocation2 [shape = 'u8[4096]{0}', space=vmem, size = 0x1000, scoped, tag = 'input window, operand 0, single buffered']
    #allocation3 [shape = 's32[1]{0}', space=sflag, size = 0x4, scoped, tag = 'scoped memory for tpu_custom_call.1']
    #allocation4 [shape = 's32[1]{0}', space=sflag, size = 0x4, scoped, tag = 'scoped memory for tpu_custom_call.1']
    #allocation5 [shape = 'u8[32768]{0}', space=vmem, size = 0x8000, scoped, tag = 'input window, operand 1, single buffered']
    #allocation6 [shape = 's32[1]{0}', space=sflag, size = 0x4, scoped, tag = 'scoped memory for tpu_custom_call.1']
    #allocation7 [shape = 'u8[512]{0}', space=vmem, size = 0x400, scoped, tag = 'input window, operand 2, single buffered']
    #allocation8 [shape = 'u8[65536]{0}', space=vmem, size = 0x10000, scoped, tag = 'input window, operand 3, single buffered']
    #allocation9 [shape = 's32[1]{0}', space=sflag, size = 0x4, scoped, tag = 'scoped memory for tpu_custom_call.1']
    #allocation10 [shape = 'u8[1024]{0}', space=vmem, size = 0x400, scoped, tag = 'input window, operand 4, single buffered']
    #allocation11 [shape = 'u8[1024]{0}', space=vmem, size = 0x400, scoped, tag = 'input window, operand 5, single buffered']
    #allocation12 [shape = 's32[1]{0}', space=sflag, size = 0x4, scoped, tag = 'scoped memory for tpu_custom_call.1']
    #allocation13 [shape = 'u8[1024]{0}', space=vmem, size = 0x400, scoped, tag = 'input window, operand 6, single buffered']
    #allocation14 [shape = 'u8[262144]{0}', space=vmem, size = 0x40000, scoped, tag = 'input window, operand 7, single buffered']
    #allocation15 [shape = 's32[1]{0}', space=sflag, size = 0x4, scoped, tag = 'scoped memory for tpu_custom_call.1']
    #allocation16 [shape = 'u8[2048]{0}', space=vmem, size = 0x800, scoped, tag = 'input window, operand 8, single buffered']
    #allocation17 [shape = 'u8[2048]{0}', space=vmem, size = 0x800, scoped, tag = 'input window, operand 9, single buffered']
    #allocation18 [shape = 's32[1]{0}', space=sflag, size = 0x4, scoped, tag = 'scoped memory for tpu_custom_call.1']
    #allocation19 [shape = 'u8[2048]{0}', space=vmem, size = 0x800, scoped, tag = 'input window, operand 10, single buffered']
    #allocation20 [shape = 'u8[1048576]{0}', space=vmem, size = 0x100000, scoped, tag = 'input window, operand 11, single buffered']
    #allocation21 [shape = 's32[1]{0}', space=sflag, size = 0x4, scoped, tag = 'scoped memory for tpu_custom_call.1']
    #allocation22 [shape = 'u8[4096]{0}', space=vmem, size = 0x1000, scoped, tag = 'input window, operand 12, single buffered']
    #allocation23 [shape = 'u8[4096]{0}', space=vmem, size = 0x1000, scoped, tag = 'input window, operand 13, single buffered']
    #allocation24 [shape = 's32[1]{0}', space=sflag, size = 0x4, scoped, tag = 'scoped memory for tpu_custom_call.1']
    #allocation25 [shape = 'u8[4096]{0}', space=vmem, size = 0x1000, scoped, tag = 'input window, operand 14, single buffered']
    #allocation26 [shape = 'u8[1572864]{0}', space=vmem, size = 0x180000, scoped, tag = 'input window, operand 15, single buffered']
    #allocation27 [shape = 's32[1]{0}', space=sflag, size = 0x4, scoped, tag = 'scoped memory for tpu_custom_call.1']
    #allocation28 [shape = 'u8[3072]{0}', space=vmem, size = 0xc00, scoped, tag = 'input window, operand 16, single buffered']
    #allocation29 [shape = 'u8[24576]{0}', space=vmem, size = 0x6000, scoped, tag = 'output window, operand 0, single buffered']
    %22 = vsyncpa [#allocation3], 0
    %23 = vsyncpa [#allocation6], 0
    %24 = vsyncpa [#allocation9], 0
    %25 = vsyncpa [#allocation12], 0
    %26 = vsyncpa [#allocation15], 0
    %27 = vsyncpa [#allocation18], 0
    %28 = vsyncpa [#allocation21], 0
    %29 = vsyncpa [#allocation24], 0
    %30 = vsyncpa [#allocation27], 0
    %31 = vsyncpa [#allocation4], 0
    // Predicated region
    $region2: #{tpu_custom_call.1} parent=1 // pred_check
      _
    $region3: #{tpu_custom_call.1} parent=1 // pred_check_branch
      %33 = sbr.rel (0) target = $region5
    $region4: #{tpu_custom_call.1} parent=1 // pred_region
      %s35 = ssub.s32 128, 128
      %36 = vsyncadd [#allocation3], %s35
      %s38 = sshll.u32 [#allocation2], 4
      %s39 = int_to_ptr.vmem [resolvable:$true] %s38
      %41 = dma.hbm_to_vmem [thread:$0]  %s0, 128, %s39, [#allocation3]
    $region5: #{tpu_custom_call.1} parent=1 // pred_fallthru
      _
    // Predicated region
    $region6: #{tpu_custom_call.1} parent=1 // pred_check
      _
    $region7: #{tpu_custom_call.1} parent=1 // pred_check_branch
      %43 = sbr.rel (0) target = $region9
    $region8: #{tpu_custom_call.1} parent=1 // pred_region
      %s45 = ssub.s32 1024, 1024
      %46 = vsyncadd [#allocation6], %s45
      %s47 = sshll.u32 [#allocation5], 4
      %s48 = int_to_ptr.vmem [resolvable:$true] %s47
      %53 = dma.hbm_to_vmem [thread:$0]  %s1, 1024, %s48, [#allocation6], 64, 64, 4
    $region9: #{tpu_custom_call.1} parent=1 // pred_fallthru
      _
    // Predicated region
    $region10: #{tpu_custom_call.1} parent=1 // pred_check
      _
    $region11: #{tpu_custom_call.1} parent=1 // pred_check_branch
      %55 = sbr.rel (0) target = $region13
    $region12: #{tpu_custom_call.1} parent=1 // pred_region
      %s57 = ssub.s32 16, 16
      %58 = vsyncadd [#allocation6], %s57
      %s60 = sshll.u32 [#allocation7], 4
      %s61 = int_to_ptr.vmem [resolvable:$true] %s60
      %63 = dma.hbm_to_vmem [thread:$0]  %s2, 16, %s61, [#allocation6]
    $region13: #{tpu_custom_call.1} parent=1 // pred_fallthru
      _
    // Predicated region
    $region14: #{tpu_custom_call.1} parent=1 // pred_check
      _
    $region15: #{tpu_custom_call.1} parent=1 // pred_check_branch
      %65 = sbr.rel (0) target = $region17
    $region16: #{tpu_custom_call.1} parent=1 // pred_region
      %s67 = ssub.s32 2048, 2048
      %68 = vsyncadd [#allocation9], %s67
      %s69 = sshll.u32 [#allocation8], 4
      %s70 = int_to_ptr.vmem [resolvable:$true] %s69
      %75 = dma.hbm_to_vmem [thread:$0]  %s3, 2048, %s70, [#allocation9], 128, 128, 8
    $region17: #{tpu_custom_call.1} parent=1 // pred_fallthru
      _
    // Predicated region
    $region18: #{tpu_custom_call.1} parent=1 // pred_check
      _
    $region19: #{tpu_custom_call.1} parent=1 // pred_check_branch
      %77 = sbr.rel (0) target = $region21
    $region20: #{tpu_custom_call.1} parent=1 // pred_region
      %s79 = ssub.s32 32, 32
      %80 = vsyncadd [#allocation9], %s79
      %s82 = sshll.u32 [#allocation10], 4
      %s83 = int_to_ptr.vmem [resolvable:$true] %s82
      %85 = dma.hbm_to_vmem [thread:$0]  %s4, 32, %s83, [#allocation9]
    $region21: #{tpu_custom_call.1} parent=1 // pred_fallthru
      _
    // Predicated region
    $region22: #{tpu_custom_call.1} parent=1 // pred_check
      _
    $region23: #{tpu_custom_call.1} parent=1 // pred_check_branch
      %87 = sbr.rel (0) target = $region25
    $region24: #{tpu_custom_call.1} parent=1 // pred_region
      %s89 = ssub.s32 32, 32
      %90 = vsyncadd [#allocation12], %s89
      %s92 = sshll.u32 [#allocation11], 4
      %s93 = int_to_ptr.vmem [resolvable:$true] %s92
      %95 = dma.hbm_to_vmem [thread:$0]  %s5, 32, %s93, [#allocation12]
    $region25: #{tpu_custom_call.1} parent=1 // pred_fallthru
      _
    // Predicated region
    $region26: #{tpu_custom_call.1} parent=1 // pred_check
      _
    $region27: #{tpu_custom_call.1} parent=1 // pred_check_branch
      %97 = sbr.rel (0) target = $region29
    $region28: #{tpu_custom_call.1} parent=1 // pred_region
      %s99 = ssub.s32 32, 32
      %100 = vsyncadd [#allocation12], %s99
      %s102 = sshll.u32 [#allocation13], 4
      %s103 = int_to_ptr.vmem [resolvable:$true] %s102
      %105 = dma.hbm_to_vmem [thread:$0]  %s6, 32, %s103, [#allocation12]
    $region29: #{tpu_custom_call.1} parent=1 // pred_fallthru
      _
    // Predicated region
    $region30: #{tpu_custom_call.1} parent=1 // pred_check
      _
    $region31: #{tpu_custom_call.1} parent=1 // pred_check_branch
      %107 = sbr.rel (0) target = $region33
    $region32: #{tpu_custom_call.1} parent=1 // pred_region
      %s109 = ssub.s32 8192, 8192
      %110 = vsyncadd [#allocation15], %s109
      %s111 = sshll.u32 [#allocation14], 4
      %s112 = int_to_ptr.vmem [resolvable:$true] %s111
      %117 = dma.hbm_to_vmem [thread:$0]  %s7, 8192, %s112, [#allocation15], 256, 256, 16
    $region33: #{tpu_custom_call.1} parent=1 // pred_fallthru
      _
    // Predicated region
    $region34: #{tpu_custom_call.1} parent=1 // pred_check
      _
    $region35: #{tpu_custom_call.1} parent=1 // pred_check_branch
      %119 = sbr.rel (0) target = $region37
    $region36: #{tpu_custom_call.1} parent=1 // pred_region
      %s121 = ssub.s32 64, 64
      %122 = vsyncadd [#allocation15], %s121
      %s124 = sshll.u32 [#allocation16], 4
      %s125 = int_to_ptr.vmem [resolvable:$true] %s124
      %127 = dma.hbm_to_vmem [thread:$0]  %s8, 64, %s125, [#allocation15]
    $region37: #{tpu_custom_call.1} parent=1 // pred_fallthru
      _
    // Predicated region
    $region38: #{tpu_custom_call.1} parent=1 // pred_check
      _
    $region39: #{tpu_custom_call.1} parent=1 // pred_check_branch
      %129 = sbr.rel (0) target = $region41
    $region40: #{tpu_custom_call.1} parent=1 // pred_region
      %s131 = ssub.s32 64, 64
      %132 = vsyncadd [#allocation18], %s131
      %s134 = sshll.u32 [#allocation17], 4
      %s135 = int_to_ptr.vmem [resolvable:$true] %s134
      %137 = dma.hbm_to_vmem [thread:$0]  %s9, 64, %s135, [#allocation18]
    $region41: #{tpu_custom_call.1} parent=1 // pred_fallthru
      _
    // Predicated region
    $region42: #{tpu_custom_call.1} parent=1 // pred_check
      _
    $region43: #{tpu_custom_call.1} parent=1 // pred_check_branch
      %139 = sbr.rel (0) target = $region45
    $region44: #{tpu_custom_call.1} parent=1 // pred_region
      %s141 = ssub.s32 64, 64
      %142 = vsyncadd [#allocation18], %s141
      %s144 = sshll.u32 [#allocation19], 4
      %s145 = int_to_ptr.vmem [resolvable:$true] %s144
      %147 = dma.hbm_to_vmem [thread:$0]  %s10, 64, %s145, [#allocation18]
    $region45: #{tpu_custom_call.1} parent=1 // pred_fallthru
      _
    // Predicated region
    $region46: #{tpu_custom_call.1} parent=1 // pred_check
      _
    $region47: #{tpu_custom_call.1} parent=1 // pred_check_branch
      %149 = sbr.rel (0) target = $region49
    $region48: #{tpu_custom_call.1} parent=1 // pred_region
      %s151 = ssub.s32 32768, 32768
      %152 = vsyncadd [#allocation21], %s151
      %s153 = sshll.u32 [#allocation20], 4
      %s154 = int_to_ptr.vmem [resolvable:$true] %s153
      %159 = dma.hbm_to_vmem [thread:$0]  %s11, 32768, %s154, [#allocation21], 512, 512, 32
    $region49: #{tpu_custom_call.1} parent=1 // pred_fallthru
      _
    // Predicated region
    $region50: #{tpu_custom_call.1} parent=1 // pred_check
      _
    $region51: #{tpu_custom_call.1} parent=1 // pred_check_branch
      %161 = sbr.rel (0) target = $region53
    $region52: #{tpu_custom_call.1} parent=1 // pred_region
      %s163 = ssub.s32 128, 128
      %164 = vsyncadd [#allocation21], %s163
      %s166 = sshll.u32 [#allocation22], 4
      %s167 = int_to_ptr.vmem [resolvable:$true] %s166
      %169 = dma.hbm_to_vmem [thread:$0]  %s12, 128, %s167, [#allocation21]
    $region53: #{tpu_custom_call.1} parent=1 // pred_fallthru
      _
    // Predicated region
    $region54: #{tpu_custom_call.1} parent=1 // pred_check
      _
    $region55: #{tpu_custom_call.1} parent=1 // pred_check_branch
      %171 = sbr.rel (0) target = $region57
    $region56: #{tpu_custom_call.1} parent=1 // pred_region
      %s173 = ssub.s32 128, 128
      %174 = vsyncadd [#allocation24], %s173
      %s176 = sshll.u32 [#allocation23], 4
      %s177 = int_to_ptr.vmem [resolvable:$true] %s176
      %179 = dma.hbm_to_vmem [thread:$0]  %s13, 128, %s177, [#allocation24]
    $region57: #{tpu_custom_call.1} parent=1 // pred_fallthru
      _
    // Predicated region
    $region58: #{tpu_custom_call.1} parent=1 // pred_check
      _
    $region59: #{tpu_custom_call.1} parent=1 // pred_check_branch
      %181 = sbr.rel (0) target = $region61
    $region60: #{tpu_custom_call.1} parent=1 // pred_region
      %s183 = ssub.s32 128, 128
      %184 = vsyncadd [#allocation24], %s183
      %s186 = sshll.u32 [#allocation25], 4
      %s187 = int_to_ptr.vmem [resolvable:$true] %s186
      %189 = dma.hbm_to_vmem [thread:$0]  %s14, 128, %s187, [#allocation24]
    $region61: #{tpu_custom_call.1} parent=1 // pred_fallthru
      _
    // Predicated region
    $region62: #{tpu_custom_call.1} parent=1 // pred_check
      _
    $region63: #{tpu_custom_call.1} parent=1 // pred_check_branch
      %191 = sbr.rel (0) target = $region65
    $region64: #{tpu_custom_call.1} parent=1 // pred_region
      %s193 = ssub.s32 49152, 49152
      %194 = vsyncadd [#allocation27], %s193
      %s195 = sshll.u32 [#allocation26], 4
      %s196 = int_to_ptr.vmem [resolvable:$true] %s195
      %201 = dma.hbm_to_vmem [thread:$0]  %s15, 49152, %s196, [#allocation27], 384, 384, 24
    $region65: #{tpu_custom_call.1} parent=1 // pred_fallthru
      _
    // Predicated region
    $region66: #{tpu_custom_call.1} parent=1 // pred_check
      _
    $region67: #{tpu_custom_call.1} parent=1 // pred_check_branch
      %203 = sbr.rel (0) target = $region69
    $region68: #{tpu_custom_call.1} parent=1 // pred_region
      %s205 = ssub.s32 96, 96
      %206 = vsyncadd [#allocation27], %s205
      %s208 = sshll.u32 [#allocation28], 4
      %s209 = int_to_ptr.vmem [resolvable:$true] %s208
      %211 = dma.hbm_to_vmem [thread:$0]  %s16, 96, %s209, [#allocation27]
    $region69: #{tpu_custom_call.1} parent=1 // pred_fallthru
      _
    // Predicated region
    $region70: #{tpu_custom_call.1} parent=1 // pred_check
      _
    $region71: #{tpu_custom_call.1} parent=1 // pred_check_branch
      %213 = sbr.rel (0) target = $region73
    $region72: #{tpu_custom_call.1} parent=1 // pred_region
      %214 = dma.done [#allocation3], 128
    $region73: #{tpu_custom_call.1} parent=1 // pred_fallthru
      _
    // Predicated region
    $region74: #{tpu_custom_call.1} parent=1 // pred_check
      _
    $region75: #{tpu_custom_call.1} parent=1 // pred_check_branch
      %216 = sbr.rel (0) target = $region77
    $region76: #{tpu_custom_call.1} parent=1 // pred_region
      %217 = dma.done [#allocation6], 1024
    $region77: #{tpu_custom_call.1} parent=1 // pred_fallthru
      _
    // Predicated region
    $region78: #{tpu_custom_call.1} parent=1 // pred_check
      _
    $region79: #{tpu_custom_call.1} parent=1 // pred_check_branch
      %219 = sbr.rel (0) target = $region81
    $region80: #{tpu_custom_call.1} parent=1 // pred_region
      %220 = dma.done [#allocation6], 16
    $region81: #{tpu_custom_call.1} parent=1 // pred_fallthru
      _
    // Predicated region
    $region82: #{tpu_custom_call.1} parent=1 // pred_check
      _
    $region83: #{tpu_custom_call.1} parent=1 // pred_check_branch
      %222 = sbr.rel (0) target = $region85
    $region84: #{tpu_custom_call.1} parent=1 // pred_region
      %223 = dma.done [#allocation9], 2048
    $region85: #{tpu_custom_call.1} parent=1 // pred_fallthru
      _
    // Predicated region
    $region86: #{tpu_custom_call.1} parent=1 // pred_check
      _
    $region87: #{tpu_custom_call.1} parent=1 // pred_check_branch
      %225 = sbr.rel (0) target = $region89
    $region88: #{tpu_custom_call.1} parent=1 // pred_region
      %226 = dma.done [#allocation9], 32
    $region89: #{tpu_custom_call.1} parent=1 // pred_fallthru
      _
    // Predicated region
    $region90: #{tpu_custom_call.1} parent=1 // pred_check
      _
    $region91: #{tpu_custom_call.1} parent=1 // pred_check_branch
      %228 = sbr.rel (0) target = $region93
    $region92: #{tpu_custom_call.1} parent=1 // pred_region
      %229 = dma.done [#allocation12], 32
    $region93: #{tpu_custom_call.1} parent=1 // pred_fallthru
      _
    // Predicated region
    $region94: #{tpu_custom_call.1} parent=1 // pred_check
      _
    $region95: #{tpu_custom_call.1} parent=1 // pred_check_branch
      %231 = sbr.rel (0) target = $region97
    $region96: #{tpu_custom_call.1} parent=1 // pred_region
      %232 = dma.done [#allocation12], 32
    $region97: #{tpu_custom_call.1} parent=1 // pred_fallthru
      _
    // Predicated region
    $region98: #{tpu_custom_call.1} parent=1 // pred_check
      _
    $region99: #{tpu_custom_call.1} parent=1 // pred_check_branch
      %234 = sbr.rel (0) target = $region101
    $region100: #{tpu_custom_call.1} parent=1 // pred_region
      %235 = dma.done [#allocation15], 8192
    $region101: #{tpu_custom_call.1} parent=1 // pred_fallthru
      _
    // Predicated region
    $region102: #{tpu_custom_call.1} parent=1 // pred_check
      _
    $region103: #{tpu_custom_call.1} parent=1 // pred_check_branch
      %237 = sbr.rel (0) target = $region105
    $region104: #{tpu_custom_call.1} parent=1 // pred_region
      %238 = dma.done [#allocation15], 64
    $region105: #{tpu_custom_call.1} parent=1 // pred_fallthru
      _
    // Predicated region
    $region106: #{tpu_custom_call.1} parent=1 // pred_check
      _
    $region107: #{tpu_custom_call.1} parent=1 // pred_check_branch
      %240 = sbr.rel (0) target = $region109
    $region108: #{tpu_custom_call.1} parent=1 // pred_region
      %241 = dma.done [#allocation18], 64
    $region109: #{tpu_custom_call.1} parent=1 // pred_fallthru
      _
    // Predicated region
    $region110: #{tpu_custom_call.1} parent=1 // pred_check
      _
    $region111: #{tpu_custom_call.1} parent=1 // pred_check_branch
      %243 = sbr.rel (0) target = $region113
    $region112: #{tpu_custom_call.1} parent=1 // pred_region
      %244 = dma.done [#allocation18], 64
    $region113: #{tpu_custom_call.1} parent=1 // pred_fallthru
      _
    // Predicated region
    $region114: #{tpu_custom_call.1} parent=1 // pred_check
      _
    $region115: #{tpu_custom_call.1} parent=1 // pred_check_branch
      %246 = sbr.rel (0) target = $region117
    $region116: #{tpu_custom_call.1} parent=1 // pred_region
      %247 = dma.done [#allocation21], 32768
    $region117: #{tpu_custom_call.1} parent=1 // pred_fallthru
      _
    // Predicated region
    $region118: #{tpu_custom_call.1} parent=1 // pred_check
      _
    $region119: #{tpu_custom_call.1} parent=1 // pred_check_branch
      %249 = sbr.rel (0) target = $region121
    $region120: #{tpu_custom_call.1} parent=1 // pred_region
      %250 = dma.done [#allocation21], 128
    $region121: #{tpu_custom_call.1} parent=1 // pred_fallthru
      _
    // Predicated region
    $region122: #{tpu_custom_call.1} parent=1 // pred_check
      _
    $region123: #{tpu_custom_call.1} parent=1 // pred_check_branch
      %252 = sbr.rel (0) target = $region125
    $region124: #{tpu_custom_call.1} parent=1 // pred_region
      %253 = dma.done [#allocation24], 128
    $region125: #{tpu_custom_call.1} parent=1 // pred_fallthru
      _
    // Predicated region
    $region126: #{tpu_custom_call.1} parent=1 // pred_check
      _
    $region127: #{tpu_custom_call.1} parent=1 // pred_check_branch
      %255 = sbr.rel (0) target = $region129
    $region128: #{tpu_custom_call.1} parent=1 // pred_region
      %256 = dma.done [#allocation24], 128
    $region129: #{tpu_custom_call.1} parent=1 // pred_fallthru
      _
    // Predicated region
    $region130: #{tpu_custom_call.1} parent=1 // pred_check
      _
    $region131: #{tpu_custom_call.1} parent=1 // pred_check_branch
      %258 = sbr.rel (0) target = $region133
    $region132: #{tpu_custom_call.1} parent=1 // pred_region
      %259 = dma.done [#allocation27], 49152
    $region133: #{tpu_custom_call.1} parent=1 // pred_fallthru
      _
    // Predicated region
    $region134: #{tpu_custom_call.1} parent=1 // pred_check
      _
    $region135: #{tpu_custom_call.1} parent=1 // pred_check_branch
      %261 = sbr.rel (0) target = $region137
    $region136: #{tpu_custom_call.1} parent=1 // pred_region
      %262 = dma.done [#allocation27], 96
    $region137: #{tpu_custom_call.1} parent=1 // pred_fallthru
      _
    %s264 = smul.u32 0, 8
    %v265 = vlaneseq
    %v266 = vshrl.u32 %v265, 7
    %v267 = vstv %s264
    %v268 = vadd.s32 %v267, %v266
    %vm269 = vcmp.lt.s32.totalorder %v268, 8
    %v270 = vsel %vm269, 1, 0
    %v271 = vcvt.s32.f32 %v270
    %v272 = vld [vmem:[#allocation2] sm:$0xff]
    %v273 = vpack.c.bf16 %v272, %v272
    %v274 = vld [vmem:[#allocation5] sm:$0xf]
    %v275 = vld [vmem:[#allocation5 + $0x4] sm:$0xf]
    %v276 = vld [vmem:[#allocation5 + $0x8] sm:$0xf]
    %v277 = vld [vmem:[#allocation5 + $0xc] sm:$0xf]
    %v278 = vld [vmem:[#allocation5 + $0x10] sm:$0xf]
    %v279 = vld [vmem:[#allocation5 + $0x14] sm:$0xf]
    %v280 = vld [vmem:[#allocation5 + $0x18] sm:$0xf]
    %v281 = vld [vmem:[#allocation5 + $0x1c] sm:$0xf]
    %v282 = vld [vmem:[#allocation5 + $0x20] sm:$0xf]
    %v283 = vld [vmem:[#allocation5 + $0x24] sm:$0xf]
    %v284 = vld [vmem:[#allocation5 + $0x28] sm:$0xf]
    %v285 = vld [vmem:[#allocation5 + $0x2c] sm:$0xf]
    %v286 = vld [vmem:[#allocation5 + $0x30] sm:$0xf]
    %v287 = vld [vmem:[#allocation5 + $0x34] sm:$0xf]
    %v288 = vld [vmem:[#allocation5 + $0x38] sm:$0xf]
    %v289 = vld [vmem:[#allocation5 + $0x3c] sm:$0xf]
    %v290 = vld [vmem:[#allocation7] sm:$0x1]
    %v292 = vlaneseq
    %v293 = vshrl.u32 %v292, 7
    %v294 = vsub.s32 0, %v293
    %v295 = vrot.slane %v290, %v294
    %v313 = vunpack.c.l.b16 %v274
    %v314 = vunpack.c.l.b16 %v275
    %v315 = vunpack.c.l.b16 %v276
    %v316 = vunpack.c.l.b16 %v277
    %v317 = vunpack.c.l.b16 %v278
    %v318 = vunpack.c.l.b16 %v279
    %v319 = vunpack.c.l.b16 %v280
    %v320 = vunpack.c.l.b16 %v281
    %v321 = vunpack.c.l.b16 %v282
    %v322 = vunpack.c.l.b16 %v283
    %v323 = vunpack.c.l.b16 %v284
    %v324 = vunpack.c.l.b16 %v285
    %v325 = vunpack.c.l.b16 %v286
    %v326 = vunpack.c.l.b16 %v287
    %v327 = vunpack.c.l.b16 %v288
    %v328 = vunpack.c.l.b16 %v289
    %v329 = vpack.c.b16 %v314, %v313
    %v330 = vpack.c.b16 %v316, %v315
    %v331 = vpack.c.b16 %v318, %v317
    %v332 = vpack.c.b16 %v320, %v319
    %v333 = vpack.c.b16 %v322, %v321
    %v334 = vpack.c.b16 %v324, %v323
    %v335 = vpack.c.b16 %v326, %v325
    %v336 = vpack.c.b16 %v328, %v327
    %345 = vmatprep.subr.bf16.mxu0 0
    %346 = vmatpush1.bf16.msra.mxu0 %v329
    %347 = vmatprep.subr.bf16.mxu0 0
    %348 = vmatpush1.bf16.msra.mxu0 %v330
    %349 = vmatprep.subr.bf16.mxu0 0
    %350 = vmatpush1.bf16.msra.mxu0 %v331
    %351 = vmatprep.subr.bf16.mxu0 0
    %352 = vmatpush1.bf16.msra.mxu0 %v332
    %353 = vmatprep.subr.bf16.mxu0 0
    %354 = vmatpush1.bf16.msra.mxu0 %v333
    %355 = vmatprep.subr.bf16.mxu0 0
    %356 = vmatpush1.bf16.msra.mxu0 %v334
    %357 = vmatprep.subr.bf16.mxu0 0
    %358 = vmatpush1.bf16.msra.mxu0 %v335
    %359 = vmatprep.subr.bf16.mxu0 0
    %360 = vmatpush1.bf16.msra.mxu0 %v336
    %361 = vmatprep.subr.bf16.mxu0 0
    %362 = vmatpush1.bf16.msra.mxu0 0
    %363 = vmatprep.subr.bf16.mxu0 0
    %364 = vmatpush1.bf16.msra.mxu0 0
    %365 = vmatprep.subr.bf16.mxu0 0
    %366 = vmatpush1.bf16.msra.mxu0 0
    %367 = vmatprep.subr.bf16.mxu0 0
    %368 = vmatpush1.bf16.msra.mxu0 0
    %369 = vmatprep.subr.bf16.mxu0 0
    %370 = vmatpush1.bf16.msra.mxu0 0
    %371 = vmatprep.subr.bf16.mxu0 0
    %372 = vmatpush1.bf16.msra.mxu0 0
    %373 = vmatprep.subr.bf16.mxu0 0
    %374 = vmatpush1.bf16.msra.mxu0 0
    %375 = vmatprep.subr.bf16.mxu0 0
    %376 = vmatpush1.bf16.msra.mxu0 0
    %377 = vmatprep.mubr.bf16.mxu0 0
    %378 = vmatmul.mubr.bf16.gmra.mrb[0].mxu0 %v273
    %v379 = vpop.f32.mrb[0].mxu0
    %v380 = vadd.f32 %v295, %v379
    %v381 = vpop.f32.mrb[0].mxu0
    %v382 = vpop.f32.mrb[0].mxu0
    %v383 = vpop.f32.mrb[0].mxu0
    %384 = vdwg.mxu0
    %vm385 = vcmp.gt.f32.partialorder %v380, 0.0
    %v386 = vmul.f32 %v380, 0.2
    %v387 = vsel %vm385, %v380, %v386
    %v388 = vpack.c.bf16 %v387, %v387
    %v389 = vld [vmem:[#allocation8] sm:$0xff]
    %v390 = vld [vmem:[#allocation8 + $0x8] sm:$0xff]
    %v391 = vld [vmem:[#allocation8 + $0x10] sm:$0xff]
    %v392 = vld [vmem:[#allocation8 + $0x18] sm:$0xff]
    %v393 = vld [vmem:[#allocation8 + $0x20] sm:$0xff]
    %v394 = vld [vmem:[#allocation8 + $0x28] sm:$0xff]
    %v395 = vld [vmem:[#allocation8 + $0x30] sm:$0xff]
    %v396 = vld [vmem:[#allocation8 + $0x38] sm:$0xff]
    %v397 = vld [vmem:[#allocation8 + $0x40] sm:$0xff]
    %v398 = vld [vmem:[#allocation8 + $0x48] sm:$0xff]
    %v399 = vld [vmem:[#allocation8 + $0x50] sm:$0xff]
    %v400 = vld [vmem:[#allocation8 + $0x58] sm:$0xff]
    %v401 = vld [vmem:[#allocation8 + $0x60] sm:$0xff]
    %v402 = vld [vmem:[#allocation8 + $0x68] sm:$0xff]
    %v403 = vld [vmem:[#allocation8 + $0x70] sm:$0xff]
    %v404 = vld [vmem:[#allocation8 + $0x78] sm:$0xff]
    %v405 = vld [vmem:[#allocation10] sm:$0x3]
    %v407 = vlaneseq
    %v408 = vshrl.u32 %v407, 7
    %v409 = vsub.s32 0, %v408
    %v410 = vrot.slane %v405, %v409
    %v411 = vlaneseq
    %v412 = vshrl.u32 %v411, 7
    %v413 = vsub.s32 1, %v412
    %v414 = vrot.slane %v405, %v413
    %v433 = vunpack.c.l.b16 %v389
    %v434 = vunpack.c.h.b16 %v389
    %v435 = vunpack.c.l.b16 %v390
    %v436 = vunpack.c.h.b16 %v390
    %v437 = vunpack.c.l.b16 %v391
    %v438 = vunpack.c.h.b16 %v391
    %v439 = vunpack.c.l.b16 %v392
    %v440 = vunpack.c.h.b16 %v392
    %v441 = vunpack.c.l.b16 %v393
    %v442 = vunpack.c.h.b16 %v393
    %v443 = vunpack.c.l.b16 %v394
    %v444 = vunpack.c.h.b16 %v394
    %v445 = vunpack.c.l.b16 %v395
    %v446 = vunpack.c.h.b16 %v395
    %v447 = vunpack.c.l.b16 %v396
    %v448 = vunpack.c.h.b16 %v396
    %v449 = vunpack.c.l.b16 %v397
    %v450 = vunpack.c.h.b16 %v397
    %v451 = vunpack.c.l.b16 %v398
    %v452 = vunpack.c.h.b16 %v398
    %v453 = vunpack.c.l.b16 %v399
    %v454 = vunpack.c.h.b16 %v399
    %v455 = vunpack.c.l.b16 %v400
    %v456 = vunpack.c.h.b16 %v400
    %v457 = vunpack.c.l.b16 %v401
    %v458 = vunpack.c.h.b16 %v401
    %v459 = vunpack.c.l.b16 %v402
    %v460 = vunpack.c.h.b16 %v402
    %v461 = vunpack.c.l.b16 %v403
    %v462 = vunpack.c.h.b16 %v403
    %v463 = vunpack.c.l.b16 %v404
    %v464 = vunpack.c.h.b16 %v404
    %v465 = vpack.c.b16 %v435, %v433
    %v466 = vpack.c.b16 %v436, %v434
    %v467 = vpack.c.b16 %v439, %v437
    %v468 = vpack.c.b16 %v440, %v438
    %v469 = vpack.c.b16 %v443, %v441
    %v470 = vpack.c.b16 %v444, %v442
    %v471 = vpack.c.b16 %v447, %v445
    %v472 = vpack.c.b16 %v448, %v446
    %v473 = vpack.c.b16 %v451, %v449
    %v474 = vpack.c.b16 %v452, %v450
    %v475 = vpack.c.b16 %v455, %v453
    %v476 = vpack.c.b16 %v456, %v454
    %v477 = vpack.c.b16 %v459, %v457
    %v478 = vpack.c.b16 %v460, %v458
    %v479 = vpack.c.b16 %v463, %v461
    %v480 = vpack.c.b16 %v464, %v462
    %497 = vmatprep.subr.bf16.mxu0 %v466
    %498 = vmatpush1.bf16.msra.mxu0 %v465
    %499 = vmatprep.subr.bf16.mxu0 %v468
    %500 = vmatpush1.bf16.msra.mxu0 %v467
    %501 = vmatprep.subr.bf16.mxu0 %v470
    %502 = vmatpush1.bf16.msra.mxu0 %v469
    %503 = vmatprep.subr.bf16.mxu0 %v472
    %504 = vmatpush1.bf16.msra.mxu0 %v471
    %505 = vmatprep.subr.bf16.mxu0 %v474
    %506 = vmatpush1.bf16.msra.mxu0 %v473
    %507 = vmatprep.subr.bf16.mxu0 %v476
    %508 = vmatpush1.bf16.msra.mxu0 %v475
    %509 = vmatprep.subr.bf16.mxu0 %v478
    %510 = vmatpush1.bf16.msra.mxu0 %v477
    %511 = vmatprep.subr.bf16.mxu0 %v480
    %512 = vmatpush1.bf16.msra.mxu0 %v479
    %513 = vmatprep.subr.bf16.mxu0 0
    %514 = vmatpush1.bf16.msra.mxu0 0
    %515 = vmatprep.subr.bf16.mxu0 0
    %516 = vmatpush1.bf16.msra.mxu0 0
    %517 = vmatprep.subr.bf16.mxu0 0
    %518 = vmatpush1.bf16.msra.mxu0 0
    %519 = vmatprep.subr.bf16.mxu0 0
    %520 = vmatpush1.bf16.msra.mxu0 0
    %521 = vmatprep.subr.bf16.mxu0 0
    %522 = vmatpush1.bf16.msra.mxu0 0
    %523 = vmatprep.subr.bf16.mxu0 0
    %524 = vmatpush1.bf16.msra.mxu0 0
    %525 = vmatprep.subr.bf16.mxu0 0
    %526 = vmatpush1.bf16.msra.mxu0 0
    %527 = vmatprep.subr.bf16.mxu0 0
    %528 = vmatpush1.bf16.msra.mxu0 0
    %529 = vmatprep.mubr.bf16.mxu0 0
    %530 = vmatmul.mubr.bf16.gmra.mrb[0].mxu0 %v388
    %v531 = vpop.f32.mrb[0].mxu0
    %v532 = vadd.f32 %v410, %v531
    %v533 = vpop.f32.mrb[0].mxu0
    %v534 = vadd.f32 %v414, %v533
    %v535 = vpop.f32.mrb[0].mxu0
    %v536 = vpop.f32.mrb[0].mxu0
    %537 = vdwg.mxu0
    %v538 = vmul.f32 %v532, %v271
    %v539 = vmul.f32 %v534, %v271
    %v540 = vrot.slane %v538, 4
    %v541 = vadd.f32 %v538, %v540
    %v542 = vrot.slane %v541, 2
    %v543 = vadd.f32 %v541, %v542
    %v544 = vrot.slane %v543, 1
    %v545 = vadd.f32 %v543, %v544
    %v546 = vrot.slane %v539, 4
    %v547 = vadd.f32 %v539, %v546
    %v548 = vrot.slane %v547, 2
    %v549 = vadd.f32 %v547, %v548
    %v550 = vrot.slane %v549, 1
    %v551 = vadd.f32 %v549, %v550
    %v552 = vmul.f32 %v545, 0.125
    %v553 = vmul.f32 %v551, 0.125
    %v554 = vmul.f32 %v538, %v532
    %v555 = vmul.f32 %v539, %v534
    %v556 = vrot.slane %v554, 4
    %v557 = vadd.f32 %v554, %v556
    %v558 = vrot.slane %v557, 2
    %v559 = vadd.f32 %v557, %v558
    %v560 = vrot.slane %v559, 1
    %v561 = vadd.f32 %v559, %v560
    %v562 = vrot.slane %v555, 4
    %v563 = vadd.f32 %v555, %v562
    %v564 = vrot.slane %v563, 2
    %v565 = vadd.f32 %v563, %v564
    %v566 = vrot.slane %v565, 1
    %v567 = vadd.f32 %v565, %v566
    %v568 = vmul.f32 %v561, 0.125
    %v569 = vmul.f32 %v567, 0.125
    %v570 = vmul.f32 %v552, %v552
    %v571 = vmul.f32 %v553, %v553
    %v572 = vsub.f32 %v568, %v570
    %v573 = vsub.f32 %v569, %v571
    %v574 = vmax.f32 %v572, 0.0
    %v575 = vmax.f32 %v573, 0.0
    %v576 = vld [vmem:[#allocation11] sm:$0x3]
    %v577 = vadd.f32 %v574, 0.8
    %v578 = vadd.f32 %v575, 0.8
    %v579 = vrsqrt.pop %v577
    %v580 = vrsqrt.pop %v578
    %v583 = vcombine.low %v579, %v580
    %v585 = vunpack.c.l.s4 1966171168
    %v586 = vunpack.c.0.s8 %v585
    %v587 = vlaneseq
    %v588 = vshrl.u32 %v587, 7
    %v589 = vsub.s32 %v586, %v588
    %v590 = vrot.slane %v583, %v589
    %v592 = vunpack.c.l.s4 1966171168
    %v593 = vunpack.c.0.s8 %v592
    %v594 = vlaneseq
    %v595 = vshrl.u32 %v594, 7
    %v596 = vsub.s32 %v593, %v595
    %v597 = vrot.slane %v590, %v596
    %v599 = vmul.f32 %v576, %v597
    %v600 = vld [vmem:[#allocation13] sm:$0x3]
    %v602 = vlaneseq
    %v603 = vshrl.u32 %v602, 7
    %v604 = vsub.s32 0, %v603
    %v605 = vrot.slane %v599, %v604
    %v606 = vlaneseq
    %v607 = vshrl.u32 %v606, 7
    %v608 = vsub.s32 1, %v607
    %v609 = vrot.slane %v599, %v608
    %v612 = vmul.f32 %v552, %v605
    %v613 = vmul.f32 %v553, %v609
    %v616 = vcombine.low %v612, %v613
    %v618 = vunpack.c.l.s4 1966171168
    %v619 = vunpack.c.0.s8 %v618
    %v620 = vlaneseq
    %v621 = vshrl.u32 %v620, 7
    %v622 = vsub.s32 %v619, %v621
    %v623 = vrot.slane %v616, %v622
    %v625 = vunpack.c.l.s4 1966171168
    %v626 = vunpack.c.0.s8 %v625
    %v627 = vlaneseq
    %v628 = vshrl.u32 %v627, 7
    %v629 = vsub.s32 %v626, %v628
    %v630 = vrot.slane %v623, %v629
    %v632 = vsub.f32 %v600, %v630
    %v633 = vpack.c.bf16 %v532, %v532
    %v634 = vpack.c.bf16 %v534, %v534
    %v635 = vunpack.c.l.bf16 %v633
    %v636 = vunpack.c.l.bf16 %v634
    %v637 = vmul.f32 %v635, %v605
    %v638 = vmul.f32 %v636, %v609
    %v640 = vlaneseq
    %v641 = vshrl.u32 %v640, 7
    %v642 = vsub.s32 0, %v641
    %v643 = vrot.slane %v632, %v642
    %v644 = vlaneseq
    %v645 = vshrl.u32 %v644, 7
    %v646 = vsub.s32 1, %v645
    %v647 = vrot.slane %v632, %v646
    %v650 = vadd.f32 %v637, %v643
    %v651 = vadd.f32 %v638, %v647
    %vm652 = vcmp.gt.f32.partialorder %v650, 0.0
    %vm653 = vcmp.gt.f32.partialorder %v651, 0.0
    %v654 = vmul.f32 %v650, 0.2
    %v655 = vmul.f32 %v651, 0.2
    %v656 = vsel %vm652, %v650, %v654
    %v657 = vsel %vm653, %v651, %v655
    %v658 = vpack.c.bf16 %v656, %v656
    %v659 = vpack.c.bf16 %v657, %v657
    %v660 = vld [vmem:[#allocation14] sm:$0xff]
    %v661 = vld [vmem:[#allocation14 + $0x8] sm:$0xff]
    %v662 = vld [vmem:[#allocation14 + $0x10] sm:$0xff]
    %v663 = vld [vmem:[#allocation14 + $0x18] sm:$0xff]
    %v664 = vld [vmem:[#allocation14 + $0x20] sm:$0xff]
    %v665 = vld [vmem:[#allocation14 + $0x28] sm:$0xff]
    %v666 = vld [vmem:[#allocation14 + $0x30] sm:$0xff]
    %v667 = vld [vmem:[#allocation14 + $0x38] sm:$0xff]
    %v668 = vld [vmem:[#allocation14 + $0x40] sm:$0xff]
    %v669 = vld [vmem:[#allocation14 + $0x48] sm:$0xff]
    %v670 = vld [vmem:[#allocation14 + $0x50] sm:$0xff]
    %v671 = vld [vmem:[#allocation14 + $0x58] sm:$0xff]
    %v672 = vld [vmem:[#allocation14 + $0x60] sm:$0xff]
    %v673 = vld [vmem:[#allocation14 + $0x68] sm:$0xff]
    %v674 = vld [vmem:[#allocation14 + $0x70] sm:$0xff]
    %v675 = vld [vmem:[#allocation14 + $0x78] sm:$0xff]
    %v676 = vld [vmem:[#allocation14 + $0x80] sm:$0xff]
    %v677 = vld [vmem:[#allocation14 + $0x88] sm:$0xff]
    %v678 = vld [vmem:[#allocation14 + $0x90] sm:$0xff]
    %v679 = vld [vmem:[#allocation14 + $0x98] sm:$0xff]
    %v680 = vld [vmem:[#allocation14 + $0xa0] sm:$0xff]
    %v681 = vld [vmem:[#allocation14 + $0xa8] sm:$0xff]
    %v682 = vld [vmem:[#allocation14 + $0xb0] sm:$0xff]
    %v683 = vld [vmem:[#allocation14 + $0xb8] sm:$0xff]
    %v684 = vld [vmem:[#allocation14 + $0xc0] sm:$0xff]
    %v685 = vld [vmem:[#allocation14 + $0xc8] sm:$0xff]
    %v686 = vld [vmem:[#allocation14 + $0xd0] sm:$0xff]
    %v687 = vld [vmem:[#allocation14 + $0xd8] sm:$0xff]
    %v688 = vld [vmem:[#allocation14 + $0xe0] sm:$0xff]
    %v689 = vld [vmem:[#allocation14 + $0xe8] sm:$0xff]
    %v690 = vld [vmem:[#allocation14 + $0xf0] sm:$0xff]
    %v691 = vld [vmem:[#allocation14 + $0xf8] sm:$0xff]
    %v692 = vld [vmem:[#allocation14 + $0x100] sm:$0xff]
    %v693 = vld [vmem:[#allocation14 + $0x108] sm:$0xff]
    %v694 = vld [vmem:[#allocation14 + $0x110] sm:$0xff]
    %v695 = vld [vmem:[#allocation14 + $0x118] sm:$0xff]
    %v696 = vld [vmem:[#allocation14 + $0x120] sm:$0xff]
    %v697 = vld [vmem:[#allocation14 + $0x128] sm:$0xff]
    %v698 = vld [vmem:[#allocation14 + $0x130] sm:$0xff]
    %v699 = vld [vmem:[#allocation14 + $0x138] sm:$0xff]
    %v700 = vld [vmem:[#allocation14 + $0x140] sm:$0xff]
    %v701 = vld [vmem:[#allocation14 + $0x148] sm:$0xff]
    %v702 = vld [vmem:[#allocation14 + $0x150] sm:$0xff]
    %v703 = vld [vmem:[#allocation14 + $0x158] sm:$0xff]
    %v704 = vld [vmem:[#allocation14 + $0x160] sm:$0xff]
    %v705 = vld [vmem:[#allocation14 + $0x168] sm:$0xff]
    %v706 = vld [vmem:[#allocation14 + $0x170] sm:$0xff]
    %v707 = vld [vmem:[#allocation14 + $0x178] sm:$0xff]
    %v708 = vld [vmem:[#allocation14 + $0x180] sm:$0xff]
    %v709 = vld [vmem:[#allocation14 + $0x188] sm:$0xff]
    %v710 = vld [vmem:[#allocation14 + $0x190] sm:$0xff]
    %v711 = vld [vmem:[#allocation14 + $0x198] sm:$0xff]
    %v712 = vld [vmem:[#allocation14 + $0x1a0] sm:$0xff]
    %v713 = vld [vmem:[#allocation14 + $0x1a8] sm:$0xff]
    %v714 = vld [vmem:[#allocation14 + $0x1b0] sm:$0xff]
    %v715 = vld [vmem:[#allocation14 + $0x1b8] sm:$0xff]
    %v716 = vld [vmem:[#allocation14 + $0x1c0] sm:$0xff]
    %v717 = vld [vmem:[#allocation14 + $0x1c8] sm:$0xff]
    %v718 = vld [vmem:[#allocation14 + $0x1d0] sm:$0xff]
    %v719 = vld [vmem:[#allocation14 + $0x1d8] sm:$0xff]
    %v720 = vld [vmem:[#allocation14 + $0x1e0] sm:$0xff]
    %v721 = vld [vmem:[#allocation14 + $0x1e8] sm:$0xff]
    %v722 = vld [vmem:[#allocation14 + $0x1f0] sm:$0xff]
    %v723 = vld [vmem:[#allocation14 + $0x1f8] sm:$0xff]
    %v724 = vld [vmem:[#allocation16] sm:$0xf]
    %v726 = vlaneseq
    %v727 = vshrl.u32 %v726, 7
    %v728 = vsub.s32 0, %v727
    %v729 = vrot.slane %v724, %v728
    %v730 = vlaneseq
    %v731 = vshrl.u32 %v730, 7
    %v732 = vsub.s32 1, %v731
    %v733 = vrot.slane %v724, %v732
    %v734 = vlaneseq
    %v735 = vshrl.u32 %v734, 7
    %v736 = vsub.s32 2, %v735
    %v737 = vrot.slane %v724, %v736
    %v738 = vlaneseq
    %v739 = vshrl.u32 %v738, 7
    %v740 = vsub.s32 3, %v739
    %v741 = vrot.slane %v724, %v740
    %v810 = vunpack.c.l.b16 %v660
    %v811 = vunpack.c.h.b16 %v660
    %v812 = vunpack.c.l.b16 %v661
    %v813 = vunpack.c.h.b16 %v661
    %v814 = vunpack.c.l.b16 %v662
    %v815 = vunpack.c.h.b16 %v662
    %v816 = vunpack.c.l.b16 %v663
    %v817 = vunpack.c.h.b16 %v663
    %v818 = vunpack.c.l.b16 %v664
    %v819 = vunpack.c.h.b16 %v664
    %v820 = vunpack.c.l.b16 %v665
    %v821 = vunpack.c.h.b16 %v665
    %v822 = vunpack.c.l.b16 %v666
    %v823 = vunpack.c.h.b16 %v666
    %v824 = vunpack.c.l.b16 %v667
    %v825 = vunpack.c.h.b16 %v667
    %v826 = vunpack.c.l.b16 %v668
    %v827 = vunpack.c.h.b16 %v668
    %v828 = vunpack.c.l.b16 %v669
    %v829 = vunpack.c.h.b16 %v669
    %v830 = vunpack.c.l.b16 %v670
    %v831 = vunpack.c.h.b16 %v670
    %v832 = vunpack.c.l.b16 %v671
    %v833 = vunpack.c.h.b16 %v671
    %v834 = vunpack.c.l.b16 %v672
    %v835 = vunpack.c.h.b16 %v672
    %v836 = vunpack.c.l.b16 %v673
    %v837 = vunpack.c.h.b16 %v673
    %v838 = vunpack.c.l.b16 %v674
    %v839 = vunpack.c.h.b16 %v674
    %v840 = vunpack.c.l.b16 %v675
    %v841 = vunpack.c.h.b16 %v675
    %v842 = vunpack.c.l.b16 %v676
    %v843 = vunpack.c.h.b16 %v676
    %v844 = vunpack.c.l.b16 %v677
    %v845 = vunpack.c.h.b16 %v677
    %v846 = vunpack.c.l.b16 %v678
    %v847 = vunpack.c.h.b16 %v678
    %v848 = vunpack.c.l.b16 %v679
    %v849 = vunpack.c.h.b16 %v679
    %v850 = vunpack.c.l.b16 %v680
    %v851 = vunpack.c.h.b16 %v680
    %v852 = vunpack.c.l.b16 %v681
    %v853 = vunpack.c.h.b16 %v681
    %v854 = vunpack.c.l.b16 %v682
    %v855 = vunpack.c.h.b16 %v682
    %v856 = vunpack.c.l.b16 %v683
    %v857 = vunpack.c.h.b16 %v683
    %v858 = vunpack.c.l.b16 %v684
    %v859 = vunpack.c.h.b16 %v684
    %v860 = vunpack.c.l.b16 %v685
    %v861 = vunpack.c.h.b16 %v685
    %v862 = vunpack.c.l.b16 %v686
    %v863 = vunpack.c.h.b16 %v686
    %v864 = vunpack.c.l.b16 %v687
    %v865 = vunpack.c.h.b16 %v687
    %v866 = vunpack.c.l.b16 %v688
    %v867 = vunpack.c.h.b16 %v688
    %v868 = vunpack.c.l.b16 %v689
    %v869 = vunpack.c.h.b16 %v689
    %v870 = vunpack.c.l.b16 %v690
    %v871 = vunpack.c.h.b16 %v690
    %v872 = vunpack.c.l.b16 %v691
    %v873 = vunpack.c.h.b16 %v691
    %v874 = vunpack.c.l.b16 %v692
    %v875 = vunpack.c.h.b16 %v692
    %v876 = vunpack.c.l.b16 %v693
    %v877 = vunpack.c.h.b16 %v693
    %v878 = vunpack.c.l.b16 %v694
    %v879 = vunpack.c.h.b16 %v694
    %v880 = vunpack.c.l.b16 %v695
    %v881 = vunpack.c.h.b16 %v695
    %v882 = vunpack.c.l.b16 %v696
    %v883 = vunpack.c.h.b16 %v696
    %v884 = vunpack.c.l.b16 %v697
    %v885 = vunpack.c.h.b16 %v697
    %v886 = vunpack.c.l.b16 %v698
    %v887 = vunpack.c.h.b16 %v698
    %v888 = vunpack.c.l.b16 %v699
    %v889 = vunpack.c.h.b16 %v699
    %v890 = vunpack.c.l.b16 %v700
    %v891 = vunpack.c.h.b16 %v700
    %v892 = vunpack.c.l.b16 %v701
    %v893 = vunpack.c.h.b16 %v701
    %v894 = vunpack.c.l.b16 %v702
    %v895 = vunpack.c.h.b16 %v702
    %v896 = vunpack.c.l.b16 %v703
    %v897 = vunpack.c.h.b16 %v703
    %v898 = vunpack.c.l.b16 %v704
    %v899 = vunpack.c.h.b16 %v704
    %v900 = vunpack.c.l.b16 %v705
    %v901 = vunpack.c.h.b16 %v705
    %v902 = vunpack.c.l.b16 %v706
    %v903 = vunpack.c.h.b16 %v706
    %v904 = vunpack.c.l.b16 %v707
    %v905 = vunpack.c.h.b16 %v707
    %v906 = vunpack.c.l.b16 %v708
    %v907 = vunpack.c.h.b16 %v708
    %v908 = vunpack.c.l.b16 %v709
    %v909 = vunpack.c.h.b16 %v709
    %v910 = vunpack.c.l.b16 %v710
    %v911 = vunpack.c.h.b16 %v710
    %v912 = vunpack.c.l.b16 %v711
    %v913 = vunpack.c.h.b16 %v711
    %v914 = vunpack.c.l.b16 %v712
    %v915 = vunpack.c.h.b16 %v712
    %v916 = vunpack.c.l.b16 %v713
    %v917 = vunpack.c.h.b16 %v713
    %v918 = vunpack.c.l.b16 %v714
    %v919 = vunpack.c.h.b16 %v714
    %v920 = vunpack.c.l.b16 %v715
    %v921 = vunpack.c.h.b16 %v715
    %v922 = vunpack.c.l.b16 %v716
    %v923 = vunpack.c.h.b16 %v716
    %v924 = vunpack.c.l.b16 %v717
    %v925 = vunpack.c.h.b16 %v717
    %v926 = vunpack.c.l.b16 %v718
    %v927 = vunpack.c.h.b16 %v718
    %v928 = vunpack.c.l.b16 %v719
    %v929 = vunpack.c.h.b16 %v719
    %v930 = vunpack.c.l.b16 %v720
    %v931 = vunpack.c.h.b16 %v720
    %v932 = vunpack.c.l.b16 %v721
    %v933 = vunpack.c.h.b16 %v721
    %v934 = vunpack.c.l.b16 %v722
    %v935 = vunpack.c.h.b16 %v722
    %v936 = vunpack.c.l.b16 %v723
    %v937 = vunpack.c.h.b16 %v723
    %v938 = vpack.c.b16 %v814, %v810
    %v939 = vpack.c.b16 %v815, %v811
    %v940 = vpack.c.b16 %v816, %v812
    %v941 = vpack.c.b16 %v817, %v813
    %v942 = vpack.c.b16 %v822, %v818
    %v943 = vpack.c.b16 %v823, %v819
    %v944 = vpack.c.b16 %v824, %v820
    %v945 = vpack.c.b16 %v825, %v821
    %v946 = vpack.c.b16 %v830, %v826
    %v947 = vpack.c.b16 %v831, %v827
    %v948 = vpack.c.b16 %v832, %v828
    %v949 = vpack.c.b16 %v833, %v829
    %v950 = vpack.c.b16 %v838, %v834
    %v951 = vpack.c.b16 %v839, %v835
    %v952 = vpack.c.b16 %v840, %v836
    %v953 = vpack.c.b16 %v841, %v837
    %v954 = vpack.c.b16 %v846, %v842
    %v955 = vpack.c.b16 %v847, %v843
    %v956 = vpack.c.b16 %v848, %v844
    %v957 = vpack.c.b16 %v849, %v845
    %v958 = vpack.c.b16 %v854, %v850
    %v959 = vpack.c.b16 %v855, %v851
    %v960 = vpack.c.b16 %v856, %v852
    %v961 = vpack.c.b16 %v857, %v853
    %v962 = vpack.c.b16 %v862, %v858
    %v963 = vpack.c.b16 %v863, %v859
    %v964 = vpack.c.b16 %v864, %v860
    %v965 = vpack.c.b16 %v865, %v861
    %v966 = vpack.c.b16 %v870, %v866
    %v967 = vpack.c.b16 %v871, %v867
    %v968 = vpack.c.b16 %v872, %v868
    %v969 = vpack.c.b16 %v873, %v869
    %v970 = vpack.c.b16 %v878, %v874
    %v971 = vpack.c.b16 %v879, %v875
    %v972 = vpack.c.b16 %v880, %v876
    %v973 = vpack.c.b16 %v881, %v877
    %v974 = vpack.c.b16 %v886, %v882
    %v975 = vpack.c.b16 %v887, %v883
    %v976 = vpack.c.b16 %v888, %v884
    %v977 = vpack.c.b16 %v889, %v885
    %v978 = vpack.c.b16 %v894, %v890
    %v979 = vpack.c.b16 %v895, %v891
    %v980 = vpack.c.b16 %v896, %v892
    %v981 = vpack.c.b16 %v897, %v893
    %v982 = vpack.c.b16 %v902, %v898
    %v983 = vpack.c.b16 %v903, %v899
    %v984 = vpack.c.b16 %v904, %v900
    %v985 = vpack.c.b16 %v905, %v901
    %v986 = vpack.c.b16 %v910, %v906
    %v987 = vpack.c.b16 %v911, %v907
    %v988 = vpack.c.b16 %v912, %v908
    %v989 = vpack.c.b16 %v913, %v909
    %v990 = vpack.c.b16 %v918, %v914
    %v991 = vpack.c.b16 %v919, %v915
    %v992 = vpack.c.b16 %v920, %v916
    %v993 = vpack.c.b16 %v921, %v917
    %v994 = vpack.c.b16 %v926, %v922
    %v995 = vpack.c.b16 %v927, %v923
    %v996 = vpack.c.b16 %v928, %v924
    %v997 = vpack.c.b16 %v929, %v925
    %v998 = vpack.c.b16 %v934, %v930
    %v999 = vpack.c.b16 %v935, %v931
    %v1000 = vpack.c.b16 %v936, %v932
    %v1001 = vpack.c.b16 %v937, %v933
    %1066 = vmatprep.subr.bf16.mxu0 %v939
    %1067 = vmatpush1.bf16.msra.mxu0 %v938
    %1068 = vmatprep.subr.bf16.mxu0 %v943
    %1069 = vmatpush1.bf16.msra.mxu0 %v942
    %1070 = vmatprep.subr.bf16.mxu0 %v947
    %1071 = vmatpush1.bf16.msra.mxu0 %v946
    %1072 = vmatprep.subr.bf16.mxu0 %v951
    %1073 = vmatpush1.bf16.msra.mxu0 %v950
    %1074 = vmatprep.subr.bf16.mxu0 %v955
    %1075 = vmatpush1.bf16.msra.mxu0 %v954
    %1076 = vmatprep.subr.bf16.mxu0 %v959
    %1077 = vmatpush1.bf16.msra.mxu0 %v958
    %1078 = vmatprep.subr.bf16.mxu0 %v963
    %1079 = vmatpush1.bf16.msra.mxu0 %v962
    %1080 = vmatprep.subr.bf16.mxu0 %v967
    %1081 = vmatpush1.bf16.msra.mxu0 %v966
    %1082 = vmatprep.subr.bf16.mxu0 %v971
    %1083 = vmatpush1.bf16.msra.mxu0 %v970
    %1084 = vmatprep.subr.bf16.mxu0 %v975
    %1085 = vmatpush1.bf16.msra.mxu0 %v974
    %1086 = vmatprep.subr.bf16.mxu0 %v979
    %1087 = vmatpush1.bf16.msra.mxu0 %v978
    %1088 = vmatprep.subr.bf16.mxu0 %v983
    %1089 = vmatpush1.bf16.msra.mxu0 %v982
    %1090 = vmatprep.subr.bf16.mxu0 %v987
    %1091 = vmatpush1.bf16.msra.mxu0 %v986
    %1092 = vmatprep.subr.bf16.mxu0 %v991
    %1093 = vmatpush1.bf16.msra.mxu0 %v990
    %1094 = vmatprep.subr.bf16.mxu0 %v995
    %1095 = vmatpush1.bf16.msra.mxu0 %v994
    %1096 = vmatprep.subr.bf16.mxu0 %v999
    %1097 = vmatpush1.bf16.msra.mxu0 %v998
    %1098 = vmatprep.mubr.bf16.mxu0 %v659
    %1099 = vmatmul.mubr.bf16.gmra.mrb[0].mxu0 %v658
    %v1100 = vpop.f32.mrb[0].mxu0
    %v1101 = vadd.f32 %v729, %v1100
    %v1102 = vpop.f32.mrb[0].mxu0
    %v1103 = vadd.f32 %v733, %v1102
    %v1104 = vpop.f32.mrb[0].mxu0
    %v1105 = vpop.f32.mrb[0].mxu0
    %1106 = vdwg.mxu0
    %1107 = vmatprep.subr.bf16.mxu0 %v941
    %1108 = vmatpush1.bf16.msra.mxu0 %v940
    %1109 = vmatprep.subr.bf16.mxu0 %v945
    %1110 = vmatpush1.bf16.msra.mxu0 %v944
    %1111 = vmatprep.subr.bf16.mxu0 %v949
    %1112 = vmatpush1.bf16.msra.mxu0 %v948
    %1113 = vmatprep.subr.bf16.mxu0 %v953
    %1114 = vmatpush1.bf16.msra.mxu0 %v952
    %1115 = vmatprep.subr.bf16.mxu0 %v957
    %1116 = vmatpush1.bf16.msra.mxu0 %v956
    %1117 = vmatprep.subr.bf16.mxu0 %v961
    %1118 = vmatpush1.bf16.msra.mxu0 %v960
    %1119 = vmatprep.subr.bf16.mxu0 %v965
    %1120 = vmatpush1.bf16.msra.mxu0 %v964
    %1121 = vmatprep.subr.bf16.mxu0 %v969
    %1122 = vmatpush1.bf16.msra.mxu0 %v968
    %1123 = vmatprep.subr.bf16.mxu0 %v973
    %1124 = vmatpush1.bf16.msra.mxu0 %v972
    %1125 = vmatprep.subr.bf16.mxu0 %v977
    %1126 = vmatpush1.bf16.msra.mxu0 %v976
    %1127 = vmatprep.subr.bf16.mxu0 %v981
    %1128 = vmatpush1.bf16.msra.mxu0 %v980
    %1129 = vmatprep.subr.bf16.mxu0 %v985
    %1130 = vmatpush1.bf16.msra.mxu0 %v984
    %1131 = vmatprep.subr.bf16.mxu0 %v989
    %1132 = vmatpush1.bf16.msra.mxu0 %v988
    %1133 = vmatprep.subr.bf16.mxu0 %v993
    %1134 = vmatpush1.bf16.msra.mxu0 %v992
    %1135 = vmatprep.subr.bf16.mxu0 %v997
    %1136 = vmatpush1.bf16.msra.mxu0 %v996
    %1137 = vmatprep.subr.bf16.mxu0 %v1001
    %1138 = vmatpush1.bf16.msra.mxu0 %v1000
    %1139 = vmatprep.mubr.bf16.mxu0 %v659
    %1140 = vmatmul.mubr.bf16.gmra.mrb[0].mxu0 %v658
    %v1141 = vpop.f32.mrb[0].mxu0
    %v1142 = vadd.f32 %v737, %v1141
    %v1143 = vpop.f32.mrb[0].mxu0
    %v1144 = vadd.f32 %v741, %v1143
    %v1145 = vpop.f32.mrb[0].mxu0
    %v1146 = vpop.f32.mrb[0].mxu0
    %1147 = vdwg.mxu0
    %v1148 = vmul.f32 %v1101, %v271
    %v1149 = vmul.f32 %v1103, %v271
    %v1150 = vmul.f32 %v1142, %v271
    %v1151 = vmul.f32 %v1144, %v271
    %v1152 = vrot.slane %v1148, 4
    %v1153 = vadd.f32 %v1148, %v1152
    %v1154 = vrot.slane %v1153, 2
    %v1155 = vadd.f32 %v1153, %v1154
    %v1156 = vrot.slane %v1155, 1
    %v1157 = vadd.f32 %v1155, %v1156
    %v1158 = vrot.slane %v1149, 4
    %v1159 = vadd.f32 %v1149, %v1158
    %v1160 = vrot.slane %v1159, 2
    %v1161 = vadd.f32 %v1159, %v1160
    %v1162 = vrot.slane %v1161, 1
    %v1163 = vadd.f32 %v1161, %v1162
    %v1164 = vrot.slane %v1150, 4
    %v1165 = vadd.f32 %v1150, %v1164
    %v1166 = vrot.slane %v1165, 2
    %v1167 = vadd.f32 %v1165, %v1166
    %v1168 = vrot.slane %v1167, 1
    %v1169 = vadd.f32 %v1167, %v1168
    %v1170 = vrot.slane %v1151, 4
    %v1171 = vadd.f32 %v1151, %v1170
    %v1172 = vrot.slane %v1171, 2
    %v1173 = vadd.f32 %v1171, %v1172
    %v1174 = vrot.slane %v1173, 1
    %v1175 = vadd.f32 %v1173, %v1174
    %v1176 = vmul.f32 %v1157, 0.125
    %v1177 = vmul.f32 %v1163, 0.125
    %v1178 = vmul.f32 %v1169, 0.125
    %v1179 = vmul.f32 %v1175, 0.125
    %v1180 = vmul.f32 %v1148, %v1101
    %v1181 = vmul.f32 %v1149, %v1103
    %v1182 = vmul.f32 %v1150, %v1142
    %v1183 = vmul.f32 %v1151, %v1144
    %v1184 = vrot.slane %v1180, 4
    %v1185 = vadd.f32 %v1180, %v1184
    %v1186 = vrot.slane %v1185, 2
    %v1187 = vadd.f32 %v1185, %v1186
    %v1188 = vrot.slane %v1187, 1
    %v1189 = vadd.f32 %v1187, %v1188
    %v1190 = vrot.slane %v1181, 4
    %v1191 = vadd.f32 %v1181, %v1190
    %v1192 = vrot.slane %v1191, 2
    %v1193 = vadd.f32 %v1191, %v1192
    %v1194 = vrot.slane %v1193, 1
    %v1195 = vadd.f32 %v1193, %v1194
    %v1196 = vrot.slane %v1182, 4
    %v1197 = vadd.f32 %v1182, %v1196
    %v1198 = vrot.slane %v1197, 2
    %v1199 = vadd.f32 %v1197, %v1198
    %v1200 = vrot.slane %v1199, 1
    %v1201 = vadd.f32 %v1199, %v1200
    %v1202 = vrot.slane %v1183, 4
    %v1203 = vadd.f32 %v1183, %v1202
    %v1204 = vrot.slane %v1203, 2
    %v1205 = vadd.f32 %v1203, %v1204
    %v1206 = vrot.slane %v1205, 1
    %v1207 = vadd.f32 %v1205, %v1206
    %v1208 = vmul.f32 %v1189, 0.125
    %v1209 = vmul.f32 %v1195, 0.125
    %v1210 = vmul.f32 %v1201, 0.125
    %v1211 = vmul.f32 %v1207, 0.125
    %v1212 = vmul.f32 %v1176, %v1176
    %v1213 = vmul.f32 %v1177, %v1177
    %v1214 = vmul.f32 %v1178, %v1178
    %v1215 = vmul.f32 %v1179, %v1179
    %v1216 = vsub.f32 %v1208, %v1212
    %v1217 = vsub.f32 %v1209, %v1213
    %v1218 = vsub.f32 %v1210, %v1214
    %v1219 = vsub.f32 %v1211, %v1215
    %v1220 = vmax.f32 %v1216, 0.0
    %v1221 = vmax.f32 %v1217, 0.0
    %v1222 = vmax.f32 %v1218, 0.0
    %v1223 = vmax.f32 %v1219, 0.0
    %v1224 = vld [vmem:[#allocation17] sm:$0xf]
    %v1225 = vadd.f32 %v1220, 0.8
    %v1226 = vadd.f32 %v1221, 0.8
    %v1227 = vadd.f32 %v1222, 0.8
    %v1228 = vadd.f32 %v1223, 0.8
    %v1229 = vrsqrt.pop %v1225
    %v1230 = vrsqrt.pop %v1226
    %v1231 = vrsqrt.pop %v1227
    %v1232 = vrsqrt.pop %v1228
    %v1237 = vcombine.low %v1229, %v1230
    %v1238 = vcombine.low %v1231, %v1232
    %v1240 = vunpack.c.l.s4 1966171168
    %v1241 = vunpack.c.0.s8 %v1240
    %v1242 = vlaneseq
    %v1243 = vshrl.u32 %v1242, 7
    %v1244 = vsub.s32 %v1241, %v1243
    %v1245 = vrot.slane %v1237, %v1244
    %v1247 = vunpack.c.l.s4 1966171168
    %v1248 = vunpack.c.0.s8 %v1247
    %v1249 = vlaneseq
    %v1250 = vshrl.u32 %v1249, 7
    %v1251 = vsub.s32 %v1248, %v1250
    %v1252 = vrot.slane %v1238, %v1251
    %v1253 = vcombine.low %v1245, %v1252
    %v1255 = vunpack.c.l.s4 1966171168
    %v1256 = vunpack.c.0.s8 %v1255
    %v1257 = vlaneseq
    %v1258 = vshrl.u32 %v1257, 7
    %v1259 = vsub.s32 %v1256, %v1258
    %v1260 = vrot.slane %v1253, %v1259
    %v1262 = vmul.f32 %v1224, %v1260
    %v1263 = vld [vmem:[#allocation19] sm:$0xf]
    %v1265 = vlaneseq
    %v1266 = vshrl.u32 %v1265, 7
    %v1267 = vsub.s32 0, %v1266
    %v1268 = vrot.slane %v1262, %v1267
    %v1269 = vlaneseq
    %v1270 = vshrl.u32 %v1269, 7
    %v1271 = vsub.s32 1, %v1270
    %v1272 = vrot.slane %v1262, %v1271
    %v1273 = vlaneseq
    %v1274 = vshrl.u32 %v1273, 7
    %v1275 = vsub.s32 2, %v1274
    %v1276 = vrot.slane %v1262, %v1275
    %v1277 = vlaneseq
    %v1278 = vshrl.u32 %v1277, 7
    %v1279 = vsub.s32 3, %v1278
    %v1280 = vrot.slane %v1262, %v1279
    %v1285 = vmul.f32 %v1176, %v1268
    %v1286 = vmul.f32 %v1177, %v1272
    %v1287 = vmul.f32 %v1178, %v1276
    %v1288 = vmul.f32 %v1179, %v1280
    %v1293 = vcombine.low %v1285, %v1286
    %v1294 = vcombine.low %v1287, %v1288
    %v1296 = vunpack.c.l.s4 1966171168
    %v1297 = vunpack.c.0.s8 %v1296
    %v1298 = vlaneseq
    %v1299 = vshrl.u32 %v1298, 7
    %v1300 = vsub.s32 %v1297, %v1299
    %v1301 = vrot.slane %v1293, %v1300
    %v1303 = vunpack.c.l.s4 1966171168
    %v1304 = vunpack.c.0.s8 %v1303
    %v1305 = vlaneseq
    %v1306 = vshrl.u32 %v1305, 7
    %v1307 = vsub.s32 %v1304, %v1306
    %v1308 = vrot.slane %v1294, %v1307
    %v1309 = vcombine.low %v1301, %v1308
    %v1311 = vunpack.c.l.s4 1966171168
    %v1312 = vunpack.c.0.s8 %v1311
    %v1313 = vlaneseq
    %v1314 = vshrl.u32 %v1313, 7
    %v1315 = vsub.s32 %v1312, %v1314
    %v1316 = vrot.slane %v1309, %v1315
    %v1318 = vsub.f32 %v1263, %v1316
    %v1319 = vpack.c.bf16 %v1101, %v1101
    %v1320 = vpack.c.bf16 %v1103, %v1103
    %v1321 = vpack.c.bf16 %v1142, %v1142
    %v1322 = vpack.c.bf16 %v1144, %v1144
    %v1323 = vunpack.c.l.bf16 %v1319
    %v1324 = vunpack.c.l.bf16 %v1320
    %v1325 = vunpack.c.l.bf16 %v1321
    %v1326 = vunpack.c.l.bf16 %v1322
    %v1327 = vmul.f32 %v1323, %v1268
    %v1328 = vmul.f32 %v1324, %v1272
    %v1329 = vmul.f32 %v1325, %v1276
    %v1330 = vmul.f32 %v1326, %v1280
    %v1332 = vlaneseq
    %v1333 = vshrl.u32 %v1332, 7
    %v1334 = vsub.s32 0, %v1333
    %v1335 = vrot.slane %v1318, %v1334
    %v1336 = vlaneseq
    %v1337 = vshrl.u32 %v1336, 7
    %v1338 = vsub.s32 1, %v1337
    %v1339 = vrot.slane %v1318, %v1338
    %v1340 = vlaneseq
    %v1341 = vshrl.u32 %v1340, 7
    %v1342 = vsub.s32 2, %v1341
    %v1343 = vrot.slane %v1318, %v1342
    %v1344 = vlaneseq
    %v1345 = vshrl.u32 %v1344, 7
    %v1346 = vsub.s32 3, %v1345
    %v1347 = vrot.slane %v1318, %v1346
    %v1352 = vadd.f32 %v1327, %v1335
    %v1353 = vadd.f32 %v1328, %v1339
    %v1354 = vadd.f32 %v1329, %v1343
    %v1355 = vadd.f32 %v1330, %v1347
    %vm1356 = vcmp.gt.f32.partialorder %v1352, 0.0
    %vm1357 = vcmp.gt.f32.partialorder %v1353, 0.0
    %vm1358 = vcmp.gt.f32.partialorder %v1354, 0.0
    %vm1359 = vcmp.gt.f32.partialorder %v1355, 0.0
    %v1360 = vmul.f32 %v1352, 0.2
    %v1361 = vmul.f32 %v1353, 0.2
    %v1362 = vmul.f32 %v1354, 0.2
    %v1363 = vmul.f32 %v1355, 0.2
    %v1364 = vsel %vm1356, %v1352, %v1360
    %v1365 = vsel %vm1357, %v1353, %v1361
    %v1366 = vsel %vm1358, %v1354, %v1362
    %v1367 = vsel %vm1359, %v1355, %v1363
    %v1368 = vpack.c.bf16 %v1364, %v1364
    %v1369 = vpack.c.bf16 %v1365, %v1365
    %v1370 = vpack.c.bf16 %v1366, %v1366
    %v1371 = vpack.c.bf16 %v1367, %v1367
    %v1372 = vld [vmem:[#allocation20] sm:$0xff]
    %v1373 = vld [vmem:[#allocation20 + $0x8] sm:$0xff]
    %v1374 = vld [vmem:[#allocation20 + $0x10] sm:$0xff]
    %v1375 = vld [vmem:[#allocation20 + $0x18] sm:$0xff]
    %v1376 = vld [vmem:[#allocation20 + $0x20] sm:$0xff]
    %v1377 = vld [vmem:[#allocation20 + $0x28] sm:$0xff]
    %v1378 = vld [vmem:[#allocation20 + $0x30] sm:$0xff]
    %v1379 = vld [vmem:[#allocation20 + $0x38] sm:$0xff]
    %v1380 = vld [vmem:[#allocation20 + $0x40] sm:$0xff]
    %v1381 = vld [vmem:[#allocation20 + $0x48] sm:$0xff]
    %v1382 = vld [vmem:[#allocation20 + $0x50] sm:$0xff]
    %v1383 = vld [vmem:[#allocation20 + $0x58] sm:$0xff]
    %v1384 = vld [vmem:[#allocation20 + $0x60] sm:$0xff]
    %v1385 = vld [vmem:[#allocation20 + $0x68] sm:$0xff]
    %v1386 = vld [vmem:[#allocation20 + $0x70] sm:$0xff]
    %v1387 = vld [vmem:[#allocation20 + $0x78] sm:$0xff]
    %v1388 = vld [vmem:[#allocation20 + $0x80] sm:$0xff]
    %v1389 = vld [vmem:[#allocation20 + $0x88] sm:$0xff]
    %v1390 = vld [vmem:[#allocation20 + $0x90] sm:$0xff]
    %v1391 = vld [vmem:[#allocation20 + $0x98] sm:$0xff]
    %v1392 = vld [vmem:[#allocation20 + $0xa0] sm:$0xff]
    %v1393 = vld [vmem:[#allocation20 + $0xa8] sm:$0xff]
    %v1394 = vld [vmem:[#allocation20 + $0xb0] sm:$0xff]
    %v1395 = vld [vmem:[#allocation20 + $0xb8] sm:$0xff]
    %v1396 = vld [vmem:[#allocation20 + $0xc0] sm:$0xff]
    %v1397 = vld [vmem:[#allocation20 + $0xc8] sm:$0xff]
    %v1398 = vld [vmem:[#allocation20 + $0xd0] sm:$0xff]
    %v1399 = vld [vmem:[#allocation20 + $0xd8] sm:$0xff]
    %v1400 = vld [vmem:[#allocation20 + $0xe0] sm:$0xff]
    %v1401 = vld [vmem:[#allocation20 + $0xe8] sm:$0xff]
    %v1402 = vld [vmem:[#allocation20 + $0xf0] sm:$0xff]
    %v1403 = vld [vmem:[#allocation20 + $0xf8] sm:$0xff]
    %v1404 = vld [vmem:[#allocation20 + $0x100] sm:$0xff]
    %v1405 = vld [vmem:[#allocation20 + $0x108] sm:$0xff]
    %v1406 = vld [vmem:[#allocation20 + $0x110] sm:$0xff]
    %v1407 = vld [vmem:[#allocation20 + $0x118] sm:$0xff]
    %v1408 = vld [vmem:[#allocation20 + $0x120] sm:$0xff]
    %v1409 = vld [vmem:[#allocation20 + $0x128] sm:$0xff]
    %v1410 = vld [vmem:[#allocation20 + $0x130] sm:$0xff]
    %v1411 = vld [vmem:[#allocation20 + $0x138] sm:$0xff]
    %v1412 = vld [vmem:[#allocation20 + $0x140] sm:$0xff]
    %v1413 = vld [vmem:[#allocation20 + $0x148] sm:$0xff]
    %v1414 = vld [vmem:[#allocation20 + $0x150] sm:$0xff]
    %v1415 = vld [vmem:[#allocation20 + $0x158] sm:$0xff]
    %v1416 = vld [vmem:[#allocation20 + $0x160] sm:$0xff]
    %v1417 = vld [vmem:[#allocation20 + $0x168] sm:$0xff]
    %v1418 = vld [vmem:[#allocation20 + $0x170] sm:$0xff]
    %v1419 = vld [vmem:[#allocation20 + $0x178] sm:$0xff]
    %v1420 = vld [vmem:[#allocation20 + $0x180] sm:$0xff]
    %v1421 = vld [vmem:[#allocation20 + $0x188] sm:$0xff]
    %v1422 = vld [vmem:[#allocation20 + $0x190] sm:$0xff]
    %v1423 = vld [vmem:[#allocation20 + $0x198] sm:$0xff]
    %v1424 = vld [vmem:[#allocation20 + $0x1a0] sm:$0xff]
    %v1425 = vld [vmem:[#allocation20 + $0x1a8] sm:$0xff]
    %v1426 = vld [vmem:[#allocation20 + $0x1b0] sm:$0xff]
    %v1427 = vld [vmem:[#allocation20 + $0x1b8] sm:$0xff]
    %v1428 = vld [vmem:[#allocation20 + $0x1c0] sm:$0xff]
    %v1429 = vld [vmem:[#allocation20 + $0x1c8] sm:$0xff]
    %v1430 = vld [vmem:[#allocation20 + $0x1d0] sm:$0xff]
    %v1431 = vld [vmem:[#allocation20 + $0x1d8] sm:$0xff]
    %v1432 = vld [vmem:[#allocation20 + $0x1e0] sm:$0xff]
    %v1433 = vld [vmem:[#allocation20 + $0x1e8] sm:$0xff]
    %v1434 = vld [vmem:[#allocation20 + $0x1f0] sm:$0xff]
    %v1435 = vld [vmem:[#allocation20 + $0x1f8] sm:$0xff]
    %v1436 = vld [vmem:[#allocation20 + $0x200] sm:$0xff]
    %v1437 = vld [vmem:[#allocation20 + $0x208] sm:$0xff]
    %v1438 = vld [vmem:[#allocation20 + $0x210] sm:$0xff]
    %v1439 = vld [vmem:[#allocation20 + $0x218] sm:$0xff]
    %v1440 = vld [vmem:[#allocation20 + $0x220] sm:$0xff]
    %v1441 = vld [vmem:[#allocation20 + $0x228] sm:$0xff]
    %v1442 = vld [vmem:[#allocation20 + $0x230] sm:$0xff]
    %v1443 = vld [vmem:[#allocation20 + $0x238] sm:$0xff]
    %v1444 = vld [vmem:[#allocation20 + $0x240] sm:$0xff]
    %v1445 = vld [vmem:[#allocation20 + $0x248] sm:$0xff]
    %v1446 = vld [vmem:[#allocation20 + $0x250] sm:$0xff]
    %v1447 = vld [vmem:[#allocation20 + $0x258] sm:$0xff]
    %v1448 = vld [vmem:[#allocation20 + $0x260] sm:$0xff]
    %v1449 = vld [vmem:[#allocation20 + $0x268] sm:$0xff]
    %v1450 = vld [vmem:[#allocation20 + $0x270] sm:$0xff]
    %v1451 = vld [vmem:[#allocation20 + $0x278] sm:$0xff]
    %v1452 = vld [vmem:[#allocation20 + $0x280] sm:$0xff]
    %v1453 = vld [vmem:[#allocation20 + $0x288] sm:$0xff]
    %v1454 = vld [vmem:[#allocation20 + $0x290] sm:$0xff]
    %v1455 = vld [vmem:[#allocation20 + $0x298] sm:$0xff]
    %v1456 = vld [vmem:[#allocation20 + $0x2a0] sm:$0xff]
    %v1457 = vld [vmem:[#allocation20 + $0x2a8] sm:$0xff]
    %v1458 = vld [vmem:[#allocation20 + $0x2b0] sm:$0xff]
    %v1459 = vld [vmem:[#allocation20 + $0x2b8] sm:$0xff]
    %v1460 = vld [vmem:[#allocation20 + $0x2c0] sm:$0xff]
    %v1461 = vld [vmem:[#allocation20 + $0x2c8] sm:$0xff]
    %v1462 = vld [vmem:[#allocation20 + $0x2d0] sm:$0xff]
    %v1463 = vld [vmem:[#allocation20 + $0x2d8] sm:$0xff]
    %v1464 = vld [vmem:[#allocation20 + $0x2e0] sm:$0xff]
    %v1465 = vld [vmem:[#allocation20 + $0x2e8] sm:$0xff]
    %v1466 = vld [vmem:[#allocation20 + $0x2f0] sm:$0xff]
    %v1467 = vld [vmem:[#allocation20 + $0x2f8] sm:$0xff]
    %v1468 = vld [vmem:[#allocation20 + $0x300] sm:$0xff]
    %v1469 = vld [vmem:[#allocation20 + $0x308] sm:$0xff]
    %v1470 = vld [vmem:[#allocation20 + $0x310] sm:$0xff]
    %v1471 = vld [vmem:[#allocation20 + $0x318] sm:$0xff]
    %v1472 = vld [vmem:[#allocation20 + $0x320] sm:$0xff]
    %v1473 = vld [vmem:[#allocation20 + $0x328] sm:$0xff]
    %v1474 = vld [vmem:[#allocation20 + $0x330] sm:$0xff]
    %v1475 = vld [vmem:[#allocation20 + $0x338] sm:$0xff]
    %v1476 = vld [vmem:[#allocation20 + $0x340] sm:$0xff]
    %v1477 = vld [vmem:[#allocation20 + $0x348] sm:$0xff]
    %v1478 = vld [vmem:[#allocation20 + $0x350] sm:$0xff]
    %v1479 = vld [vmem:[#allocation20 + $0x358] sm:$0xff]
    %v1480 = vld [vmem:[#allocation20 + $0x360] sm:$0xff]
    %v1481 = vld [vmem:[#allocation20 + $0x368] sm:$0xff]
    %v1482 = vld [vmem:[#allocation20 + $0x370] sm:$0xff]
    %v1483 = vld [vmem:[#allocation20 + $0x378] sm:$0xff]
    %v1484 = vld [vmem:[#allocation20 + $0x380] sm:$0xff]
    %v1485 = vld [vmem:[#allocation20 + $0x388] sm:$0xff]
    %v1486 = vld [vmem:[#allocation20 + $0x390] sm:$0xff]
    %v1487 = vld [vmem:[#allocation20 + $0x398] sm:$0xff]
    %v1488 = vld [vmem:[#allocation20 + $0x3a0] sm:$0xff]
    %v1489 = vld [vmem:[#allocation20 + $0x3a8] sm:$0xff]
    %v1490 = vld [vmem:[#allocation20 + $0x3b0] sm:$0xff]
    %v1491 = vld [vmem:[#allocation20 + $0x3b8] sm:$0xff]
    %v1492 = vld [vmem:[#allocation20 + $0x3c0] sm:$0xff]
    %v1493 = vld [vmem:[#allocation20 + $0x3c8] sm:$0xff]
    %v1494 = vld [vmem:[#allocation20 + $0x3d0] sm:$0xff]
    %v1495 = vld [vmem:[#allocation20 + $0x3d8] sm:$0xff]
    %v1496 = vld [vmem:[#allocation20 + $0x3e0] sm:$0xff]
    %v1497 = vld [vmem:[#allocation20 + $0x3e8] sm:$0xff]
    %v1498 = vld [vmem:[#allocation20 + $0x3f0] sm:$0xff]
    %v1499 = vld [vmem:[#allocation20 + $0x3f8] sm:$0xff]
    %v1500 = vld [vmem:[#allocation20 + $0x400] sm:$0xff]
    %v1501 = vld [vmem:[#allocation20 + $0x408] sm:$0xff]
    %v1502 = vld [vmem:[#allocation20 + $0x410] sm:$0xff]
    %v1503 = vld [vmem:[#allocation20 + $0x418] sm:$0xff]
    %v1504 = vld [vmem:[#allocation20 + $0x420] sm:$0xff]
    %v1505 = vld [vmem:[#allocation20 + $0x428] sm:$0xff]
    %v1506 = vld [vmem:[#allocation20 + $0x430] sm:$0xff]
    %v1507 = vld [vmem:[#allocation20 + $0x438] sm:$0xff]
    %v1508 = vld [vmem:[#allocation20 + $0x440] sm:$0xff]
    %v1509 = vld [vmem:[#allocation20 + $0x448] sm:$0xff]
    %v1510 = vld [vmem:[#allocation20 + $0x450] sm:$0xff]
    %v1511 = vld [vmem:[#allocation20 + $0x458] sm:$0xff]
    %v1512 = vld [vmem:[#allocation20 + $0x460] sm:$0xff]
    %v1513 = vld [vmem:[#allocation20 + $0x468] sm:$0xff]
    %v1514 = vld [vmem:[#allocation20 + $0x470] sm:$0xff]
    %v1515 = vld [vmem:[#allocation20 + $0x478] sm:$0xff]
    %v1516 = vld [vmem:[#allocation20 + $0x480] sm:$0xff]
    %v1517 = vld [vmem:[#allocation20 + $0x488] sm:$0xff]
    %v1518 = vld [vmem:[#allocation20 + $0x490] sm:$0xff]
    %v1519 = vld [vmem:[#allocation20 + $0x498] sm:$0xff]
    %v1520 = vld [vmem:[#allocation20 + $0x4a0] sm:$0xff]
    %v1521 = vld [vmem:[#allocation20 + $0x4a8] sm:$0xff]
    %v1522 = vld [vmem:[#allocation20 + $0x4b0] sm:$0xff]
    %v1523 = vld [vmem:[#allocation20 + $0x4b8] sm:$0xff]
    %v1524 = vld [vmem:[#allocation20 + $0x4c0] sm:$0xff]
    %v1525 = vld [vmem:[#allocation20 + $0x4c8] sm:$0xff]
    %v1526 = vld [vmem:[#allocation20 + $0x4d0] sm:$0xff]
    %v1527 = vld [vmem:[#allocation20 + $0x4d8] sm:$0xff]
    %v1528 = vld [vmem:[#allocation20 + $0x4e0] sm:$0xff]
    %v1529 = vld [vmem:[#allocation20 + $0x4e8] sm:$0xff]
    %v1530 = vld [vmem:[#allocation20 + $0x4f0] sm:$0xff]
    %v1531 = vld [vmem:[#allocation20 + $0x4f8] sm:$0xff]
    %v1532 = vld [vmem:[#allocation20 + $0x500] sm:$0xff]
    %v1533 = vld [vmem:[#allocation20 + $0x508] sm:$0xff]
    %v1534 = vld [vmem:[#allocation20 + $0x510] sm:$0xff]
    %v1535 = vld [vmem:[#allocation20 + $0x518] sm:$0xff]
    %v1536 = vld [vmem:[#allocation20 + $0x520] sm:$0xff]
    %v1537 = vld [vmem:[#allocation20 + $0x528] sm:$0xff]
    %v1538 = vld [vmem:[#allocation20 + $0x530] sm:$0xff]
    %v1539 = vld [vmem:[#allocation20 + $0x538] sm:$0xff]
    %v1540 = vld [vmem:[#allocation20 + $0x540] sm:$0xff]
    %v1541 = vld [vmem:[#allocation20 + $0x548] sm:$0xff]
    %v1542 = vld [vmem:[#allocation20 + $0x550] sm:$0xff]
    %v1543 = vld [vmem:[#allocation20 + $0x558] sm:$0xff]
    %v1544 = vld [vmem:[#allocation20 + $0x560] sm:$0xff]
    %v1545 = vld [vmem:[#allocation20 + $0x568] sm:$0xff]
    %v1546 = vld [vmem:[#allocation20 + $0x570] sm:$0xff]
    %v1547 = vld [vmem:[#allocation20 + $0x578] sm:$0xff]
    %v1548 = vld [vmem:[#allocation20 + $0x580] sm:$0xff]
    %v1549 = vld [vmem:[#allocation20 + $0x588] sm:$0xff]
    %v1550 = vld [vmem:[#allocation20 + $0x590] sm:$0xff]
    %v1551 = vld [vmem:[#allocation20 + $0x598] sm:$0xff]
    %v1552 = vld [vmem:[#allocation20 + $0x5a0] sm:$0xff]
    %v1553 = vld [vmem:[#allocation20 + $0x5a8] sm:$0xff]
    %v1554 = vld [vmem:[#allocation20 + $0x5b0] sm:$0xff]
    %v1555 = vld [vmem:[#allocation20 + $0x5b8] sm:$0xff]
    %v1556 = vld [vmem:[#allocation20 + $0x5c0] sm:$0xff]
    %v1557 = vld [vmem:[#allocation20 + $0x5c8] sm:$0xff]
    %v1558 = vld [vmem:[#allocation20 + $0x5d0] sm:$0xff]
    %v1559 = vld [vmem:[#allocation20 + $0x5d8] sm:$0xff]
    %v1560 = vld [vmem:[#allocation20 + $0x5e0] sm:$0xff]
    %v1561 = vld [vmem:[#allocation20 + $0x5e8] sm:$0xff]
    %v1562 = vld [vmem:[#allocation20 + $0x5f0] sm:$0xff]
    %v1563 = vld [vmem:[#allocation20 + $0x5f8] sm:$0xff]
    %v1564 = vld [vmem:[#allocation20 + $0x600] sm:$0xff]
    %v1565 = vld [vmem:[#allocation20 + $0x608] sm:$0xff]
    %v1566 = vld [vmem:[#allocation20 + $0x610] sm:$0xff]
    %v1567 = vld [vmem:[#allocation20 + $0x618] sm:$0xff]
    %v1568 = vld [vmem:[#allocation20 + $0x620] sm:$0xff]
    %v1569 = vld [vmem:[#allocation20 + $0x628] sm:$0xff]
    %v1570 = vld [vmem:[#allocation20 + $0x630] sm:$0xff]
    %v1571 = vld [vmem:[#allocation20 + $0x638] sm:$0xff]
    %v1572 = vld [vmem:[#allocation20 + $0x640] sm:$0xff]
    %v1573 = vld [vmem:[#allocation20 + $0x648] sm:$0xff]
    %v1574 = vld [vmem:[#allocation20 + $0x650] sm:$0xff]
    %v1575 = vld [vmem:[#allocation20 + $0x658] sm:$0xff]
    %v1576 = vld [vmem:[#allocation20 + $0x660] sm:$0xff]
    %v1577 = vld [vmem:[#allocation20 + $0x668] sm:$0xff]
    %v1578 = vld [vmem:[#allocation20 + $0x670] sm:$0xff]
    %v1579 = vld [vmem:[#allocation20 + $0x678] sm:$0xff]
    %v1580 = vld [vmem:[#allocation20 + $0x680] sm:$0xff]
    %v1581 = vld [vmem:[#allocation20 + $0x688] sm:$0xff]
    %v1582 = vld [vmem:[#allocation20 + $0x690] sm:$0xff]
    %v1583 = vld [vmem:[#allocation20 + $0x698] sm:$0xff]
    %v1584 = vld [vmem:[#allocation20 + $0x6a0] sm:$0xff]
    %v1585 = vld [vmem:[#allocation20 + $0x6a8] sm:$0xff]
    %v1586 = vld [vmem:[#allocation20 + $0x6b0] sm:$0xff]
    %v1587 = vld [vmem:[#allocation20 + $0x6b8] sm:$0xff]
    %v1588 = vld [vmem:[#allocation20 + $0x6c0] sm:$0xff]
    %v1589 = vld [vmem:[#allocation20 + $0x6c8] sm:$0xff]
    %v1590 = vld [vmem:[#allocation20 + $0x6d0] sm:$0xff]
    %v1591 = vld [vmem:[#allocation20 + $0x6d8] sm:$0xff]
    %v1592 = vld [vmem:[#allocation20 + $0x6e0] sm:$0xff]
    %v1593 = vld [vmem:[#allocation20 + $0x6e8] sm:$0xff]
    %v1594 = vld [vmem:[#allocation20 + $0x6f0] sm:$0xff]
    %v1595 = vld [vmem:[#allocation20 + $0x6f8] sm:$0xff]
    %v1596 = vld [vmem:[#allocation20 + $0x700] sm:$0xff]
    %v1597 = vld [vmem:[#allocation20 + $0x708] sm:$0xff]
    %v1598 = vld [vmem:[#allocation20 + $0x710] sm:$0xff]
    %v1599 = vld [vmem:[#allocation20 + $0x718] sm:$0xff]
    %v1600 = vld [vmem:[#allocation20 + $0x720] sm:$0xff]
    %v1601 = vld [vmem:[#allocation20 + $0x728] sm:$0xff]
    %v1602 = vld [vmem:[#allocation20 + $0x730] sm:$0xff]
    %v1603 = vld [vmem:[#allocation20 + $0x738] sm:$0xff]
    %v1604 = vld [vmem:[#allocation20 + $0x740] sm:$0xff]
    %v1605 = vld [vmem:[#allocation20 + $0x748] sm:$0xff]
    %v1606 = vld [vmem:[#allocation20 + $0x750] sm:$0xff]
    %v1607 = vld [vmem:[#allocation20 + $0x758] sm:$0xff]
    %v1608 = vld [vmem:[#allocation20 + $0x760] sm:$0xff]
    %v1609 = vld [vmem:[#allocation20 + $0x768] sm:$0xff]
    %v1610 = vld [vmem:[#allocation20 + $0x770] sm:$0xff]
    %v1611 = vld [vmem:[#allocation20 + $0x778] sm:$0xff]
    %v1612 = vld [vmem:[#allocation20 + $0x780] sm:$0xff]
    %v1613 = vld [vmem:[#allocation20 + $0x788] sm:$0xff]
    %v1614 = vld [vmem:[#allocation20 + $0x790] sm:$0xff]
    %v1615 = vld [vmem:[#allocation20 + $0x798] sm:$0xff]
    %v1616 = vld [vmem:[#allocation20 + $0x7a0] sm:$0xff]
    %v1617 = vld [vmem:[#allocation20 + $0x7a8] sm:$0xff]
    %v1618 = vld [vmem:[#allocation20 + $0x7b0] sm:$0xff]
    %v1619 = vld [vmem:[#allocation20 + $0x7b8] sm:$0xff]
    %v1620 = vld [vmem:[#allocation20 + $0x7c0] sm:$0xff]
    %v1621 = vld [vmem:[#allocation20 + $0x7c8] sm:$0xff]
    %v1622 = vld [vmem:[#allocation20 + $0x7d0] sm:$0xff]
    %v1623 = vld [vmem:[#allocation20 + $0x7d8] sm:$0xff]
    %v1624 = vld [vmem:[#allocation20 + $0x7e0] sm:$0xff]
    %v1625 = vld [vmem:[#allocation20 + $0x7e8] sm:$0xff]
    %v1626 = vld [vmem:[#allocation20 + $0x7f0] sm:$0xff]
    %v1627 = vld [vmem:[#allocation20 + $0x7f8] sm:$0xff]
    %v1628 = vld [vmem:[#allocation22] sm:$0xff]
    %v1630 = vlaneseq
    %v1631 = vshrl.u32 %v1630, 7
    %v1632 = vsub.s32 0, %v1631
    %v1633 = vrot.slane %v1628, %v1632
    %v1634 = vlaneseq
    %v1635 = vshrl.u32 %v1634, 7
    %v1636 = vsub.s32 1, %v1635
    %v1637 = vrot.slane %v1628, %v1636
    %v1638 = vlaneseq
    %v1639 = vshrl.u32 %v1638, 7
    %v1640 = vsub.s32 2, %v1639
    %v1641 = vrot.slane %v1628, %v1640
    %v1642 = vlaneseq
    %v1643 = vshrl.u32 %v1642, 7
    %v1644 = vsub.s32 3, %v1643
    %v1645 = vrot.slane %v1628, %v1644
    %v1646 = vlaneseq
    %v1647 = vshrl.u32 %v1646, 7
    %v1648 = vsub.s32 4, %v1647
    %v1649 = vrot.slane %v1628, %v1648
    %v1650 = vlaneseq
    %v1651 = vshrl.u32 %v1650, 7
    %v1652 = vsub.s32 5, %v1651
    %v1653 = vrot.slane %v1628, %v1652
    %v1654 = vlaneseq
    %v1655 = vshrl.u32 %v1654, 7
    %v1656 = vsub.s32 6, %v1655
    %v1657 = vrot.slane %v1628, %v1656
    %v1658 = vlaneseq
    %v1659 = vshrl.u32 %v1658, 7
    %v1660 = vsub.s32 7, %v1659
    %v1661 = vrot.slane %v1628, %v1660
    %v1926 = vunpack.c.l.b16 %v1372
    %v1927 = vunpack.c.h.b16 %v1372
    %v1928 = vunpack.c.l.b16 %v1373
    %v1929 = vunpack.c.h.b16 %v1373
    %v1930 = vunpack.c.l.b16 %v1374
    %v1931 = vunpack.c.h.b16 %v1374
    %v1932 = vunpack.c.l.b16 %v1375
    %v1933 = vunpack.c.h.b16 %v1375
    %v1934 = vunpack.c.l.b16 %v1376
    %v1935 = vunpack.c.h.b16 %v1376
    %v1936 = vunpack.c.l.b16 %v1377
    %v1937 = vunpack.c.h.b16 %v1377
    %v1938 = vunpack.c.l.b16 %v1378
    %v1939 = vunpack.c.h.b16 %v1378
    %v1940 = vunpack.c.l.b16 %v1379
    %v1941 = vunpack.c.h.b16 %v1379
    %v1942 = vunpack.c.l.b16 %v1380
    %v1943 = vunpack.c.h.b16 %v1380
    %v1944 = vunpack.c.l.b16 %v1381
    %v1945 = vunpack.c.h.b16 %v1381
    %v1946 = vunpack.c.l.b16 %v1382
    %v1947 = vunpack.c.h.b16 %v1382
    %v1948 = vunpack.c.l.b16 %v1383
    %v1949 = vunpack.c.h.b16 %v1383
    %v1950 = vunpack.c.l.b16 %v1384
    %v1951 = vunpack.c.h.b16 %v1384
    %v1952 = vunpack.c.l.b16 %v1385
    %v1953 = vunpack.c.h.b16 %v1385
    %v1954 = vunpack.c.l.b16 %v1386
    %v1955 = vunpack.c.h.b16 %v1386
    %v1956 = vunpack.c.l.b16 %v1387
    %v1957 = vunpack.c.h.b16 %v1387
    %v1958 = vunpack.c.l.b16 %v1388
    %v1959 = vunpack.c.h.b16 %v1388
    %v1960 = vunpack.c.l.b16 %v1389
    %v1961 = vunpack.c.h.b16 %v1389
    %v1962 = vunpack.c.l.b16 %v1390
    %v1963 = vunpack.c.h.b16 %v1390
    %v1964 = vunpack.c.l.b16 %v1391
    %v1965 = vunpack.c.h.b16 %v1391
    %v1966 = vunpack.c.l.b16 %v1392
    %v1967 = vunpack.c.h.b16 %v1392
    %v1968 = vunpack.c.l.b16 %v1393
    %v1969 = vunpack.c.h.b16 %v1393
    %v1970 = vunpack.c.l.b16 %v1394
    %v1971 = vunpack.c.h.b16 %v1394
    %v1972 = vunpack.c.l.b16 %v1395
    %v1973 = vunpack.c.h.b16 %v1395
    %v1974 = vunpack.c.l.b16 %v1396
    %v1975 = vunpack.c.h.b16 %v1396
    %v1976 = vunpack.c.l.b16 %v1397
    %v1977 = vunpack.c.h.b16 %v1397
    %v1978 = vunpack.c.l.b16 %v1398
    %v1979 = vunpack.c.h.b16 %v1398
    %v1980 = vunpack.c.l.b16 %v1399
    %v1981 = vunpack.c.h.b16 %v1399
    %v1982 = vunpack.c.l.b16 %v1400
    %v1983 = vunpack.c.h.b16 %v1400
    %v1984 = vunpack.c.l.b16 %v1401
    %v1985 = vunpack.c.h.b16 %v1401
    %v1986 = vunpack.c.l.b16 %v1402
    %v1987 = vunpack.c.h.b16 %v1402
    %v1988 = vunpack.c.l.b16 %v1403
    %v1989 = vunpack.c.h.b16 %v1403
    %v1990 = vunpack.c.l.b16 %v1404
    %v1991 = vunpack.c.h.b16 %v1404
    %v1992 = vunpack.c.l.b16 %v1405
    %v1993 = vunpack.c.h.b16 %v1405
    %v1994 = vunpack.c.l.b16 %v1406
    %v1995 = vunpack.c.h.b16 %v1406
    %v1996 = vunpack.c.l.b16 %v1407
    %v1997 = vunpack.c.h.b16 %v1407
    %v1998 = vunpack.c.l.b16 %v1408
    %v1999 = vunpack.c.h.b16 %v1408
    %v2000 = vunpack.c.l.b16 %v1409
    %v2001 = vunpack.c.h.b16 %v1409
    %v2002 = vunpack.c.l.b16 %v1410
    %v2003 = vunpack.c.h.b16 %v1410
    %v2004 = vunpack.c.l.b16 %v1411
    %v2005 = vunpack.c.h.b16 %v1411
    %v2006 = vunpack.c.l.b16 %v1412
    %v2007 = vunpack.c.h.b16 %v1412
    %v2008 = vunpack.c.l.b16 %v1413
    %v2009 = vunpack.c.h.b16 %v1413
    %v2010 = vunpack.c.l.b16 %v1414
    %v2011 = vunpack.c.h.b16 %v1414
    %v2012 = vunpack.c.l.b16 %v1415
    %v2013 = vunpack.c.h.b16 %v1415
    %v2014 = vunpack.c.l.b16 %v1416
    %v2015 = vunpack.c.h.b16 %v1416
    %v2016 = vunpack.c.l.b16 %v1417
    %v2017 = vunpack.c.h.b16 %v1417
    %v2018 = vunpack.c.l.b16 %v1418
    %v2019 = vunpack.c.h.b16 %v1418
    %v2020 = vunpack.c.l.b16 %v1419
    %v2021 = vunpack.c.h.b16 %v1419
    %v2022 = vunpack.c.l.b16 %v1420
    %v2023 = vunpack.c.h.b16 %v1420
    %v2024 = vunpack.c.l.b16 %v1421
    %v2025 = vunpack.c.h.b16 %v1421
    %v2026 = vunpack.c.l.b16 %v1422
    %v2027 = vunpack.c.h.b16 %v1422
    %v2028 = vunpack.c.l.b16 %v1423
    %v2029 = vunpack.c.h.b16 %v1423
    %v2030 = vunpack.c.l.b16 %v1424
    %v2031 = vunpack.c.h.b16 %v1424
    %v2032 = vunpack.c.l.b16 %v1425
    %v2033 = vunpack.c.h.b16 %v1425
    %v2034 = vunpack.c.l.b16 %v1426
    %v2035 = vunpack.c.h.b16 %v1426
    %v2036 = vunpack.c.l.b16 %v1427
    %v2037 = vunpack.c.h.b16 %v1427
    %v2038 = vunpack.c.l.b16 %v1428
    %v2039 = vunpack.c.h.b16 %v1428
    %v2040 = vunpack.c.l.b16 %v1429
    %v2041 = vunpack.c.h.b16 %v1429
    %v2042 = vunpack.c.l.b16 %v1430
    %v2043 = vunpack.c.h.b16 %v1430
    %v2044 = vunpack.c.l.b16 %v1431
    %v2045 = vunpack.c.h.b16 %v1431
    %v2046 = vunpack.c.l.b16 %v1432
    %v2047 = vunpack.c.h.b16 %v1432
    %v2048 = vunpack.c.l.b16 %v1433
    %v2049 = vunpack.c.h.b16 %v1433
    %v2050 = vunpack.c.l.b16 %v1434
    %v2051 = vunpack.c.h.b16 %v1434
    %v2052 = vunpack.c.l.b16 %v1435
    %v2053 = vunpack.c.h.b16 %v1435
    %v2054 = vunpack.c.l.b16 %v1436
    %v2055 = vunpack.c.h.b16 %v1436
    %v2056 = vunpack.c.l.b16 %v1437
    %v2057 = vunpack.c.h.b16 %v1437
    %v2058 = vunpack.c.l.b16 %v1438
    %v2059 = vunpack.c.h.b16 %v1438
    %v2060 = vunpack.c.l.b16 %v1439
    %v2061 = vunpack.c.h.b16 %v1439
    %v2062 = vunpack.c.l.b16 %v1440
    %v2063 = vunpack.c.h.b16 %v1440
    %v2064 = vunpack.c.l.b16 %v1441
    %v2065 = vunpack.c.h.b16 %v1441
    %v2066 = vunpack.c.l.b16 %v1442
    %v2067 = vunpack.c.h.b16 %v1442
    %v2068 = vunpack.c.l.b16 %v1443
    %v2069 = vunpack.c.h.b16 %v1443
    %v2070 = vunpack.c.l.b16 %v1444
    %v2071 = vunpack.c.h.b16 %v1444
    %v2072 = vunpack.c.l.b16 %v1445
    %v2073 = vunpack.c.h.b16 %v1445
    %v2074 = vunpack.c.l.b16 %v1446
    %v2075 = vunpack.c.h.b16 %v1446
    %v2076 = vunpack.c.l.b16 %v1447
    %v2077 = vunpack.c.h.b16 %v1447
    %v2078 = vunpack.c.l.b16 %v1448
    %v2079 = vunpack.c.h.b16 %v1448
    %v2080 = vunpack.c.l.b16 %v1449
    %v2081 = vunpack.c.h.b16 %v1449
    %v2082 = vunpack.c.l.b16 %v1450
    %v2083 = vunpack.c.h.b16 %v1450
    %v2084 = vunpack.c.l.b16 %v1451
    %v2085 = vunpack.c.h.b16 %v1451
    %v2086 = vunpack.c.l.b16 %v1452
    %v2087 = vunpack.c.h.b16 %v1452
    %v2088 = vunpack.c.l.b16 %v1453
    %v2089 = vunpack.c.h.b16 %v1453
    %v2090 = vunpack.c.l.b16 %v1454
    %v2091 = vunpack.c.h.b16 %v1454
    %v2092 = vunpack.c.l.b16 %v1455
    %v2093 = vunpack.c.h.b16 %v1455
    %v2094 = vunpack.c.l.b16 %v1456
    %v2095 = vunpack.c.h.b16 %v1456
    %v2096 = vunpack.c.l.b16 %v1457
    %v2097 = vunpack.c.h.b16 %v1457
    %v2098 = vunpack.c.l.b16 %v1458
    %v2099 = vunpack.c.h.b16 %v1458
    %v2100 = vunpack.c.l.b16 %v1459
    %v2101 = vunpack.c.h.b16 %v1459
    %v2102 = vunpack.c.l.b16 %v1460
    %v2103 = vunpack.c.h.b16 %v1460
    %v2104 = vunpack.c.l.b16 %v1461
    %v2105 = vunpack.c.h.b16 %v1461
    %v2106 = vunpack.c.l.b16 %v1462
    %v2107 = vunpack.c.h.b16 %v1462
    %v2108 = vunpack.c.l.b16 %v1463
    %v2109 = vunpack.c.h.b16 %v1463
    %v2110 = vunpack.c.l.b16 %v1464
    %v2111 = vunpack.c.h.b16 %v1464
    %v2112 = vunpack.c.l.b16 %v1465
    %v2113 = vunpack.c.h.b16 %v1465
    %v2114 = vunpack.c.l.b16 %v1466
    %v2115 = vunpack.c.h.b16 %v1466
    %v2116 = vunpack.c.l.b16 %v1467
    %v2117 = vunpack.c.h.b16 %v1467
    %v2118 = vunpack.c.l.b16 %v1468
    %v2119 = vunpack.c.h.b16 %v1468
    %v2120 = vunpack.c.l.b16 %v1469
    %v2121 = vunpack.c.h.b16 %v1469
    %v2122 = vunpack.c.l.b16 %v1470
    %v2123 = vunpack.c.h.b16 %v1470
    %v2124 = vunpack.c.l.b16 %v1471
    %v2125 = vunpack.c.h.b16 %v1471
    %v2126 = vunpack.c.l.b16 %v1472
    %v2127 = vunpack.c.h.b16 %v1472
    %v2128 = vunpack.c.l.b16 %v1473
    %v2129 = vunpack.c.h.b16 %v1473
    %v2130 = vunpack.c.l.b16 %v1474
    %v2131 = vunpack.c.h.b16 %v1474
    %v2132 = vunpack.c.l.b16 %v1475
    %v2133 = vunpack.c.h.b16 %v1475
    %v2134 = vunpack.c.l.b16 %v1476
    %v2135 = vunpack.c.h.b16 %v1476
    %v2136 = vunpack.c.l.b16 %v1477
    %v2137 = vunpack.c.h.b16 %v1477
    %v2138 = vunpack.c.l.b16 %v1478
    %v2139 = vunpack.c.h.b16 %v1478
    %v2140 = vunpack.c.l.b16 %v1479
    %v2141 = vunpack.c.h.b16 %v1479
    %v2142 = vunpack.c.l.b16 %v1480
    %v2143 = vunpack.c.h.b16 %v1480
    %v2144 = vunpack.c.l.b16 %v1481
    %v2145 = vunpack.c.h.b16 %v1481
    %v2146 = vunpack.c.l.b16 %v1482
    %v2147 = vunpack.c.h.b16 %v1482
    %v2148 = vunpack.c.l.b16 %v1483
    %v2149 = vunpack.c.h.b16 %v1483
    %v2150 = vunpack.c.l.b16 %v1484
    %v2151 = vunpack.c.h.b16 %v1484
    %v2152 = vunpack.c.l.b16 %v1485
    %v2153 = vunpack.c.h.b16 %v1485
    %v2154 = vunpack.c.l.b16 %v1486
    %v2155 = vunpack.c.h.b16 %v1486
    %v2156 = vunpack.c.l.b16 %v1487
    %v2157 = vunpack.c.h.b16 %v1487
    %v2158 = vunpack.c.l.b16 %v1488
    %v2159 = vunpack.c.h.b16 %v1488
    %v2160 = vunpack.c.l.b16 %v1489
    %v2161 = vunpack.c.h.b16 %v1489
    %v2162 = vunpack.c.l.b16 %v1490
    %v2163 = vunpack.c.h.b16 %v1490
    %v2164 = vunpack.c.l.b16 %v1491
    %v2165 = vunpack.c.h.b16 %v1491
    %v2166 = vunpack.c.l.b16 %v1492
    %v2167 = vunpack.c.h.b16 %v1492
    %v2168 = vunpack.c.l.b16 %v1493
    %v2169 = vunpack.c.h.b16 %v1493
    %v2170 = vunpack.c.l.b16 %v1494
    %v2171 = vunpack.c.h.b16 %v1494
    %v2172 = vunpack.c.l.b16 %v1495
    %v2173 = vunpack.c.h.b16 %v1495
    %v2174 = vunpack.c.l.b16 %v1496
    %v2175 = vunpack.c.h.b16 %v1496
    %v2176 = vunpack.c.l.b16 %v1497
    %v2177 = vunpack.c.h.b16 %v1497
    %v2178 = vunpack.c.l.b16 %v1498
    %v2179 = vunpack.c.h.b16 %v1498
    %v2180 = vunpack.c.l.b16 %v1499
    %v2181 = vunpack.c.h.b16 %v1499
    %v2182 = vunpack.c.l.b16 %v1500
    %v2183 = vunpack.c.h.b16 %v1500
    %v2184 = vunpack.c.l.b16 %v1501
    %v2185 = vunpack.c.h.b16 %v1501
    %v2186 = vunpack.c.l.b16 %v1502
    %v2187 = vunpack.c.h.b16 %v1502
    %v2188 = vunpack.c.l.b16 %v1503
    %v2189 = vunpack.c.h.b16 %v1503
    %v2190 = vunpack.c.l.b16 %v1504
    %v2191 = vunpack.c.h.b16 %v1504
    %v2192 = vunpack.c.l.b16 %v1505
    %v2193 = vunpack.c.h.b16 %v1505
    %v2194 = vunpack.c.l.b16 %v1506
    %v2195 = vunpack.c.h.b16 %v1506
    %v2196 = vunpack.c.l.b16 %v1507
    %v2197 = vunpack.c.h.b16 %v1507
    %v2198 = vunpack.c.l.b16 %v1508
    %v2199 = vunpack.c.h.b16 %v1508
    %v2200 = vunpack.c.l.b16 %v1509
    %v2201 = vunpack.c.h.b16 %v1509
    %v2202 = vunpack.c.l.b16 %v1510
    %v2203 = vunpack.c.h.b16 %v1510
    %v2204 = vunpack.c.l.b16 %v1511
    %v2205 = vunpack.c.h.b16 %v1511
    %v2206 = vunpack.c.l.b16 %v1512
    %v2207 = vunpack.c.h.b16 %v1512
    %v2208 = vunpack.c.l.b16 %v1513
    %v2209 = vunpack.c.h.b16 %v1513
    %v2210 = vunpack.c.l.b16 %v1514
    %v2211 = vunpack.c.h.b16 %v1514
    %v2212 = vunpack.c.l.b16 %v1515
    %v2213 = vunpack.c.h.b16 %v1515
    %v2214 = vunpack.c.l.b16 %v1516
    %v2215 = vunpack.c.h.b16 %v1516
    %v2216 = vunpack.c.l.b16 %v1517
    %v2217 = vunpack.c.h.b16 %v1517
    %v2218 = vunpack.c.l.b16 %v1518
    %v2219 = vunpack.c.h.b16 %v1518
    %v2220 = vunpack.c.l.b16 %v1519
    %v2221 = vunpack.c.h.b16 %v1519
    %v2222 = vunpack.c.l.b16 %v1520
    %v2223 = vunpack.c.h.b16 %v1520
    %v2224 = vunpack.c.l.b16 %v1521
    %v2225 = vunpack.c.h.b16 %v1521
    %v2226 = vunpack.c.l.b16 %v1522
    %v2227 = vunpack.c.h.b16 %v1522
    %v2228 = vunpack.c.l.b16 %v1523
    %v2229 = vunpack.c.h.b16 %v1523
    %v2230 = vunpack.c.l.b16 %v1524
    %v2231 = vunpack.c.h.b16 %v1524
    %v2232 = vunpack.c.l.b16 %v1525
    %v2233 = vunpack.c.h.b16 %v1525
    %v2234 = vunpack.c.l.b16 %v1526
    %v2235 = vunpack.c.h.b16 %v1526
    %v2236 = vunpack.c.l.b16 %v1527
    %v2237 = vunpack.c.h.b16 %v1527
    %v2238 = vunpack.c.l.b16 %v1528
    %v2239 = vunpack.c.h.b16 %v1528
    %v2240 = vunpack.c.l.b16 %v1529
    %v2241 = vunpack.c.h.b16 %v1529
    %v2242 = vunpack.c.l.b16 %v1530
    %v2243 = vunpack.c.h.b16 %v1530
    %v2244 = vunpack.c.l.b16 %v1531
    %v2245 = vunpack.c.h.b16 %v1531
    %v2246 = vunpack.c.l.b16 %v1532
    %v2247 = vunpack.c.h.b16 %v1532
    %v2248 = vunpack.c.l.b16 %v1533
    %v2249 = vunpack.c.h.b16 %v1533
    %v2250 = vunpack.c.l.b16 %v1534
    %v2251 = vunpack.c.h.b16 %v1534
    %v2252 = vunpack.c.l.b16 %v1535
    %v2253 = vunpack.c.h.b16 %v1535
    %v2254 = vunpack.c.l.b16 %v1536
    %v2255 = vunpack.c.h.b16 %v1536
    %v2256 = vunpack.c.l.b16 %v1537
    %v2257 = vunpack.c.h.b16 %v1537
    %v2258 = vunpack.c.l.b16 %v1538
    %v2259 = vunpack.c.h.b16 %v1538
    %v2260 = vunpack.c.l.b16 %v1539
    %v2261 = vunpack.c.h.b16 %v1539
    %v2262 = vunpack.c.l.b16 %v1540
    %v2263 = vunpack.c.h.b16 %v1540
    %v2264 = vunpack.c.l.b16 %v1541
    %v2265 = vunpack.c.h.b16 %v1541
    %v2266 = vunpack.c.l.b16 %v1542
    %v2267 = vunpack.c.h.b16 %v1542
    %v2268 = vunpack.c.l.b16 %v1543
    %v2269 = vunpack.c.h.b16 %v1543
    %v2270 = vunpack.c.l.b16 %v1544
    %v2271 = vunpack.c.h.b16 %v1544
    %v2272 = vunpack.c.l.b16 %v1545
    %v2273 = vunpack.c.h.b16 %v1545
    %v2274 = vunpack.c.l.b16 %v1546
    %v2275 = vunpack.c.h.b16 %v1546
    %v2276 = vunpack.c.l.b16 %v1547
    %v2277 = vunpack.c.h.b16 %v1547
    %v2278 = vunpack.c.l.b16 %v1548
    %v2279 = vunpack.c.h.b16 %v1548
    %v2280 = vunpack.c.l.b16 %v1549
    %v2281 = vunpack.c.h.b16 %v1549
    %v2282 = vunpack.c.l.b16 %v1550
    %v2283 = vunpack.c.h.b16 %v1550
    %v2284 = vunpack.c.l.b16 %v1551
    %v2285 = vunpack.c.h.b16 %v1551
    %v2286 = vunpack.c.l.b16 %v1552
    %v2287 = vunpack.c.h.b16 %v1552
    %v2288 = vunpack.c.l.b16 %v1553
    %v2289 = vunpack.c.h.b16 %v1553
    %v2290 = vunpack.c.l.b16 %v1554
    %v2291 = vunpack.c.h.b16 %v1554
    %v2292 = vunpack.c.l.b16 %v1555
    %v2293 = vunpack.c.h.b16 %v1555
    %v2294 = vunpack.c.l.b16 %v1556
    %v2295 = vunpack.c.h.b16 %v1556
    %v2296 = vunpack.c.l.b16 %v1557
    %v2297 = vunpack.c.h.b16 %v1557
    %v2298 = vunpack.c.l.b16 %v1558
    %v2299 = vunpack.c.h.b16 %v1558
    %v2300 = vunpack.c.l.b16 %v1559
    %v2301 = vunpack.c.h.b16 %v1559
    %v2302 = vunpack.c.l.b16 %v1560
    %v2303 = vunpack.c.h.b16 %v1560
    %v2304 = vunpack.c.l.b16 %v1561
    %v2305 = vunpack.c.h.b16 %v1561
    %v2306 = vunpack.c.l.b16 %v1562
    %v2307 = vunpack.c.h.b16 %v1562
    %v2308 = vunpack.c.l.b16 %v1563
    %v2309 = vunpack.c.h.b16 %v1563
    %v2310 = vunpack.c.l.b16 %v1564
    %v2311 = vunpack.c.h.b16 %v1564
    %v2312 = vunpack.c.l.b16 %v1565
    %v2313 = vunpack.c.h.b16 %v1565
    %v2314 = vunpack.c.l.b16 %v1566
    %v2315 = vunpack.c.h.b16 %v1566
    %v2316 = vunpack.c.l.b16 %v1567
    %v2317 = vunpack.c.h.b16 %v1567
    %v2318 = vunpack.c.l.b16 %v1568
    %v2319 = vunpack.c.h.b16 %v1568
    %v2320 = vunpack.c.l.b16 %v1569
    %v2321 = vunpack.c.h.b16 %v1569
    %v2322 = vunpack.c.l.b16 %v1570
    %v2323 = vunpack.c.h.b16 %v1570
    %v2324 = vunpack.c.l.b16 %v1571
    %v2325 = vunpack.c.h.b16 %v1571
    %v2326 = vunpack.c.l.b16 %v1572
    %v2327 = vunpack.c.h.b16 %v1572
    %v2328 = vunpack.c.l.b16 %v1573
    %v2329 = vunpack.c.h.b16 %v1573
    %v2330 = vunpack.c.l.b16 %v1574
    %v2331 = vunpack.c.h.b16 %v1574
    %v2332 = vunpack.c.l.b16 %v1575
    %v2333 = vunpack.c.h.b16 %v1575
    %v2334 = vunpack.c.l.b16 %v1576
    %v2335 = vunpack.c.h.b16 %v1576
    %v2336 = vunpack.c.l.b16 %v1577
    %v2337 = vunpack.c.h.b16 %v1577
    %v2338 = vunpack.c.l.b16 %v1578
    %v2339 = vunpack.c.h.b16 %v1578
    %v2340 = vunpack.c.l.b16 %v1579
    %v2341 = vunpack.c.h.b16 %v1579
    %v2342 = vunpack.c.l.b16 %v1580
    %v2343 = vunpack.c.h.b16 %v1580
    %v2344 = vunpack.c.l.b16 %v1581
    %v2345 = vunpack.c.h.b16 %v1581
    %v2346 = vunpack.c.l.b16 %v1582
    %v2347 = vunpack.c.h.b16 %v1582
    %v2348 = vunpack.c.l.b16 %v1583
    %v2349 = vunpack.c.h.b16 %v1583
    %v2350 = vunpack.c.l.b16 %v1584
    %v2351 = vunpack.c.h.b16 %v1584
    %v2352 = vunpack.c.l.b16 %v1585
    %v2353 = vunpack.c.h.b16 %v1585
    %v2354 = vunpack.c.l.b16 %v1586
    %v2355 = vunpack.c.h.b16 %v1586
    %v2356 = vunpack.c.l.b16 %v1587
    %v2357 = vunpack.c.h.b16 %v1587
    %v2358 = vunpack.c.l.b16 %v1588
    %v2359 = vunpack.c.h.b16 %v1588
    %v2360 = vunpack.c.l.b16 %v1589
    %v2361 = vunpack.c.h.b16 %v1589
    %v2362 = vunpack.c.l.b16 %v1590
    %v2363 = vunpack.c.h.b16 %v1590
    %v2364 = vunpack.c.l.b16 %v1591
    %v2365 = vunpack.c.h.b16 %v1591
    %v2366 = vunpack.c.l.b16 %v1592
    %v2367 = vunpack.c.h.b16 %v1592
    %v2368 = vunpack.c.l.b16 %v1593
    %v2369 = vunpack.c.h.b16 %v1593
    %v2370 = vunpack.c.l.b16 %v1594
    %v2371 = vunpack.c.h.b16 %v1594
    %v2372 = vunpack.c.l.b16 %v1595
    %v2373 = vunpack.c.h.b16 %v1595
    %v2374 = vunpack.c.l.b16 %v1596
    %v2375 = vunpack.c.h.b16 %v1596
    %v2376 = vunpack.c.l.b16 %v1597
    %v2377 = vunpack.c.h.b16 %v1597
    %v2378 = vunpack.c.l.b16 %v1598
    %v2379 = vunpack.c.h.b16 %v1598
    %v2380 = vunpack.c.l.b16 %v1599
    %v2381 = vunpack.c.h.b16 %v1599
    %v2382 = vunpack.c.l.b16 %v1600
    %v2383 = vunpack.c.h.b16 %v1600
    %v2384 = vunpack.c.l.b16 %v1601
    %v2385 = vunpack.c.h.b16 %v1601
    %v2386 = vunpack.c.l.b16 %v1602
    %v2387 = vunpack.c.h.b16 %v1602
    %v2388 = vunpack.c.l.b16 %v1603
    %v2389 = vunpack.c.h.b16 %v1603
    %v2390 = vunpack.c.l.b16 %v1604
    %v2391 = vunpack.c.h.b16 %v1604
    %v2392 = vunpack.c.l.b16 %v1605
    %v2393 = vunpack.c.h.b16 %v1605
    %v2394 = vunpack.c.l.b16 %v1606
    %v2395 = vunpack.c.h.b16 %v1606
    %v2396 = vunpack.c.l.b16 %v1607
    %v2397 = vunpack.c.h.b16 %v1607
    %v2398 = vunpack.c.l.b16 %v1608
    %v2399 = vunpack.c.h.b16 %v1608
    %v2400 = vunpack.c.l.b16 %v1609
    %v2401 = vunpack.c.h.b16 %v1609
    %v2402 = vunpack.c.l.b16 %v1610
    %v2403 = vunpack.c.h.b16 %v1610
    %v2404 = vunpack.c.l.b16 %v1611
    %v2405 = vunpack.c.h.b16 %v1611
    %v2406 = vunpack.c.l.b16 %v1612
    %v2407 = vunpack.c.h.b16 %v1612
    %v2408 = vunpack.c.l.b16 %v1613
    %v2409 = vunpack.c.h.b16 %v1613
    %v2410 = vunpack.c.l.b16 %v1614
    %v2411 = vunpack.c.h.b16 %v1614
    %v2412 = vunpack.c.l.b16 %v1615
    %v2413 = vunpack.c.h.b16 %v1615
    %v2414 = vunpack.c.l.b16 %v1616
    %v2415 = vunpack.c.h.b16 %v1616
    %v2416 = vunpack.c.l.b16 %v1617
    %v2417 = vunpack.c.h.b16 %v1617
    %v2418 = vunpack.c.l.b16 %v1618
    %v2419 = vunpack.c.h.b16 %v1618
    %v2420 = vunpack.c.l.b16 %v1619
    %v2421 = vunpack.c.h.b16 %v1619
    %v2422 = vunpack.c.l.b16 %v1620
    %v2423 = vunpack.c.h.b16 %v1620
    %v2424 = vunpack.c.l.b16 %v1621
    %v2425 = vunpack.c.h.b16 %v1621
    %v2426 = vunpack.c.l.b16 %v1622
    %v2427 = vunpack.c.h.b16 %v1622
    %v2428 = vunpack.c.l.b16 %v1623
    %v2429 = vunpack.c.h.b16 %v1623
    %v2430 = vunpack.c.l.b16 %v1624
    %v2431 = vunpack.c.h.b16 %v1624
    %v2432 = vunpack.c.l.b16 %v1625
    %v2433 = vunpack.c.h.b16 %v1625
    %v2434 = vunpack.c.l.b16 %v1626
    %v2435 = vunpack.c.h.b16 %v1626
    %v2436 = vunpack.c.l.b16 %v1627
    %v2437 = vunpack.c.h.b16 %v1627
    %v2438 = vpack.c.b16 %v1934, %v1926
    %v2439 = vpack.c.b16 %v1935, %v1927
    %v2440 = vpack.c.b16 %v1936, %v1928
    %v2441 = vpack.c.b16 %v1937, %v1929
    %v2442 = vpack.c.b16 %v1938, %v1930
    %v2443 = vpack.c.b16 %v1939, %v1931
    %v2444 = vpack.c.b16 %v1940, %v1932
    %v2445 = vpack.c.b16 %v1941, %v1933
    %v2446 = vpack.c.b16 %v1950, %v1942
    %v2447 = vpack.c.b16 %v1951, %v1943
    %v2448 = vpack.c.b16 %v1952, %v1944
    %v2449 = vpack.c.b16 %v1953, %v1945
    %v2450 = vpack.c.b16 %v1954, %v1946
    %v2451 = vpack.c.b16 %v1955, %v1947
    %v2452 = vpack.c.b16 %v1956, %v1948
    %v2453 = vpack.c.b16 %v1957, %v1949
    %v2454 = vpack.c.b16 %v1966, %v1958
    %v2455 = vpack.c.b16 %v1967, %v1959
    %v2456 = vpack.c.b16 %v1968, %v1960
    %v2457 = vpack.c.b16 %v1969, %v1961
    %v2458 = vpack.c.b16 %v1970, %v1962
    %v2459 = vpack.c.b16 %v1971, %v1963
    %v2460 = vpack.c.b16 %v1972, %v1964
    %v2461 = vpack.c.b16 %v1973, %v1965
    %v2462 = vpack.c.b16 %v1982, %v1974
    %v2463 = vpack.c.b16 %v1983, %v1975
    %v2464 = vpack.c.b16 %v1984, %v1976
    %v2465 = vpack.c.b16 %v1985, %v1977
    %v2466 = vpack.c.b16 %v1986, %v1978
    %v2467 = vpack.c.b16 %v1987, %v1979
    %v2468 = vpack.c.b16 %v1988, %v1980
    %v2469 = vpack.c.b16 %v1989, %v1981
    %v2470 = vpack.c.b16 %v1998, %v1990
    %v2471 = vpack.c.b16 %v1999, %v1991
    %v2472 = vpack.c.b16 %v2000, %v1992
    %v2473 = vpack.c.b16 %v2001, %v1993
    %v2474 = vpack.c.b16 %v2002, %v1994
    %v2475 = vpack.c.b16 %v2003, %v1995
    %v2476 = vpack.c.b16 %v2004, %v1996
    %v2477 = vpack.c.b16 %v2005, %v1997
    %v2478 = vpack.c.b16 %v2014, %v2006
    %v2479 = vpack.c.b16 %v2015, %v2007
    %v2480 = vpack.c.b16 %v2016, %v2008
    %v2481 = vpack.c.b16 %v2017, %v2009
    %v2482 = vpack.c.b16 %v2018, %v2010
    %v2483 = vpack.c.b16 %v2019, %v2011
    %v2484 = vpack.c.b16 %v2020, %v2012
    %v2485 = vpack.c.b16 %v2021, %v2013
    %v2486 = vpack.c.b16 %v2030, %v2022
    %v2487 = vpack.c.b16 %v2031, %v2023
    %v2488 = vpack.c.b16 %v2032, %v2024
    %v2489 = vpack.c.b16 %v2033, %v2025
    %v2490 = vpack.c.b16 %v2034, %v2026
    %v2491 = vpack.c.b16 %v2035, %v2027
    %v2492 = vpack.c.b16 %v2036, %v2028
    %v2493 = vpack.c.b16 %v2037, %v2029
    %v2494 = vpack.c.b16 %v2046, %v2038
    %v2495 = vpack.c.b16 %v2047, %v2039
    %v2496 = vpack.c.b16 %v2048, %v2040
    %v2497 = vpack.c.b16 %v2049, %v2041
    %v2498 = vpack.c.b16 %v2050, %v2042
    %v2499 = vpack.c.b16 %v2051, %v2043
    %v2500 = vpack.c.b16 %v2052, %v2044
    %v2501 = vpack.c.b16 %v2053, %v2045
    %v2502 = vpack.c.b16 %v2062, %v2054
    %v2503 = vpack.c.b16 %v2063, %v2055
    %v2504 = vpack.c.b16 %v2064, %v2056
    %v2505 = vpack.c.b16 %v2065, %v2057
    %v2506 = vpack.c.b16 %v2066, %v2058
    %v2507 = vpack.c.b16 %v2067, %v2059
    %v2508 = vpack.c.b16 %v2068, %v2060
    %v2509 = vpack.c.b16 %v2069, %v2061
    %v2510 = vpack.c.b16 %v2078, %v2070
    %v2511 = vpack.c.b16 %v2079, %v2071
    %v2512 = vpack.c.b16 %v2080, %v2072
    %v2513 = vpack.c.b16 %v2081, %v2073
    %v2514 = vpack.c.b16 %v2082, %v2074
    %v2515 = vpack.c.b16 %v2083, %v2075
    %v2516 = vpack.c.b16 %v2084, %v2076
    %v2517 = vpack.c.b16 %v2085, %v2077
    %v2518 = vpack.c.b16 %v2094, %v2086
    %v2519 = vpack.c.b16 %v2095, %v2087
    %v2520 = vpack.c.b16 %v2096, %v2088
    %v2521 = vpack.c.b16 %v2097, %v2089
    %v2522 = vpack.c.b16 %v2098, %v2090
    %v2523 = vpack.c.b16 %v2099, %v2091
    %v2524 = vpack.c.b16 %v2100, %v2092
    %v2525 = vpack.c.b16 %v2101, %v2093
    %v2526 = vpack.c.b16 %v2110, %v2102
    %v2527 = vpack.c.b16 %v2111, %v2103
    %v2528 = vpack.c.b16 %v2112, %v2104
    %v2529 = vpack.c.b16 %v2113, %v2105
    %v2530 = vpack.c.b16 %v2114, %v2106
    %v2531 = vpack.c.b16 %v2115, %v2107
    %v2532 = vpack.c.b16 %v2116, %v2108
    %v2533 = vpack.c.b16 %v2117, %v2109
    %v2534 = vpack.c.b16 %v2126, %v2118
    %v2535 = vpack.c.b16 %v2127, %v2119
    %v2536 = vpack.c.b16 %v2128, %v2120
    %v2537 = vpack.c.b16 %v2129, %v2121
    %v2538 = vpack.c.b16 %v2130, %v2122
    %v2539 = vpack.c.b16 %v2131, %v2123
    %v2540 = vpack.c.b16 %v2132, %v2124
    %v2541 = vpack.c.b16 %v2133, %v2125
    %v2542 = vpack.c.b16 %v2142, %v2134
    %v2543 = vpack.c.b16 %v2143, %v2135
    %v2544 = vpack.c.b16 %v2144, %v2136
    %v2545 = vpack.c.b16 %v2145, %v2137
    %v2546 = vpack.c.b16 %v2146, %v2138
    %v2547 = vpack.c.b16 %v2147, %v2139
    %v2548 = vpack.c.b16 %v2148, %v2140
    %v2549 = vpack.c.b16 %v2149, %v2141
    %v2550 = vpack.c.b16 %v2158, %v2150
    %v2551 = vpack.c.b16 %v2159, %v2151
    %v2552 = vpack.c.b16 %v2160, %v2152
    %v2553 = vpack.c.b16 %v2161, %v2153
    %v2554 = vpack.c.b16 %v2162, %v2154
    %v2555 = vpack.c.b16 %v2163, %v2155
    %v2556 = vpack.c.b16 %v2164, %v2156
    %v2557 = vpack.c.b16 %v2165, %v2157
    %v2558 = vpack.c.b16 %v2174, %v2166
    %v2559 = vpack.c.b16 %v2175, %v2167
    %v2560 = vpack.c.b16 %v2176, %v2168
    %v2561 = vpack.c.b16 %v2177, %v2169
    %v2562 = vpack.c.b16 %v2178, %v2170
    %v2563 = vpack.c.b16 %v2179, %v2171
    %v2564 = vpack.c.b16 %v2180, %v2172
    %v2565 = vpack.c.b16 %v2181, %v2173
    %v2566 = vpack.c.b16 %v2190, %v2182
    %v2567 = vpack.c.b16 %v2191, %v2183
    %v2568 = vpack.c.b16 %v2192, %v2184
    %v2569 = vpack.c.b16 %v2193, %v2185
    %v2570 = vpack.c.b16 %v2194, %v2186
    %v2571 = vpack.c.b16 %v2195, %v2187
    %v2572 = vpack.c.b16 %v2196, %v2188
    %v2573 = vpack.c.b16 %v2197, %v2189
    %v2574 = vpack.c.b16 %v2206, %v2198
    %v2575 = vpack.c.b16 %v2207, %v2199
    %v2576 = vpack.c.b16 %v2208, %v2200
    %v2577 = vpack.c.b16 %v2209, %v2201
    %v2578 = vpack.c.b16 %v2210, %v2202
    %v2579 = vpack.c.b16 %v2211, %v2203
    %v2580 = vpack.c.b16 %v2212, %v2204
    %v2581 = vpack.c.b16 %v2213, %v2205
    %v2582 = vpack.c.b16 %v2222, %v2214
    %v2583 = vpack.c.b16 %v2223, %v2215
    %v2584 = vpack.c.b16 %v2224, %v2216
    %v2585 = vpack.c.b16 %v2225, %v2217
    %v2586 = vpack.c.b16 %v2226, %v2218
    %v2587 = vpack.c.b16 %v2227, %v2219
    %v2588 = vpack.c.b16 %v2228, %v2220
    %v2589 = vpack.c.b16 %v2229, %v2221
    %v2590 = vpack.c.b16 %v2238, %v2230
    %v2591 = vpack.c.b16 %v2239, %v2231
    %v2592 = vpack.c.b16 %v2240, %v2232
    %v2593 = vpack.c.b16 %v2241, %v2233
    %v2594 = vpack.c.b16 %v2242, %v2234
    %v2595 = vpack.c.b16 %v2243, %v2235
    %v2596 = vpack.c.b16 %v2244, %v2236
    %v2597 = vpack.c.b16 %v2245, %v2237
    %v2598 = vpack.c.b16 %v2254, %v2246
    %v2599 = vpack.c.b16 %v2255, %v2247
    %v2600 = vpack.c.b16 %v2256, %v2248
    %v2601 = vpack.c.b16 %v2257, %v2249
    %v2602 = vpack.c.b16 %v2258, %v2250
    %v2603 = vpack.c.b16 %v2259, %v2251
    %v2604 = vpack.c.b16 %v2260, %v2252
    %v2605 = vpack.c.b16 %v2261, %v2253
    %v2606 = vpack.c.b16 %v2270, %v2262
    %v2607 = vpack.c.b16 %v2271, %v2263
    %v2608 = vpack.c.b16 %v2272, %v2264
    %v2609 = vpack.c.b16 %v2273, %v2265
    %v2610 = vpack.c.b16 %v2274, %v2266
    %v2611 = vpack.c.b16 %v2275, %v2267
    %v2612 = vpack.c.b16 %v2276, %v2268
    %v2613 = vpack.c.b16 %v2277, %v2269
    %v2614 = vpack.c.b16 %v2286, %v2278
    %v2615 = vpack.c.b16 %v2287, %v2279
    %v2616 = vpack.c.b16 %v2288, %v2280
    %v2617 = vpack.c.b16 %v2289, %v2281
    %v2618 = vpack.c.b16 %v2290, %v2282
    %v2619 = vpack.c.b16 %v2291, %v2283
    %v2620 = vpack.c.b16 %v2292, %v2284
    %v2621 = vpack.c.b16 %v2293, %v2285
    %v2622 = vpack.c.b16 %v2302, %v2294
    %v2623 = vpack.c.b16 %v2303, %v2295
    %v2624 = vpack.c.b16 %v2304, %v2296
    %v2625 = vpack.c.b16 %v2305, %v2297
    %v2626 = vpack.c.b16 %v2306, %v2298
    %v2627 = vpack.c.b16 %v2307, %v2299
    %v2628 = vpack.c.b16 %v2308, %v2300
    %v2629 = vpack.c.b16 %v2309, %v2301
    %v2630 = vpack.c.b16 %v2318, %v2310
    %v2631 = vpack.c.b16 %v2319, %v2311
    %v2632 = vpack.c.b16 %v2320, %v2312
    %v2633 = vpack.c.b16 %v2321, %v2313
    %v2634 = vpack.c.b16 %v2322, %v2314
    %v2635 = vpack.c.b16 %v2323, %v2315
    %v2636 = vpack.c.b16 %v2324, %v2316
    %v2637 = vpack.c.b16 %v2325, %v2317
    %v2638 = vpack.c.b16 %v2334, %v2326
    %v2639 = vpack.c.b16 %v2335, %v2327
    %v2640 = vpack.c.b16 %v2336, %v2328
    %v2641 = vpack.c.b16 %v2337, %v2329
    %v2642 = vpack.c.b16 %v2338, %v2330
    %v2643 = vpack.c.b16 %v2339, %v2331
    %v2644 = vpack.c.b16 %v2340, %v2332
    %v2645 = vpack.c.b16 %v2341, %v2333
    %v2646 = vpack.c.b16 %v2350, %v2342
    %v2647 = vpack.c.b16 %v2351, %v2343
    %v2648 = vpack.c.b16 %v2352, %v2344
    %v2649 = vpack.c.b16 %v2353, %v2345
    %v2650 = vpack.c.b16 %v2354, %v2346
    %v2651 = vpack.c.b16 %v2355, %v2347
    %v2652 = vpack.c.b16 %v2356, %v2348
    %v2653 = vpack.c.b16 %v2357, %v2349
    %v2654 = vpack.c.b16 %v2366, %v2358
    %v2655 = vpack.c.b16 %v2367, %v2359
    %v2656 = vpack.c.b16 %v2368, %v2360
    %v2657 = vpack.c.b16 %v2369, %v2361
    %v2658 = vpack.c.b16 %v2370, %v2362
    %v2659 = vpack.c.b16 %v2371, %v2363
    %v2660 = vpack.c.b16 %v2372, %v2364
    %v2661 = vpack.c.b16 %v2373, %v2365
    %v2662 = vpack.c.b16 %v2382, %v2374
    %v2663 = vpack.c.b16 %v2383, %v2375
    %v2664 = vpack.c.b16 %v2384, %v2376
    %v2665 = vpack.c.b16 %v2385, %v2377
    %v2666 = vpack.c.b16 %v2386, %v2378
    %v2667 = vpack.c.b16 %v2387, %v2379
    %v2668 = vpack.c.b16 %v2388, %v2380
    %v2669 = vpack.c.b16 %v2389, %v2381
    %v2670 = vpack.c.b16 %v2398, %v2390
    %v2671 = vpack.c.b16 %v2399, %v2391
    %v2672 = vpack.c.b16 %v2400, %v2392
    %v2673 = vpack.c.b16 %v2401, %v2393
    %v2674 = vpack.c.b16 %v2402, %v2394
    %v2675 = vpack.c.b16 %v2403, %v2395
    %v2676 = vpack.c.b16 %v2404, %v2396
    %v2677 = vpack.c.b16 %v2405, %v2397
    %v2678 = vpack.c.b16 %v2414, %v2406
    %v2679 = vpack.c.b16 %v2415, %v2407
    %v2680 = vpack.c.b16 %v2416, %v2408
    %v2681 = vpack.c.b16 %v2417, %v2409
    %v2682 = vpack.c.b16 %v2418, %v2410
    %v2683 = vpack.c.b16 %v2419, %v2411
    %v2684 = vpack.c.b16 %v2420, %v2412
    %v2685 = vpack.c.b16 %v2421, %v2413
    %v2686 = vpack.c.b16 %v2430, %v2422
    %v2687 = vpack.c.b16 %v2431, %v2423
    %v2688 = vpack.c.b16 %v2432, %v2424
    %v2689 = vpack.c.b16 %v2433, %v2425
    %v2690 = vpack.c.b16 %v2434, %v2426
    %v2691 = vpack.c.b16 %v2435, %v2427
    %v2692 = vpack.c.b16 %v2436, %v2428
    %v2693 = vpack.c.b16 %v2437, %v2429
    %2950 = vmatprep.subr.bf16.mxu0 %v2439
    %2951 = vmatpush1.bf16.msra.mxu0 %v2438
    %2952 = vmatprep.subr.bf16.mxu0 %v2447
    %2953 = vmatpush1.bf16.msra.mxu0 %v2446
    %2954 = vmatprep.subr.bf16.mxu0 %v2455
    %2955 = vmatpush1.bf16.msra.mxu0 %v2454
    %2956 = vmatprep.subr.bf16.mxu0 %v2463
    %2957 = vmatpush1.bf16.msra.mxu0 %v2462
    %2958 = vmatprep.subr.bf16.mxu0 %v2471
    %2959 = vmatpush1.bf16.msra.mxu0 %v2470
    %2960 = vmatprep.subr.bf16.mxu0 %v2479
    %2961 = vmatpush1.bf16.msra.mxu0 %v2478
    %2962 = vmatprep.subr.bf16.mxu0 %v2487
    %2963 = vmatpush1.bf16.msra.mxu0 %v2486
    %2964 = vmatprep.subr.bf16.mxu0 %v2495
    %2965 = vmatpush1.bf16.msra.mxu0 %v2494
    %2966 = vmatprep.subr.bf16.mxu0 %v2503
    %2967 = vmatpush1.bf16.msra.mxu0 %v2502
    %2968 = vmatprep.subr.bf16.mxu0 %v2511
    %2969 = vmatpush1.bf16.msra.mxu0 %v2510
    %2970 = vmatprep.subr.bf16.mxu0 %v2519
    %2971 = vmatpush1.bf16.msra.mxu0 %v2518
    %2972 = vmatprep.subr.bf16.mxu0 %v2527
    %2973 = vmatpush1.bf16.msra.mxu0 %v2526
    %2974 = vmatprep.subr.bf16.mxu0 %v2535
    %2975 = vmatpush1.bf16.msra.mxu0 %v2534
    %2976 = vmatprep.subr.bf16.mxu0 %v2543
    %2977 = vmatpush1.bf16.msra.mxu0 %v2542
    %2978 = vmatprep.subr.bf16.mxu0 %v2551
    %2979 = vmatpush1.bf16.msra.mxu0 %v2550
    %2980 = vmatprep.subr.bf16.mxu0 %v2559
    %2981 = vmatpush1.bf16.msra.mxu0 %v2558
    %2982 = vmatprep.mubr.bf16.mxu0 %v1369
    %2983 = vmatmul.mubr.bf16.gmra.mrb[0].mxu0 %v1368
    %v2984 = vpop.f32.mrb[0].mxu0
    %v2985 = vadd.f32 %v1633, %v2984
    %v2986 = vpop.f32.mrb[0].mxu0
    %v2987 = vadd.f32 %v1637, %v2986
    %v2988 = vpop.f32.mrb[0].mxu0
    %v2989 = vpop.f32.mrb[0].mxu0
    %2990 = vdwg.mxu0
    %2991 = vmatprep.subr.bf16.mxu0 %v2567
    %2992 = vmatpush1.bf16.msra.mxu0 %v2566
    %2993 = vmatprep.subr.bf16.mxu0 %v2575
    %2994 = vmatpush1.bf16.msra.mxu0 %v2574
    %2995 = vmatprep.subr.bf16.mxu0 %v2583
    %2996 = vmatpush1.bf16.msra.mxu0 %v2582
    %2997 = vmatprep.subr.bf16.mxu0 %v2591
    %2998 = vmatpush1.bf16.msra.mxu0 %v2590
    %2999 = vmatprep.subr.bf16.mxu0 %v2599
    %3000 = vmatpush1.bf16.msra.mxu0 %v2598
    %3001 = vmatprep.subr.bf16.mxu0 %v2607
    %3002 = vmatpush1.bf16.msra.mxu0 %v2606
    %3003 = vmatprep.subr.bf16.mxu0 %v2615
    %3004 = vmatpush1.bf16.msra.mxu0 %v2614
    %3005 = vmatprep.subr.bf16.mxu0 %v2623
    %3006 = vmatpush1.bf16.msra.mxu0 %v2622
    %3007 = vmatprep.subr.bf16.mxu0 %v2631
    %3008 = vmatpush1.bf16.msra.mxu0 %v2630
    %3009 = vmatprep.subr.bf16.mxu0 %v2639
    %3010 = vmatpush1.bf16.msra.mxu0 %v2638
    %3011 = vmatprep.subr.bf16.mxu0 %v2647
    %3012 = vmatpush1.bf16.msra.mxu0 %v2646
    %3013 = vmatprep.subr.bf16.mxu0 %v2655
    %3014 = vmatpush1.bf16.msra.mxu0 %v2654
    %3015 = vmatprep.subr.bf16.mxu0 %v2663
    %3016 = vmatpush1.bf16.msra.mxu0 %v2662
    %3017 = vmatprep.subr.bf16.mxu0 %v2671
    %3018 = vmatpush1.bf16.msra.mxu0 %v2670
    %3019 = vmatprep.subr.bf16.mxu0 %v2679
    %3020 = vmatpush1.bf16.msra.mxu0 %v2678
    %3021 = vmatprep.subr.bf16.mxu0 %v2687
    %3022 = vmatpush1.bf16.msra.mxu0 %v2686
    %3023 = vmatprep.mubr.bf16.mxu0 %v1371
    %3024 = vmatmul.mubr.bf16.gmra.mrb[0].mxu0 %v1370
    %v3025 = vpop.f32.mrb[0].mxu0
    %v3026 = vadd.f32 %v2985, %v3025
    %v3027 = vpop.f32.mrb[0].mxu0
    %v3028 = vadd.f32 %v2987, %v3027
    %v3029 = vpop.f32.mrb[0].mxu0
    %v3030 = vpop.f32.mrb[0].mxu0
    %3031 = vdwg.mxu0
    %3032 = vmatprep.subr.bf16.mxu0 %v2441
    %3033 = vmatpush1.bf16.msra.mxu0 %v2440
    %3034 = vmatprep.subr.bf16.mxu0 %v2449
    %3035 = vmatpush1.bf16.msra.mxu0 %v2448
    %3036 = vmatprep.subr.bf16.mxu0 %v2457
    %3037 = vmatpush1.bf16.msra.mxu0 %v2456
    %3038 = vmatprep.subr.bf16.mxu0 %v2465
    %3039 = vmatpush1.bf16.msra.mxu0 %v2464
    %3040 = vmatprep.subr.bf16.mxu0 %v2473
    %3041 = vmatpush1.bf16.msra.mxu0 %v2472
    %3042 = vmatprep.subr.bf16.mxu0 %v2481
    %3043 = vmatpush1.bf16.msra.mxu0 %v2480
    %3044 = vmatprep.subr.bf16.mxu0 %v2489
    %3045 = vmatpush1.bf16.msra.mxu0 %v2488
    %3046 = vmatprep.subr.bf16.mxu0 %v2497
    %3047 = vmatpush1.bf16.msra.mxu0 %v2496
    %3048 = vmatprep.subr.bf16.mxu0 %v2505
    %3049 = vmatpush1.bf16.msra.mxu0 %v2504
    %3050 = vmatprep.subr.bf16.mxu0 %v2513
    %3051 = vmatpush1.bf16.msra.mxu0 %v2512
    %3052 = vmatprep.subr.bf16.mxu0 %v2521
    %3053 = vmatpush1.bf16.msra.mxu0 %v2520
    %3054 = vmatprep.subr.bf16.mxu0 %v2529
    %3055 = vmatpush1.bf16.msra.mxu0 %v2528
    %3056 = vmatprep.subr.bf16.mxu0 %v2537
    %3057 = vmatpush1.bf16.msra.mxu0 %v2536
    %3058 = vmatprep.subr.bf16.mxu0 %v2545
    %3059 = vmatpush1.bf16.msra.mxu0 %v2544
    %3060 = vmatprep.subr.bf16.mxu0 %v2553
    %3061 = vmatpush1.bf16.msra.mxu0 %v2552
    %3062 = vmatprep.subr.bf16.mxu0 %v2561
    %3063 = vmatpush1.bf16.msra.mxu0 %v2560
    %3064 = vmatprep.mubr.bf16.mxu0 %v1369
    %3065 = vmatmul.mubr.bf16.gmra.mrb[0].mxu0 %v1368
    %v3066 = vpop.f32.mrb[0].mxu0
    %v3067 = vadd.f32 %v1641, %v3066
    %v3068 = vpop.f32.mrb[0].mxu0
    %v3069 = vadd.f32 %v1645, %v3068
    %v3070 = vpop.f32.mrb[0].mxu0
    %v3071 = vpop.f32.mrb[0].mxu0
    %3072 = vdwg.mxu0
    %3073 = vmatprep.subr.bf16.mxu0 %v2569
    %3074 = vmatpush1.bf16.msra.mxu0 %v2568
    %3075 = vmatprep.subr.bf16.mxu0 %v2577
    %3076 = vmatpush1.bf16.msra.mxu0 %v2576
    %3077 = vmatprep.subr.bf16.mxu0 %v2585
    %3078 = vmatpush1.bf16.msra.mxu0 %v2584
    %3079 = vmatprep.subr.bf16.mxu0 %v2593
    %3080 = vmatpush1.bf16.msra.mxu0 %v2592
    %3081 = vmatprep.subr.bf16.mxu0 %v2601
    %3082 = vmatpush1.bf16.msra.mxu0 %v2600
    %3083 = vmatprep.subr.bf16.mxu0 %v2609
    %3084 = vmatpush1.bf16.msra.mxu0 %v2608
    %3085 = vmatprep.subr.bf16.mxu0 %v2617
    %3086 = vmatpush1.bf16.msra.mxu0 %v2616
    %3087 = vmatprep.subr.bf16.mxu0 %v2625
    %3088 = vmatpush1.bf16.msra.mxu0 %v2624
    %3089 = vmatprep.subr.bf16.mxu0 %v2633
    %3090 = vmatpush1.bf16.msra.mxu0 %v2632
    %3091 = vmatprep.subr.bf16.mxu0 %v2641
    %3092 = vmatpush1.bf16.msra.mxu0 %v2640
    %3093 = vmatprep.subr.bf16.mxu0 %v2649
    %3094 = vmatpush1.bf16.msra.mxu0 %v2648
    %3095 = vmatprep.subr.bf16.mxu0 %v2657
    %3096 = vmatpush1.bf16.msra.mxu0 %v2656
    %3097 = vmatprep.subr.bf16.mxu0 %v2665
    %3098 = vmatpush1.bf16.msra.mxu0 %v2664
    %3099 = vmatprep.subr.bf16.mxu0 %v2673
    %3100 = vmatpush1.bf16.msra.mxu0 %v2672
    %3101 = vmatprep.subr.bf16.mxu0 %v2681
    %3102 = vmatpush1.bf16.msra.mxu0 %v2680
    %3103 = vmatprep.subr.bf16.mxu0 %v2689
    %3104 = vmatpush1.bf16.msra.mxu0 %v2688
    %3105 = vmatprep.mubr.bf16.mxu0 %v1371
    %3106 = vmatmul.mubr.bf16.gmra.mrb[0].mxu0 %v1370
    %v3107 = vpop.f32.mrb[0].mxu0
    %v3108 = vadd.f32 %v3067, %v3107
    %v3109 = vpop.f32.mrb[0].mxu0
    %v3110 = vadd.f32 %v3069, %v3109
    %v3111 = vpop.f32.mrb[0].mxu0
    %v3112 = vpop.f32.mrb[0].mxu0
    %3113 = vdwg.mxu0
    %3114 = vmatprep.subr.bf16.mxu0 %v2443
    %3115 = vmatpush1.bf16.msra.mxu0 %v2442
    %3116 = vmatprep.subr.bf16.mxu0 %v2451
    %3117 = vmatpush1.bf16.msra.mxu0 %v2450
    %3118 = vmatprep.subr.bf16.mxu0 %v2459
    %3119 = vmatpush1.bf16.msra.mxu0 %v2458
    %3120 = vmatprep.subr.bf16.mxu0 %v2467
    %3121 = vmatpush1.bf16.msra.mxu0 %v2466
    %3122 = vmatprep.subr.bf16.mxu0 %v2475
    %3123 = vmatpush1.bf16.msra.mxu0 %v2474
    %3124 = vmatprep.subr.bf16.mxu0 %v2483
    %3125 = vmatpush1.bf16.msra.mxu0 %v2482
    %3126 = vmatprep.subr.bf16.mxu0 %v2491
    %3127 = vmatpush1.bf16.msra.mxu0 %v2490
    %3128 = vmatprep.subr.bf16.mxu0 %v2499
    %3129 = vmatpush1.bf16.msra.mxu0 %v2498
    %3130 = vmatprep.subr.bf16.mxu0 %v2507
    %3131 = vmatpush1.bf16.msra.mxu0 %v2506
    %3132 = vmatprep.subr.bf16.mxu0 %v2515
    %3133 = vmatpush1.bf16.msra.mxu0 %v2514
    %3134 = vmatprep.subr.bf16.mxu0 %v2523
    %3135 = vmatpush1.bf16.msra.mxu0 %v2522
    %3136 = vmatprep.subr.bf16.mxu0 %v2531
    %3137 = vmatpush1.bf16.msra.mxu0 %v2530
    %3138 = vmatprep.subr.bf16.mxu0 %v2539
    %3139 = vmatpush1.bf16.msra.mxu0 %v2538
    %3140 = vmatprep.subr.bf16.mxu0 %v2547
    %3141 = vmatpush1.bf16.msra.mxu0 %v2546
    %3142 = vmatprep.subr.bf16.mxu0 %v2555
    %3143 = vmatpush1.bf16.msra.mxu0 %v2554
    %3144 = vmatprep.subr.bf16.mxu0 %v2563
    %3145 = vmatpush1.bf16.msra.mxu0 %v2562
    %3146 = vmatprep.mubr.bf16.mxu0 %v1369
    %3147 = vmatmul.mubr.bf16.gmra.mrb[0].mxu0 %v1368
    %v3148 = vpop.f32.mrb[0].mxu0
    %v3149 = vadd.f32 %v1649, %v3148
    %v3150 = vpop.f32.mrb[0].mxu0
    %v3151 = vadd.f32 %v1653, %v3150
    %v3152 = vpop.f32.mrb[0].mxu0
    %v3153 = vpop.f32.mrb[0].mxu0
    %3154 = vdwg.mxu0
    %3155 = vmatprep.subr.bf16.mxu0 %v2571
    %3156 = vmatpush1.bf16.msra.mxu0 %v2570
    %3157 = vmatprep.subr.bf16.mxu0 %v2579
    %3158 = vmatpush1.bf16.msra.mxu0 %v2578
    %3159 = vmatprep.subr.bf16.mxu0 %v2587
    %3160 = vmatpush1.bf16.msra.mxu0 %v2586
    %3161 = vmatprep.subr.bf16.mxu0 %v2595
    %3162 = vmatpush1.bf16.msra.mxu0 %v2594
    %3163 = vmatprep.subr.bf16.mxu0 %v2603
    %3164 = vmatpush1.bf16.msra.mxu0 %v2602
    %3165 = vmatprep.subr.bf16.mxu0 %v2611
    %3166 = vmatpush1.bf16.msra.mxu0 %v2610
    %3167 = vmatprep.subr.bf16.mxu0 %v2619
    %3168 = vmatpush1.bf16.msra.mxu0 %v2618
    %3169 = vmatprep.subr.bf16.mxu0 %v2627
    %3170 = vmatpush1.bf16.msra.mxu0 %v2626
    %3171 = vmatprep.subr.bf16.mxu0 %v2635
    %3172 = vmatpush1.bf16.msra.mxu0 %v2634
    %3173 = vmatprep.subr.bf16.mxu0 %v2643
    %3174 = vmatpush1.bf16.msra.mxu0 %v2642
    %3175 = vmatprep.subr.bf16.mxu0 %v2651
    %3176 = vmatpush1.bf16.msra.mxu0 %v2650
    %3177 = vmatprep.subr.bf16.mxu0 %v2659
    %3178 = vmatpush1.bf16.msra.mxu0 %v2658
    %3179 = vmatprep.subr.bf16.mxu0 %v2667
    %3180 = vmatpush1.bf16.msra.mxu0 %v2666
    %3181 = vmatprep.subr.bf16.mxu0 %v2675
    %3182 = vmatpush1.bf16.msra.mxu0 %v2674
    %3183 = vmatprep.subr.bf16.mxu0 %v2683
    %3184 = vmatpush1.bf16.msra.mxu0 %v2682
    %3185 = vmatprep.subr.bf16.mxu0 %v2691
    %3186 = vmatpush1.bf16.msra.mxu0 %v2690
    %3187 = vmatprep.mubr.bf16.mxu0 %v1371
    %3188 = vmatmul.mubr.bf16.gmra.mrb[0].mxu0 %v1370
    %v3189 = vpop.f32.mrb[0].mxu0
    %v3190 = vadd.f32 %v3149, %v3189
    %v3191 = vpop.f32.mrb[0].mxu0
    %v3192 = vadd.f32 %v3151, %v3191
    %v3193 = vpop.f32.mrb[0].mxu0
    %v3194 = vpop.f32.mrb[0].mxu0
    %3195 = vdwg.mxu0
    %3196 = vmatprep.subr.bf16.mxu0 %v2445
    %3197 = vmatpush1.bf16.msra.mxu0 %v2444
    %3198 = vmatprep.subr.bf16.mxu0 %v2453
    %3199 = vmatpush1.bf16.msra.mxu0 %v2452
    %3200 = vmatprep.subr.bf16.mxu0 %v2461
    %3201 = vmatpush1.bf16.msra.mxu0 %v2460
    %3202 = vmatprep.subr.bf16.mxu0 %v2469
    %3203 = vmatpush1.bf16.msra.mxu0 %v2468
    %3204 = vmatprep.subr.bf16.mxu0 %v2477
    %3205 = vmatpush1.bf16.msra.mxu0 %v2476
    %3206 = vmatprep.subr.bf16.mxu0 %v2485
    %3207 = vmatpush1.bf16.msra.mxu0 %v2484
    %3208 = vmatprep.subr.bf16.mxu0 %v2493
    %3209 = vmatpush1.bf16.msra.mxu0 %v2492
    %3210 = vmatprep.subr.bf16.mxu0 %v2501
    %3211 = vmatpush1.bf16.msra.mxu0 %v2500
    %3212 = vmatprep.subr.bf16.mxu0 %v2509
    %3213 = vmatpush1.bf16.msra.mxu0 %v2508
    %3214 = vmatprep.subr.bf16.mxu0 %v2517
    %3215 = vmatpush1.bf16.msra.mxu0 %v2516
    %3216 = vmatprep.subr.bf16.mxu0 %v2525
    %3217 = vmatpush1.bf16.msra.mxu0 %v2524
    %3218 = vmatprep.subr.bf16.mxu0 %v2533
    %3219 = vmatpush1.bf16.msra.mxu0 %v2532
    %3220 = vmatprep.subr.bf16.mxu0 %v2541
    %3221 = vmatpush1.bf16.msra.mxu0 %v2540
    %3222 = vmatprep.subr.bf16.mxu0 %v2549
    %3223 = vmatpush1.bf16.msra.mxu0 %v2548
    %3224 = vmatprep.subr.bf16.mxu0 %v2557
    %3225 = vmatpush1.bf16.msra.mxu0 %v2556
    %3226 = vmatprep.subr.bf16.mxu0 %v2565
    %3227 = vmatpush1.bf16.msra.mxu0 %v2564
    %3228 = vmatprep.mubr.bf16.mxu0 %v1369
    %3229 = vmatmul.mubr.bf16.gmra.mrb[0].mxu0 %v1368
    %v3230 = vpop.f32.mrb[0].mxu0
    %v3231 = vadd.f32 %v1657, %v3230
    %v3232 = vpop.f32.mrb[0].mxu0
    %v3233 = vadd.f32 %v1661, %v3232
    %v3234 = vpop.f32.mrb[0].mxu0
    %v3235 = vpop.f32.mrb[0].mxu0
    %3236 = vdwg.mxu0
    %3237 = vmatprep.subr.bf16.mxu0 %v2573
    %3238 = vmatpush1.bf16.msra.mxu0 %v2572
    %3239 = vmatprep.subr.bf16.mxu0 %v2581
    %3240 = vmatpush1.bf16.msra.mxu0 %v2580
    %3241 = vmatprep.subr.bf16.mxu0 %v2589
    %3242 = vmatpush1.bf16.msra.mxu0 %v2588
    %3243 = vmatprep.subr.bf16.mxu0 %v2597
    %3244 = vmatpush1.bf16.msra.mxu0 %v2596
    %3245 = vmatprep.subr.bf16.mxu0 %v2605
    %3246 = vmatpush1.bf16.msra.mxu0 %v2604
    %3247 = vmatprep.subr.bf16.mxu0 %v2613
    %3248 = vmatpush1.bf16.msra.mxu0 %v2612
    %3249 = vmatprep.subr.bf16.mxu0 %v2621
    %3250 = vmatpush1.bf16.msra.mxu0 %v2620
    %3251 = vmatprep.subr.bf16.mxu0 %v2629
    %3252 = vmatpush1.bf16.msra.mxu0 %v2628
    %3253 = vmatprep.subr.bf16.mxu0 %v2637
    %3254 = vmatpush1.bf16.msra.mxu0 %v2636
    %3255 = vmatprep.subr.bf16.mxu0 %v2645
    %3256 = vmatpush1.bf16.msra.mxu0 %v2644
    %3257 = vmatprep.subr.bf16.mxu0 %v2653
    %3258 = vmatpush1.bf16.msra.mxu0 %v2652
    %3259 = vmatprep.subr.bf16.mxu0 %v2661
    %3260 = vmatpush1.bf16.msra.mxu0 %v2660
    %3261 = vmatprep.subr.bf16.mxu0 %v2669
    %3262 = vmatpush1.bf16.msra.mxu0 %v2668
    %3263 = vmatprep.subr.bf16.mxu0 %v2677
    %3264 = vmatpush1.bf16.msra.mxu0 %v2676
    %3265 = vmatprep.subr.bf16.mxu0 %v2685
    %3266 = vmatpush1.bf16.msra.mxu0 %v2684
    %3267 = vmatprep.subr.bf16.mxu0 %v2693
    %3268 = vmatpush1.bf16.msra.mxu0 %v2692
    %3269 = vmatprep.mubr.bf16.mxu0 %v1371
    %3270 = vmatmul.mubr.bf16.gmra.mrb[0].mxu0 %v1370
    %v3271 = vpop.f32.mrb[0].mxu0
    %v3272 = vadd.f32 %v3231, %v3271
    %v3273 = vpop.f32.mrb[0].mxu0
    %v3274 = vadd.f32 %v3233, %v3273
    %v3275 = vpop.f32.mrb[0].mxu0
    %v3276 = vpop.f32.mrb[0].mxu0
    %3277 = vdwg.mxu0
    %v3278 = vmul.f32 %v3026, %v271
    %v3279 = vmul.f32 %v3028, %v271
    %v3280 = vmul.f32 %v3108, %v271
    %v3281 = vmul.f32 %v3110, %v271
    %v3282 = vmul.f32 %v3190, %v271
    %v3283 = vmul.f32 %v3192, %v271
    %v3284 = vmul.f32 %v3272, %v271
    %v3285 = vmul.f32 %v3274, %v271
    %v3286 = vrot.slane %v3278, 4
    %v3287 = vadd.f32 %v3278, %v3286
    %v3288 = vrot.slane %v3287, 2
    %v3289 = vadd.f32 %v3287, %v3288
    %v3290 = vrot.slane %v3289, 1
    %v3291 = vadd.f32 %v3289, %v3290
    %v3292 = vrot.slane %v3279, 4
    %v3293 = vadd.f32 %v3279, %v3292
    %v3294 = vrot.slane %v3293, 2
    %v3295 = vadd.f32 %v3293, %v3294
    %v3296 = vrot.slane %v3295, 1
    %v3297 = vadd.f32 %v3295, %v3296
    %v3298 = vrot.slane %v3280, 4
    %v3299 = vadd.f32 %v3280, %v3298
    %v3300 = vrot.slane %v3299, 2
    %v3301 = vadd.f32 %v3299, %v3300
    %v3302 = vrot.slane %v3301, 1
    %v3303 = vadd.f32 %v3301, %v3302
    %v3304 = vrot.slane %v3281, 4
    %v3305 = vadd.f32 %v3281, %v3304
    %v3306 = vrot.slane %v3305, 2
    %v3307 = vadd.f32 %v3305, %v3306
    %v3308 = vrot.slane %v3307, 1
    %v3309 = vadd.f32 %v3307, %v3308
    %v3310 = vrot.slane %v3282, 4
    %v3311 = vadd.f32 %v3282, %v3310
    %v3312 = vrot.slane %v3311, 2
    %v3313 = vadd.f32 %v3311, %v3312
    %v3314 = vrot.slane %v3313, 1
    %v3315 = vadd.f32 %v3313, %v3314
    %v3316 = vrot.slane %v3283, 4
    %v3317 = vadd.f32 %v3283, %v3316
    %v3318 = vrot.slane %v3317, 2
    %v3319 = vadd.f32 %v3317, %v3318
    %v3320 = vrot.slane %v3319, 1
    %v3321 = vadd.f32 %v3319, %v3320
    %v3322 = vrot.slane %v3284, 4
    %v3323 = vadd.f32 %v3284, %v3322
    %v3324 = vrot.slane %v3323, 2
    %v3325 = vadd.f32 %v3323, %v3324
    %v3326 = vrot.slane %v3325, 1
    %v3327 = vadd.f32 %v3325, %v3326
    %v3328 = vrot.slane %v3285, 4
    %v3329 = vadd.f32 %v3285, %v3328
    %v3330 = vrot.slane %v3329, 2
    %v3331 = vadd.f32 %v3329, %v3330
    %v3332 = vrot.slane %v3331, 1
    %v3333 = vadd.f32 %v3331, %v3332
    %v3334 = vmul.f32 %v3291, 0.125
    %v3335 = vmul.f32 %v3297, 0.125
    %v3336 = vmul.f32 %v3303, 0.125
    %v3337 = vmul.f32 %v3309, 0.125
    %v3338 = vmul.f32 %v3315, 0.125
    %v3339 = vmul.f32 %v3321, 0.125
    %v3340 = vmul.f32 %v3327, 0.125
    %v3341 = vmul.f32 %v3333, 0.125
    %v3342 = vmul.f32 %v3278, %v3026
    %v3343 = vmul.f32 %v3279, %v3028
    %v3344 = vmul.f32 %v3280, %v3108
    %v3345 = vmul.f32 %v3281, %v3110
    %v3346 = vmul.f32 %v3282, %v3190
    %v3347 = vmul.f32 %v3283, %v3192
    %v3348 = vmul.f32 %v3284, %v3272
    %v3349 = vmul.f32 %v3285, %v3274
    %v3350 = vrot.slane %v3342, 4
    %v3351 = vadd.f32 %v3342, %v3350
    %v3352 = vrot.slane %v3351, 2
    %v3353 = vadd.f32 %v3351, %v3352
    %v3354 = vrot.slane %v3353, 1
    %v3355 = vadd.f32 %v3353, %v3354
    %v3356 = vrot.slane %v3343, 4
    %v3357 = vadd.f32 %v3343, %v3356
    %v3358 = vrot.slane %v3357, 2
    %v3359 = vadd.f32 %v3357, %v3358
    %v3360 = vrot.slane %v3359, 1
    %v3361 = vadd.f32 %v3359, %v3360
    %v3362 = vrot.slane %v3344, 4
    %v3363 = vadd.f32 %v3344, %v3362
    %v3364 = vrot.slane %v3363, 2
    %v3365 = vadd.f32 %v3363, %v3364
    %v3366 = vrot.slane %v3365, 1
    %v3367 = vadd.f32 %v3365, %v3366
    %v3368 = vrot.slane %v3345, 4
    %v3369 = vadd.f32 %v3345, %v3368
    %v3370 = vrot.slane %v3369, 2
    %v3371 = vadd.f32 %v3369, %v3370
    %v3372 = vrot.slane %v3371, 1
    %v3373 = vadd.f32 %v3371, %v3372
    %v3374 = vrot.slane %v3346, 4
    %v3375 = vadd.f32 %v3346, %v3374
    %v3376 = vrot.slane %v3375, 2
    %v3377 = vadd.f32 %v3375, %v3376
    %v3378 = vrot.slane %v3377, 1
    %v3379 = vadd.f32 %v3377, %v3378
    %v3380 = vrot.slane %v3347, 4
    %v3381 = vadd.f32 %v3347, %v3380
    %v3382 = vrot.slane %v3381, 2
    %v3383 = vadd.f32 %v3381, %v3382
    %v3384 = vrot.slane %v3383, 1
    %v3385 = vadd.f32 %v3383, %v3384
    %v3386 = vrot.slane %v3348, 4
    %v3387 = vadd.f32 %v3348, %v3386
    %v3388 = vrot.slane %v3387, 2
    %v3389 = vadd.f32 %v3387, %v3388
    %v3390 = vrot.slane %v3389, 1
    %v3391 = vadd.f32 %v3389, %v3390
    %v3392 = vrot.slane %v3349, 4
    %v3393 = vadd.f32 %v3349, %v3392
    %v3394 = vrot.slane %v3393, 2
    %v3395 = vadd.f32 %v3393, %v3394
    %v3396 = vrot.slane %v3395, 1
    %v3397 = vadd.f32 %v3395, %v3396
    %v3398 = vmul.f32 %v3355, 0.125
    %v3399 = vmul.f32 %v3361, 0.125
    %v3400 = vmul.f32 %v3367, 0.125
    %v3401 = vmul.f32 %v3373, 0.125
    %v3402 = vmul.f32 %v3379, 0.125
    %v3403 = vmul.f32 %v3385, 0.125
    %v3404 = vmul.f32 %v3391, 0.125
    %v3405 = vmul.f32 %v3397, 0.125
    %v3406 = vmul.f32 %v3334, %v3334
    %v3407 = vmul.f32 %v3335, %v3335
    %v3408 = vmul.f32 %v3336, %v3336
    %v3409 = vmul.f32 %v3337, %v3337
    %v3410 = vmul.f32 %v3338, %v3338
    %v3411 = vmul.f32 %v3339, %v3339
    %v3412 = vmul.f32 %v3340, %v3340
    %v3413 = vmul.f32 %v3341, %v3341
    %v3414 = vsub.f32 %v3398, %v3406
    %v3415 = vsub.f32 %v3399, %v3407
    %v3416 = vsub.f32 %v3400, %v3408
    %v3417 = vsub.f32 %v3401, %v3409
    %v3418 = vsub.f32 %v3402, %v3410
    %v3419 = vsub.f32 %v3403, %v3411
    %v3420 = vsub.f32 %v3404, %v3412
    %v3421 = vsub.f32 %v3405, %v3413
    %v3422 = vmax.f32 %v3414, 0.0
    %v3423 = vmax.f32 %v3415, 0.0
    %v3424 = vmax.f32 %v3416, 0.0
    %v3425 = vmax.f32 %v3417, 0.0
    %v3426 = vmax.f32 %v3418, 0.0
    %v3427 = vmax.f32 %v3419, 0.0
    %v3428 = vmax.f32 %v3420, 0.0
    %v3429 = vmax.f32 %v3421, 0.0
    %v3430 = vld [vmem:[#allocation23] sm:$0xff]
    %v3431 = vadd.f32 %v3422, 0.8
    %v3432 = vadd.f32 %v3423, 0.8
    %v3433 = vadd.f32 %v3424, 0.8
    %v3434 = vadd.f32 %v3425, 0.8
    %v3435 = vadd.f32 %v3426, 0.8
    %v3436 = vadd.f32 %v3427, 0.8
    %v3437 = vadd.f32 %v3428, 0.8
    %v3438 = vadd.f32 %v3429, 0.8
    %v3439 = vrsqrt.pop %v3431
    %v3440 = vrsqrt.pop %v3432
    %v3441 = vrsqrt.pop %v3433
    %v3442 = vrsqrt.pop %v3434
    %v3443 = vrsqrt.pop %v3435
    %v3444 = vrsqrt.pop %v3436
    %v3445 = vrsqrt.pop %v3437
    %v3446 = vrsqrt.pop %v3438
    %v3455 = vcombine.low %v3439, %v3440
    %v3456 = vcombine.low %v3441, %v3442
    %v3457 = vcombine.low %v3443, %v3444
    %v3458 = vcombine.low %v3445, %v3446
    %v3460 = vunpack.c.l.s4 1966171168
    %v3461 = vunpack.c.0.s8 %v3460
    %v3462 = vlaneseq
    %v3463 = vshrl.u32 %v3462, 7
    %v3464 = vsub.s32 %v3461, %v3463
    %v3465 = vrot.slane %v3455, %v3464
    %v3467 = vunpack.c.l.s4 1966171168
    %v3468 = vunpack.c.0.s8 %v3467
    %v3469 = vlaneseq
    %v3470 = vshrl.u32 %v3469, 7
    %v3471 = vsub.s32 %v3468, %v3470
    %v3472 = vrot.slane %v3456, %v3471
    %v3474 = vunpack.c.l.s4 1966171168
    %v3475 = vunpack.c.0.s8 %v3474
    %v3476 = vlaneseq
    %v3477 = vshrl.u32 %v3476, 7
    %v3478 = vsub.s32 %v3475, %v3477
    %v3479 = vrot.slane %v3457, %v3478
    %v3481 = vunpack.c.l.s4 1966171168
    %v3482 = vunpack.c.0.s8 %v3481
    %v3483 = vlaneseq
    %v3484 = vshrl.u32 %v3483, 7
    %v3485 = vsub.s32 %v3482, %v3484
    %v3486 = vrot.slane %v3458, %v3485
    %v3487 = vcombine.low %v3465, %v3472
    %v3488 = vcombine.low %v3479, %v3486
    %v3490 = vunpack.c.l.s4 1966171168
    %v3491 = vunpack.c.0.s8 %v3490
    %v3492 = vlaneseq
    %v3493 = vshrl.u32 %v3492, 7
    %v3494 = vsub.s32 %v3491, %v3493
    %v3495 = vrot.slane %v3487, %v3494
    %v3497 = vunpack.c.l.s4 1966171168
    %v3498 = vunpack.c.0.s8 %v3497
    %v3499 = vlaneseq
    %v3500 = vshrl.u32 %v3499, 7
    %v3501 = vsub.s32 %v3498, %v3500
    %v3502 = vrot.slane %v3488, %v3501
    %v3503 = vcombine.low %v3495, %v3502
    %v3505 = vmul.f32 %v3430, %v3503
    %v3506 = vld [vmem:[#allocation25] sm:$0xff]
    %v3508 = vlaneseq
    %v3509 = vshrl.u32 %v3508, 7
    %v3510 = vsub.s32 0, %v3509
    %v3511 = vrot.slane %v3505, %v3510
    %v3512 = vlaneseq
    %v3513 = vshrl.u32 %v3512, 7
    %v3514 = vsub.s32 1, %v3513
    %v3515 = vrot.slane %v3505, %v3514
    %v3516 = vlaneseq
    %v3517 = vshrl.u32 %v3516, 7
    %v3518 = vsub.s32 2, %v3517
    %v3519 = vrot.slane %v3505, %v3518
    %v3520 = vlaneseq
    %v3521 = vshrl.u32 %v3520, 7
    %v3522 = vsub.s32 3, %v3521
    %v3523 = vrot.slane %v3505, %v3522
    %v3524 = vlaneseq
    %v3525 = vshrl.u32 %v3524, 7
    %v3526 = vsub.s32 4, %v3525
    %v3527 = vrot.slane %v3505, %v3526
    %v3528 = vlaneseq
    %v3529 = vshrl.u32 %v3528, 7
    %v3530 = vsub.s32 5, %v3529
    %v3531 = vrot.slane %v3505, %v3530
    %v3532 = vlaneseq
    %v3533 = vshrl.u32 %v3532, 7
    %v3534 = vsub.s32 6, %v3533
    %v3535 = vrot.slane %v3505, %v3534
    %v3536 = vlaneseq
    %v3537 = vshrl.u32 %v3536, 7
    %v3538 = vsub.s32 7, %v3537
    %v3539 = vrot.slane %v3505, %v3538
    %v3548 = vmul.f32 %v3334, %v3511
    %v3549 = vmul.f32 %v3335, %v3515
    %v3550 = vmul.f32 %v3336, %v3519
    %v3551 = vmul.f32 %v3337, %v3523
    %v3552 = vmul.f32 %v3338, %v3527
    %v3553 = vmul.f32 %v3339, %v3531
    %v3554 = vmul.f32 %v3340, %v3535
    %v3555 = vmul.f32 %v3341, %v3539
    %v3564 = vcombine.low %v3548, %v3549
    %v3565 = vcombine.low %v3550, %v3551
    %v3566 = vcombine.low %v3552, %v3553
    %v3567 = vcombine.low %v3554, %v3555
    %v3569 = vunpack.c.l.s4 1966171168
    %v3570 = vunpack.c.0.s8 %v3569
    %v3571 = vlaneseq
    %v3572 = vshrl.u32 %v3571, 7
    %v3573 = vsub.s32 %v3570, %v3572
    %v3574 = vrot.slane %v3564, %v3573
    %v3576 = vunpack.c.l.s4 1966171168
    %v3577 = vunpack.c.0.s8 %v3576
    %v3578 = vlaneseq
    %v3579 = vshrl.u32 %v3578, 7
    %v3580 = vsub.s32 %v3577, %v3579
    %v3581 = vrot.slane %v3565, %v3580
    %v3583 = vunpack.c.l.s4 1966171168
    %v3584 = vunpack.c.0.s8 %v3583
    %v3585 = vlaneseq
    %v3586 = vshrl.u32 %v3585, 7
    %v3587 = vsub.s32 %v3584, %v3586
    %v3588 = vrot.slane %v3566, %v3587
    %v3590 = vunpack.c.l.s4 1966171168
    %v3591 = vunpack.c.0.s8 %v3590
    %v3592 = vlaneseq
    %v3593 = vshrl.u32 %v3592, 7
    %v3594 = vsub.s32 %v3591, %v3593
    %v3595 = vrot.slane %v3567, %v3594
    %v3596 = vcombine.low %v3574, %v3581
    %v3597 = vcombine.low %v3588, %v3595
    %v3599 = vunpack.c.l.s4 1966171168
    %v3600 = vunpack.c.0.s8 %v3599
    %v3601 = vlaneseq
    %v3602 = vshrl.u32 %v3601, 7
    %v3603 = vsub.s32 %v3600, %v3602
    %v3604 = vrot.slane %v3596, %v3603
    %v3606 = vunpack.c.l.s4 1966171168
    %v3607 = vunpack.c.0.s8 %v3606
    %v3608 = vlaneseq
    %v3609 = vshrl.u32 %v3608, 7
    %v3610 = vsub.s32 %v3607, %v3609
    %v3611 = vrot.slane %v3597, %v3610
    %v3612 = vcombine.low %v3604, %v3611
    %v3614 = vsub.f32 %v3506, %v3612
    %v3615 = vpack.c.bf16 %v3026, %v3026
    %v3616 = vpack.c.bf16 %v3028, %v3028
    %v3617 = vpack.c.bf16 %v3108, %v3108
    %v3618 = vpack.c.bf16 %v3110, %v3110
    %v3619 = vpack.c.bf16 %v3190, %v3190
    %v3620 = vpack.c.bf16 %v3192, %v3192
    %v3621 = vpack.c.bf16 %v3272, %v3272
    %v3622 = vpack.c.bf16 %v3274, %v3274
    %v3623 = vunpack.c.l.bf16 %v3615
    %v3624 = vunpack.c.l.bf16 %v3616
    %v3625 = vunpack.c.l.bf16 %v3617
    %v3626 = vunpack.c.l.bf16 %v3618
    %v3627 = vunpack.c.l.bf16 %v3619
    %v3628 = vunpack.c.l.bf16 %v3620
    %v3629 = vunpack.c.l.bf16 %v3621
    %v3630 = vunpack.c.l.bf16 %v3622
    %v3631 = vmul.f32 %v3623, %v3511
    %v3632 = vmul.f32 %v3624, %v3515
    %v3633 = vmul.f32 %v3625, %v3519
    %v3634 = vmul.f32 %v3626, %v3523
    %v3635 = vmul.f32 %v3627, %v3527
    %v3636 = vmul.f32 %v3628, %v3531
    %v3637 = vmul.f32 %v3629, %v3535
    %v3638 = vmul.f32 %v3630, %v3539
    %v3640 = vlaneseq
    %v3641 = vshrl.u32 %v3640, 7
    %v3642 = vsub.s32 0, %v3641
    %v3643 = vrot.slane %v3614, %v3642
    %v3644 = vlaneseq
    %v3645 = vshrl.u32 %v3644, 7
    %v3646 = vsub.s32 1, %v3645
    %v3647 = vrot.slane %v3614, %v3646
    %v3648 = vlaneseq
    %v3649 = vshrl.u32 %v3648, 7
    %v3650 = vsub.s32 2, %v3649
    %v3651 = vrot.slane %v3614, %v3650
    %v3652 = vlaneseq
    %v3653 = vshrl.u32 %v3652, 7
    %v3654 = vsub.s32 3, %v3653
    %v3655 = vrot.slane %v3614, %v3654
    %v3656 = vlaneseq
    %v3657 = vshrl.u32 %v3656, 7
    %v3658 = vsub.s32 4, %v3657
    %v3659 = vrot.slane %v3614, %v3658
    %v3660 = vlaneseq
    %v3661 = vshrl.u32 %v3660, 7
    %v3662 = vsub.s32 5, %v3661
    %v3663 = vrot.slane %v3614, %v3662
    %v3664 = vlaneseq
    %v3665 = vshrl.u32 %v3664, 7
    %v3666 = vsub.s32 6, %v3665
    %v3667 = vrot.slane %v3614, %v3666
    %v3668 = vlaneseq
    %v3669 = vshrl.u32 %v3668, 7
    %v3670 = vsub.s32 7, %v3669
    %v3671 = vrot.slane %v3614, %v3670
    %v3680 = vadd.f32 %v3631, %v3643
    %v3681 = vadd.f32 %v3632, %v3647
    %v3682 = vadd.f32 %v3633, %v3651
    %v3683 = vadd.f32 %v3634, %v3655
    %v3684 = vadd.f32 %v3635, %v3659
    %v3685 = vadd.f32 %v3636, %v3663
    %v3686 = vadd.f32 %v3637, %v3667
    %v3687 = vadd.f32 %v3638, %v3671
    %vm3688 = vcmp.gt.f32.partialorder %v3680, 0.0
    %vm3689 = vcmp.gt.f32.partialorder %v3681, 0.0
    %vm3690 = vcmp.gt.f32.partialorder %v3682, 0.0
    %vm3691 = vcmp.gt.f32.partialorder %v3683, 0.0
    %vm3692 = vcmp.gt.f32.partialorder %v3684, 0.0
    %vm3693 = vcmp.gt.f32.partialorder %v3685, 0.0
    %vm3694 = vcmp.gt.f32.partialorder %v3686, 0.0
    %vm3695 = vcmp.gt.f32.partialorder %v3687, 0.0
    %v3696 = vmul.f32 %v3680, 0.2
    %v3697 = vmul.f32 %v3681, 0.2
    %v3698 = vmul.f32 %v3682, 0.2
    %v3699 = vmul.f32 %v3683, 0.2
    %v3700 = vmul.f32 %v3684, 0.2
    %v3701 = vmul.f32 %v3685, 0.2
    %v3702 = vmul.f32 %v3686, 0.2
    %v3703 = vmul.f32 %v3687, 0.2
    %v3704 = vsel %vm3688, %v3680, %v3696
    %v3705 = vsel %vm3689, %v3681, %v3697
    %v3706 = vsel %vm3690, %v3682, %v3698
    %v3707 = vsel %vm3691, %v3683, %v3699
    %v3708 = vsel %vm3692, %v3684, %v3700
    %v3709 = vsel %vm3693, %v3685, %v3701
    %v3710 = vsel %vm3694, %v3686, %v3702
    %v3711 = vsel %vm3695, %v3687, %v3703
    %v3712 = vpack.c.bf16 %v3704, %v3704
    %v3713 = vpack.c.bf16 %v3705, %v3705
    %v3714 = vpack.c.bf16 %v3706, %v3706
    %v3715 = vpack.c.bf16 %v3707, %v3707
    %v3716 = vpack.c.bf16 %v3708, %v3708
    %v3717 = vpack.c.bf16 %v3709, %v3709
    %v3718 = vpack.c.bf16 %v3710, %v3710
    %v3719 = vpack.c.bf16 %v3711, %v3711
    %v3720 = vld [vmem:[#allocation26] sm:$0xff]
    %v3721 = vld [vmem:[#allocation26 + $0x8] sm:$0xff]
    %v3722 = vld [vmem:[#allocation26 + $0x10] sm:$0xff]
    %v3723 = vld [vmem:[#allocation26 + $0x18] sm:$0xff]
    %v3724 = vld [vmem:[#allocation26 + $0x20] sm:$0xff]
    %v3725 = vld [vmem:[#allocation26 + $0x28] sm:$0xff]
    %v3726 = vld [vmem:[#allocation26 + $0x30] sm:$0xff]
    %v3727 = vld [vmem:[#allocation26 + $0x38] sm:$0xff]
    %v3728 = vld [vmem:[#allocation26 + $0x40] sm:$0xff]
    %v3729 = vld [vmem:[#allocation26 + $0x48] sm:$0xff]
    %v3730 = vld [vmem:[#allocation26 + $0x50] sm:$0xff]
    %v3731 = vld [vmem:[#allocation26 + $0x58] sm:$0xff]
    %v3732 = vld [vmem:[#allocation26 + $0x60] sm:$0xff]
    %v3733 = vld [vmem:[#allocation26 + $0x68] sm:$0xff]
    %v3734 = vld [vmem:[#allocation26 + $0x70] sm:$0xff]
    %v3735 = vld [vmem:[#allocation26 + $0x78] sm:$0xff]
    %v3736 = vld [vmem:[#allocation26 + $0x80] sm:$0xff]
    %v3737 = vld [vmem:[#allocation26 + $0x88] sm:$0xff]
    %v3738 = vld [vmem:[#allocation26 + $0x90] sm:$0xff]
    %v3739 = vld [vmem:[#allocation26 + $0x98] sm:$0xff]
    %v3740 = vld [vmem:[#allocation26 + $0xa0] sm:$0xff]
    %v3741 = vld [vmem:[#allocation26 + $0xa8] sm:$0xff]
    %v3742 = vld [vmem:[#allocation26 + $0xb0] sm:$0xff]
    %v3743 = vld [vmem:[#allocation26 + $0xb8] sm:$0xff]
    %v3744 = vld [vmem:[#allocation26 + $0xc0] sm:$0xff]
    %v3745 = vld [vmem:[#allocation26 + $0xc8] sm:$0xff]
    %v3746 = vld [vmem:[#allocation26 + $0xd0] sm:$0xff]
    %v3747 = vld [vmem:[#allocation26 + $0xd8] sm:$0xff]
    %v3748 = vld [vmem:[#allocation26 + $0xe0] sm:$0xff]
    %v3749 = vld [vmem:[#allocation26 + $0xe8] sm:$0xff]
    %v3750 = vld [vmem:[#allocation26 + $0xf0] sm:$0xff]
    %v3751 = vld [vmem:[#allocation26 + $0xf8] sm:$0xff]
    %v3752 = vld [vmem:[#allocation26 + $0x100] sm:$0xff]
    %v3753 = vld [vmem:[#allocation26 + $0x108] sm:$0xff]
    %v3754 = vld [vmem:[#allocation26 + $0x110] sm:$0xff]
    %v3755 = vld [vmem:[#allocation26 + $0x118] sm:$0xff]
    %v3756 = vld [vmem:[#allocation26 + $0x120] sm:$0xff]
    %v3757 = vld [vmem:[#allocation26 + $0x128] sm:$0xff]
    %v3758 = vld [vmem:[#allocation26 + $0x130] sm:$0xff]
    %v3759 = vld [vmem:[#allocation26 + $0x138] sm:$0xff]
    %v3760 = vld [vmem:[#allocation26 + $0x140] sm:$0xff]
    %v3761 = vld [vmem:[#allocation26 + $0x148] sm:$0xff]
    %v3762 = vld [vmem:[#allocation26 + $0x150] sm:$0xff]
    %v3763 = vld [vmem:[#allocation26 + $0x158] sm:$0xff]
    %v3764 = vld [vmem:[#allocation26 + $0x160] sm:$0xff]
    %v3765 = vld [vmem:[#allocation26 + $0x168] sm:$0xff]
    %v3766 = vld [vmem:[#allocation26 + $0x170] sm:$0xff]
    %v3767 = vld [vmem:[#allocation26 + $0x178] sm:$0xff]
    %v3768 = vld [vmem:[#allocation26 + $0x180] sm:$0xff]
    %v3769 = vld [vmem:[#allocation26 + $0x188] sm:$0xff]
    %v3770 = vld [vmem:[#allocation26 + $0x190] sm:$0xff]
    %v3771 = vld [vmem:[#allocation26 + $0x198] sm:$0xff]
    %v3772 = vld [vmem:[#allocation26 + $0x1a0] sm:$0xff]
    %v3773 = vld [vmem:[#allocation26 + $0x1a8] sm:$0xff]
    %v3774 = vld [vmem:[#allocation26 + $0x1b0] sm:$0xff]
    %v3775 = vld [vmem:[#allocation26 + $0x1b8] sm:$0xff]
    %v3776 = vld [vmem:[#allocation26 + $0x1c0] sm:$0xff]
    %v3777 = vld [vmem:[#allocation26 + $0x1c8] sm:$0xff]
    %v3778 = vld [vmem:[#allocation26 + $0x1d0] sm:$0xff]
    %v3779 = vld [vmem:[#allocation26 + $0x1d8] sm:$0xff]
    %v3780 = vld [vmem:[#allocation26 + $0x1e0] sm:$0xff]
    %v3781 = vld [vmem:[#allocation26 + $0x1e8] sm:$0xff]
    %v3782 = vld [vmem:[#allocation26 + $0x1f0] sm:$0xff]
    %v3783 = vld [vmem:[#allocation26 + $0x1f8] sm:$0xff]
    %v3784 = vld [vmem:[#allocation26 + $0x200] sm:$0xff]
    %v3785 = vld [vmem:[#allocation26 + $0x208] sm:$0xff]
    %v3786 = vld [vmem:[#allocation26 + $0x210] sm:$0xff]
    %v3787 = vld [vmem:[#allocation26 + $0x218] sm:$0xff]
    %v3788 = vld [vmem:[#allocation26 + $0x220] sm:$0xff]
    %v3789 = vld [vmem:[#allocation26 + $0x228] sm:$0xff]
    %v3790 = vld [vmem:[#allocation26 + $0x230] sm:$0xff]
    %v3791 = vld [vmem:[#allocation26 + $0x238] sm:$0xff]
    %v3792 = vld [vmem:[#allocation26 + $0x240] sm:$0xff]
    %v3793 = vld [vmem:[#allocation26 + $0x248] sm:$0xff]
    %v3794 = vld [vmem:[#allocation26 + $0x250] sm:$0xff]
    %v3795 = vld [vmem:[#allocation26 + $0x258] sm:$0xff]
    %v3796 = vld [vmem:[#allocation26 + $0x260] sm:$0xff]
    %v3797 = vld [vmem:[#allocation26 + $0x268] sm:$0xff]
    %v3798 = vld [vmem:[#allocation26 + $0x270] sm:$0xff]
    %v3799 = vld [vmem:[#allocation26 + $0x278] sm:$0xff]
    %v3800 = vld [vmem:[#allocation26 + $0x280] sm:$0xff]
    %v3801 = vld [vmem:[#allocation26 + $0x288] sm:$0xff]
    %v3802 = vld [vmem:[#allocation26 + $0x290] sm:$0xff]
    %v3803 = vld [vmem:[#allocation26 + $0x298] sm:$0xff]
    %v3804 = vld [vmem:[#allocation26 + $0x2a0] sm:$0xff]
    %v3805 = vld [vmem:[#allocation26 + $0x2a8] sm:$0xff]
    %v3806 = vld [vmem:[#allocation26 + $0x2b0] sm:$0xff]
    %v3807 = vld [vmem:[#allocation26 + $0x2b8] sm:$0xff]
    %v3808 = vld [vmem:[#allocation26 + $0x2c0] sm:$0xff]
    %v3809 = vld [vmem:[#allocation26 + $0x2c8] sm:$0xff]
    %v3810 = vld [vmem:[#allocation26 + $0x2d0] sm:$0xff]
    %v3811 = vld [vmem:[#allocation26 + $0x2d8] sm:$0xff]
    %v3812 = vld [vmem:[#allocation26 + $0x2e0] sm:$0xff]
    %v3813 = vld [vmem:[#allocation26 + $0x2e8] sm:$0xff]
    %v3814 = vld [vmem:[#allocation26 + $0x2f0] sm:$0xff]
    %v3815 = vld [vmem:[#allocation26 + $0x2f8] sm:$0xff]
    %v3816 = vld [vmem:[#allocation26 + $0x300] sm:$0xff]
    %v3817 = vld [vmem:[#allocation26 + $0x308] sm:$0xff]
    %v3818 = vld [vmem:[#allocation26 + $0x310] sm:$0xff]
    %v3819 = vld [vmem:[#allocation26 + $0x318] sm:$0xff]
    %v3820 = vld [vmem:[#allocation26 + $0x320] sm:$0xff]
    %v3821 = vld [vmem:[#allocation26 + $0x328] sm:$0xff]
    %v3822 = vld [vmem:[#allocation26 + $0x330] sm:$0xff]
    %v3823 = vld [vmem:[#allocation26 + $0x338] sm:$0xff]
    %v3824 = vld [vmem:[#allocation26 + $0x340] sm:$0xff]
    %v3825 = vld [vmem:[#allocation26 + $0x348] sm:$0xff]
    %v3826 = vld [vmem:[#allocation26 + $0x350] sm:$0xff]
    %v3827 = vld [vmem:[#allocation26 + $0x358] sm:$0xff]
    %v3828 = vld [vmem:[#allocation26 + $0x360] sm:$0xff]
    %v3829 = vld [vmem:[#allocation26 + $0x368] sm:$0xff]
    %v3830 = vld [vmem:[#allocation26 + $0x370] sm:$0xff]
    %v3831 = vld [vmem:[#allocation26 + $0x378] sm:$0xff]
    %v3832 = vld [vmem:[#allocation26 + $0x380] sm:$0xff]
    %v3833 = vld [vmem:[#allocation26 + $0x388] sm:$0xff]
    %v3834 = vld [vmem:[#allocation26 + $0x390] sm:$0xff]
    %v3835 = vld [vmem:[#allocation26 + $0x398] sm:$0xff]
    %v3836 = vld [vmem:[#allocation26 + $0x3a0] sm:$0xff]
    %v3837 = vld [vmem:[#allocation26 + $0x3a8] sm:$0xff]
    %v3838 = vld [vmem:[#allocation26 + $0x3b0] sm:$0xff]
    %v3839 = vld [vmem:[#allocation26 + $0x3b8] sm:$0xff]
    %v3840 = vld [vmem:[#allocation26 + $0x3c0] sm:$0xff]
    %v3841 = vld [vmem:[#allocation26 + $0x3c8] sm:$0xff]
    %v3842 = vld [vmem:[#allocation26 + $0x3d0] sm:$0xff]
    %v3843 = vld [vmem:[#allocation26 + $0x3d8] sm:$0xff]
    %v3844 = vld [vmem:[#allocation26 + $0x3e0] sm:$0xff]
    %v3845 = vld [vmem:[#allocation26 + $0x3e8] sm:$0xff]
    %v3846 = vld [vmem:[#allocation26 + $0x3f0] sm:$0xff]
    %v3847 = vld [vmem:[#allocation26 + $0x3f8] sm:$0xff]
    %v3848 = vld [vmem:[#allocation26 + $0x400] sm:$0xff]
    %v3849 = vld [vmem:[#allocation26 + $0x408] sm:$0xff]
    %v3850 = vld [vmem:[#allocation26 + $0x410] sm:$0xff]
    %v3851 = vld [vmem:[#allocation26 + $0x418] sm:$0xff]
    %v3852 = vld [vmem:[#allocation26 + $0x420] sm:$0xff]
    %v3853 = vld [vmem:[#allocation26 + $0x428] sm:$0xff]
    %v3854 = vld [vmem:[#allocation26 + $0x430] sm:$0xff]
    %v3855 = vld [vmem:[#allocation26 + $0x438] sm:$0xff]
    %v3856 = vld [vmem:[#allocation26 + $0x440] sm:$0xff]
    %v3857 = vld [vmem:[#allocation26 + $0x448] sm:$0xff]
    %v3858 = vld [vmem:[#allocation26 + $0x450] sm:$0xff]
    %v3859 = vld [vmem:[#allocation26 + $0x458] sm:$0xff]
    %v3860 = vld [vmem:[#allocation26 + $0x460] sm:$0xff]
    %v3861 = vld [vmem:[#allocation26 + $0x468] sm:$0xff]
    %v3862 = vld [vmem:[#allocation26 + $0x470] sm:$0xff]
    %v3863 = vld [vmem:[#allocation26 + $0x478] sm:$0xff]
    %v3864 = vld [vmem:[#allocation26 + $0x480] sm:$0xff]
    %v3865 = vld [vmem:[#allocation26 + $0x488] sm:$0xff]
    %v3866 = vld [vmem:[#allocation26 + $0x490] sm:$0xff]
    %v3867 = vld [vmem:[#allocation26 + $0x498] sm:$0xff]
    %v3868 = vld [vmem:[#allocation26 + $0x4a0] sm:$0xff]
    %v3869 = vld [vmem:[#allocation26 + $0x4a8] sm:$0xff]
    %v3870 = vld [vmem:[#allocation26 + $0x4b0] sm:$0xff]
    %v3871 = vld [vmem:[#allocation26 + $0x4b8] sm:$0xff]
    %v3872 = vld [vmem:[#allocation26 + $0x4c0] sm:$0xff]
    %v3873 = vld [vmem:[#allocation26 + $0x4c8] sm:$0xff]
    %v3874 = vld [vmem:[#allocation26 + $0x4d0] sm:$0xff]
    %v3875 = vld [vmem:[#allocation26 + $0x4d8] sm:$0xff]
    %v3876 = vld [vmem:[#allocation26 + $0x4e0] sm:$0xff]
    %v3877 = vld [vmem:[#allocation26 + $0x4e8] sm:$0xff]
    %v3878 = vld [vmem:[#allocation26 + $0x4f0] sm:$0xff]
    %v3879 = vld [vmem:[#allocation26 + $0x4f8] sm:$0xff]
    %v3880 = vld [vmem:[#allocation26 + $0x500] sm:$0xff]
    %v3881 = vld [vmem:[#allocation26 + $0x508] sm:$0xff]
    %v3882 = vld [vmem:[#allocation26 + $0x510] sm:$0xff]
    %v3883 = vld [vmem:[#allocation26 + $0x518] sm:$0xff]
    %v3884 = vld [vmem:[#allocation26 + $0x520] sm:$0xff]
    %v3885 = vld [vmem:[#allocation26 + $0x528] sm:$0xff]
    %v3886 = vld [vmem:[#allocation26 + $0x530] sm:$0xff]
    %v3887 = vld [vmem:[#allocation26 + $0x538] sm:$0xff]
    %v3888 = vld [vmem:[#allocation26 + $0x540] sm:$0xff]
    %v3889 = vld [vmem:[#allocation26 + $0x548] sm:$0xff]
    %v3890 = vld [vmem:[#allocation26 + $0x550] sm:$0xff]
    %v3891 = vld [vmem:[#allocation26 + $0x558] sm:$0xff]
    %v3892 = vld [vmem:[#allocation26 + $0x560] sm:$0xff]
    %v3893 = vld [vmem:[#allocation26 + $0x568] sm:$0xff]
    %v3894 = vld [vmem:[#allocation26 + $0x570] sm:$0xff]
    %v3895 = vld [vmem:[#allocation26 + $0x578] sm:$0xff]
    %v3896 = vld [vmem:[#allocation26 + $0x580] sm:$0xff]
    %v3897 = vld [vmem:[#allocation26 + $0x588] sm:$0xff]
    %v3898 = vld [vmem:[#allocation26 + $0x590] sm:$0xff]
    %v3899 = vld [vmem:[#allocation26 + $0x598] sm:$0xff]
    %v3900 = vld [vmem:[#allocation26 + $0x5a0] sm:$0xff]
    %v3901 = vld [vmem:[#allocation26 + $0x5a8] sm:$0xff]
    %v3902 = vld [vmem:[#allocation26 + $0x5b0] sm:$0xff]
    %v3903 = vld [vmem:[#allocation26 + $0x5b8] sm:$0xff]
    %v3904 = vld [vmem:[#allocation26 + $0x5c0] sm:$0xff]
    %v3905 = vld [vmem:[#allocation26 + $0x5c8] sm:$0xff]
    %v3906 = vld [vmem:[#allocation26 + $0x5d0] sm:$0xff]
    %v3907 = vld [vmem:[#allocation26 + $0x5d8] sm:$0xff]
    %v3908 = vld [vmem:[#allocation26 + $0x5e0] sm:$0xff]
    %v3909 = vld [vmem:[#allocation26 + $0x5e8] sm:$0xff]
    %v3910 = vld [vmem:[#allocation26 + $0x5f0] sm:$0xff]
    %v3911 = vld [vmem:[#allocation26 + $0x5f8] sm:$0xff]
    %v3912 = vld [vmem:[#allocation26 + $0x600] sm:$0xff]
    %v3913 = vld [vmem:[#allocation26 + $0x608] sm:$0xff]
    %v3914 = vld [vmem:[#allocation26 + $0x610] sm:$0xff]
    %v3915 = vld [vmem:[#allocation26 + $0x618] sm:$0xff]
    %v3916 = vld [vmem:[#allocation26 + $0x620] sm:$0xff]
    %v3917 = vld [vmem:[#allocation26 + $0x628] sm:$0xff]
    %v3918 = vld [vmem:[#allocation26 + $0x630] sm:$0xff]
    %v3919 = vld [vmem:[#allocation26 + $0x638] sm:$0xff]
    %v3920 = vld [vmem:[#allocation26 + $0x640] sm:$0xff]
    %v3921 = vld [vmem:[#allocation26 + $0x648] sm:$0xff]
    %v3922 = vld [vmem:[#allocation26 + $0x650] sm:$0xff]
    %v3923 = vld [vmem:[#allocation26 + $0x658] sm:$0xff]
    %v3924 = vld [vmem:[#allocation26 + $0x660] sm:$0xff]
    %v3925 = vld [vmem:[#allocation26 + $0x668] sm:$0xff]
    %v3926 = vld [vmem:[#allocation26 + $0x670] sm:$0xff]
    %v3927 = vld [vmem:[#allocation26 + $0x678] sm:$0xff]
    %v3928 = vld [vmem:[#allocation26 + $0x680] sm:$0xff]
    %v3929 = vld [vmem:[#allocation26 + $0x688] sm:$0xff]
    %v3930 = vld [vmem:[#allocation26 + $0x690] sm:$0xff]
    %v3931 = vld [vmem:[#allocation26 + $0x698] sm:$0xff]
    %v3932 = vld [vmem:[#allocation26 + $0x6a0] sm:$0xff]
    %v3933 = vld [vmem:[#allocation26 + $0x6a8] sm:$0xff]
    %v3934 = vld [vmem:[#allocation26 + $0x6b0] sm:$0xff]
    %v3935 = vld [vmem:[#allocation26 + $0x6b8] sm:$0xff]
    %v3936 = vld [vmem:[#allocation26 + $0x6c0] sm:$0xff]
    %v3937 = vld [vmem:[#allocation26 + $0x6c8] sm:$0xff]
    %v3938 = vld [vmem:[#allocation26 + $0x6d0] sm:$0xff]
    %v3939 = vld [vmem:[#allocation26 + $0x6d8] sm:$0xff]
    %v3940 = vld [vmem:[#allocation26 + $0x6e0] sm:$0xff]
    %v3941 = vld [vmem:[#allocation26 + $0x6e8] sm:$0xff]
    %v3942 = vld [vmem:[#allocation26 + $0x6f0] sm:$0xff]
    %v3943 = vld [vmem:[#allocation26 + $0x6f8] sm:$0xff]
    %v3944 = vld [vmem:[#allocation26 + $0x700] sm:$0xff]
    %v3945 = vld [vmem:[#allocation26 + $0x708] sm:$0xff]
    %v3946 = vld [vmem:[#allocation26 + $0x710] sm:$0xff]
    %v3947 = vld [vmem:[#allocation26 + $0x718] sm:$0xff]
    %v3948 = vld [vmem:[#allocation26 + $0x720] sm:$0xff]
    %v3949 = vld [vmem:[#allocation26 + $0x728] sm:$0xff]
    %v3950 = vld [vmem:[#allocation26 + $0x730] sm:$0xff]
    %v3951 = vld [vmem:[#allocation26 + $0x738] sm:$0xff]
    %v3952 = vld [vmem:[#allocation26 + $0x740] sm:$0xff]
    %v3953 = vld [vmem:[#allocation26 + $0x748] sm:$0xff]
    %v3954 = vld [vmem:[#allocation26 + $0x750] sm:$0xff]
    %v3955 = vld [vmem:[#allocation26 + $0x758] sm:$0xff]
    %v3956 = vld [vmem:[#allocation26 + $0x760] sm:$0xff]
    %v3957 = vld [vmem:[#allocation26 + $0x768] sm:$0xff]
    %v3958 = vld [vmem:[#allocation26 + $0x770] sm:$0xff]
    %v3959 = vld [vmem:[#allocation26 + $0x778] sm:$0xff]
    %v3960 = vld [vmem:[#allocation26 + $0x780] sm:$0xff]
    %v3961 = vld [vmem:[#allocation26 + $0x788] sm:$0xff]
    %v3962 = vld [vmem:[#allocation26 + $0x790] sm:$0xff]
    %v3963 = vld [vmem:[#allocation26 + $0x798] sm:$0xff]
    %v3964 = vld [vmem:[#allocation26 + $0x7a0] sm:$0xff]
    %v3965 = vld [vmem:[#allocation26 + $0x7a8] sm:$0xff]
    %v3966 = vld [vmem:[#allocation26 + $0x7b0] sm:$0xff]
    %v3967 = vld [vmem:[#allocation26 + $0x7b8] sm:$0xff]
    %v3968 = vld [vmem:[#allocation26 + $0x7c0] sm:$0xff]
    %v3969 = vld [vmem:[#allocation26 + $0x7c8] sm:$0xff]
    %v3970 = vld [vmem:[#allocation26 + $0x7d0] sm:$0xff]
    %v3971 = vld [vmem:[#allocation26 + $0x7d8] sm:$0xff]
    %v3972 = vld [vmem:[#allocation26 + $0x7e0] sm:$0xff]
    %v3973 = vld [vmem:[#allocation26 + $0x7e8] sm:$0xff]
    %v3974 = vld [vmem:[#allocation26 + $0x7f0] sm:$0xff]
    %v3975 = vld [vmem:[#allocation26 + $0x7f8] sm:$0xff]
    %v3976 = vld [vmem:[#allocation26 + $0x800] sm:$0xff]
    %v3977 = vld [vmem:[#allocation26 + $0x808] sm:$0xff]
    %v3978 = vld [vmem:[#allocation26 + $0x810] sm:$0xff]
    %v3979 = vld [vmem:[#allocation26 + $0x818] sm:$0xff]
    %v3980 = vld [vmem:[#allocation26 + $0x820] sm:$0xff]
    %v3981 = vld [vmem:[#allocation26 + $0x828] sm:$0xff]
    %v3982 = vld [vmem:[#allocation26 + $0x830] sm:$0xff]
    %v3983 = vld [vmem:[#allocation26 + $0x838] sm:$0xff]
    %v3984 = vld [vmem:[#allocation26 + $0x840] sm:$0xff]
    %v3985 = vld [vmem:[#allocation26 + $0x848] sm:$0xff]
    %v3986 = vld [vmem:[#allocation26 + $0x850] sm:$0xff]
    %v3987 = vld [vmem:[#allocation26 + $0x858] sm:$0xff]
    %v3988 = vld [vmem:[#allocation26 + $0x860] sm:$0xff]
    %v3989 = vld [vmem:[#allocation26 + $0x868] sm:$0xff]
    %v3990 = vld [vmem:[#allocation26 + $0x870] sm:$0xff]
    %v3991 = vld [vmem:[#allocation26 + $0x878] sm:$0xff]
    %v3992 = vld [vmem:[#allocation26 + $0x880] sm:$0xff]
    %v3993 = vld [vmem:[#allocation26 + $0x888] sm:$0xff]
    %v3994 = vld [vmem:[#allocation26 + $0x890] sm:$0xff]
    %v3995 = vld [vmem:[#allocation26 + $0x898] sm:$0xff]
    %v3996 = vld [vmem:[#allocation26 + $0x8a0] sm:$0xff]
    %v3997 = vld [vmem:[#allocation26 + $0x8a8] sm:$0xff]
    %v3998 = vld [vmem:[#allocation26 + $0x8b0] sm:$0xff]
    %v3999 = vld [vmem:[#allocation26 + $0x8b8] sm:$0xff]
    %v4000 = vld [vmem:[#allocation26 + $0x8c0] sm:$0xff]
    %v4001 = vld [vmem:[#allocation26 + $0x8c8] sm:$0xff]
    %v4002 = vld [vmem:[#allocation26 + $0x8d0] sm:$0xff]
    %v4003 = vld [vmem:[#allocation26 + $0x8d8] sm:$0xff]
    %v4004 = vld [vmem:[#allocation26 + $0x8e0] sm:$0xff]
    %v4005 = vld [vmem:[#allocation26 + $0x8e8] sm:$0xff]
    %v4006 = vld [vmem:[#allocation26 + $0x8f0] sm:$0xff]
    %v4007 = vld [vmem:[#allocation26 + $0x8f8] sm:$0xff]
    %v4008 = vld [vmem:[#allocation26 + $0x900] sm:$0xff]
    %v4009 = vld [vmem:[#allocation26 + $0x908] sm:$0xff]
    %v4010 = vld [vmem:[#allocation26 + $0x910] sm:$0xff]
    %v4011 = vld [vmem:[#allocation26 + $0x918] sm:$0xff]
    %v4012 = vld [vmem:[#allocation26 + $0x920] sm:$0xff]
    %v4013 = vld [vmem:[#allocation26 + $0x928] sm:$0xff]
    %v4014 = vld [vmem:[#allocation26 + $0x930] sm:$0xff]
    %v4015 = vld [vmem:[#allocation26 + $0x938] sm:$0xff]
    %v4016 = vld [vmem:[#allocation26 + $0x940] sm:$0xff]
    %v4017 = vld [vmem:[#allocation26 + $0x948] sm:$0xff]
    %v4018 = vld [vmem:[#allocation26 + $0x950] sm:$0xff]
    %v4019 = vld [vmem:[#allocation26 + $0x958] sm:$0xff]
    %v4020 = vld [vmem:[#allocation26 + $0x960] sm:$0xff]
    %v4021 = vld [vmem:[#allocation26 + $0x968] sm:$0xff]
    %v4022 = vld [vmem:[#allocation26 + $0x970] sm:$0xff]
    %v4023 = vld [vmem:[#allocation26 + $0x978] sm:$0xff]
    %v4024 = vld [vmem:[#allocation26 + $0x980] sm:$0xff]
    %v4025 = vld [vmem:[#allocation26 + $0x988] sm:$0xff]
    %v4026 = vld [vmem:[#allocation26 + $0x990] sm:$0xff]
    %v4027 = vld [vmem:[#allocation26 + $0x998] sm:$0xff]
    %v4028 = vld [vmem:[#allocation26 + $0x9a0] sm:$0xff]
    %v4029 = vld [vmem:[#allocation26 + $0x9a8] sm:$0xff]
    %v4030 = vld [vmem:[#allocation26 + $0x9b0] sm:$0xff]
    %v4031 = vld [vmem:[#allocation26 + $0x9b8] sm:$0xff]
    %v4032 = vld [vmem:[#allocation26 + $0x9c0] sm:$0xff]
    %v4033 = vld [vmem:[#allocation26 + $0x9c8] sm:$0xff]
    %v4034 = vld [vmem:[#allocation26 + $0x9d0] sm:$0xff]
    %v4035 = vld [vmem:[#allocation26 + $0x9d8] sm:$0xff]
    %v4036 = vld [vmem:[#allocation26 + $0x9e0] sm:$0xff]
    %v4037 = vld [vmem:[#allocation26 + $0x9e8] sm:$0xff]
    %v4038 = vld [vmem:[#allocation26 + $0x9f0] sm:$0xff]
    %v4039 = vld [vmem:[#allocation26 + $0x9f8] sm:$0xff]
    %v4040 = vld [vmem:[#allocation26 + $0xa00] sm:$0xff]
    %v4041 = vld [vmem:[#allocation26 + $0xa08] sm:$0xff]
    %v4042 = vld [vmem:[#allocation26 + $0xa10] sm:$0xff]
    %v4043 = vld [vmem:[#allocation26 + $0xa18] sm:$0xff]
    %v4044 = vld [vmem:[#allocation26 + $0xa20] sm:$0xff]
    %v4045 = vld [vmem:[#allocation26 + $0xa28] sm:$0xff]
    %v4046 = vld [vmem:[#allocation26 + $0xa30] sm:$0xff]
    %v4047 = vld [vmem:[#allocation26 + $0xa38] sm:$0xff]
    %v4048 = vld [vmem:[#allocation26 + $0xa40] sm:$0xff]
    %v4049 = vld [vmem:[#allocation26 + $0xa48] sm:$0xff]
    %v4050 = vld [vmem:[#allocation26 + $0xa50] sm:$0xff]
    %v4051 = vld [vmem:[#allocation26 + $0xa58] sm:$0xff]
    %v4052 = vld [vmem:[#allocation26 + $0xa60] sm:$0xff]
    %v4053 = vld [vmem:[#allocation26 + $0xa68] sm:$0xff]
    %v4054 = vld [vmem:[#allocation26 + $0xa70] sm:$0xff]
    %v4055 = vld [vmem:[#allocation26 + $0xa78] sm:$0xff]
    %v4056 = vld [vmem:[#allocation26 + $0xa80] sm:$0xff]
    %v4057 = vld [vmem:[#allocation26 + $0xa88] sm:$0xff]
    %v4058 = vld [vmem:[#allocation26 + $0xa90] sm:$0xff]
    %v4059 = vld [vmem:[#allocation26 + $0xa98] sm:$0xff]
    %v4060 = vld [vmem:[#allocation26 + $0xaa0] sm:$0xff]
    %v4061 = vld [vmem:[#allocation26 + $0xaa8] sm:$0xff]
    %v4062 = vld [vmem:[#allocation26 + $0xab0] sm:$0xff]
    %v4063 = vld [vmem:[#allocation26 + $0xab8] sm:$0xff]
    %v4064 = vld [vmem:[#allocation26 + $0xac0] sm:$0xff]
    %v4065 = vld [vmem:[#allocation26 + $0xac8] sm:$0xff]
    %v4066 = vld [vmem:[#allocation26 + $0xad0] sm:$0xff]
    %v4067 = vld [vmem:[#allocation26 + $0xad8] sm:$0xff]
    %v4068 = vld [vmem:[#allocation26 + $0xae0] sm:$0xff]
    %v4069 = vld [vmem:[#allocation26 + $0xae8] sm:$0xff]
    %v4070 = vld [vmem:[#allocation26 + $0xaf0] sm:$0xff]
    %v4071 = vld [vmem:[#allocation26 + $0xaf8] sm:$0xff]
    %v4072 = vld [vmem:[#allocation26 + $0xb00] sm:$0xff]
    %v4073 = vld [vmem:[#allocation26 + $0xb08] sm:$0xff]
    %v4074 = vld [vmem:[#allocation26 + $0xb10] sm:$0xff]
    %v4075 = vld [vmem:[#allocation26 + $0xb18] sm:$0xff]
    %v4076 = vld [vmem:[#allocation26 + $0xb20] sm:$0xff]
    %v4077 = vld [vmem:[#allocation26 + $0xb28] sm:$0xff]
    %v4078 = vld [vmem:[#allocation26 + $0xb30] sm:$0xff]
    %v4079 = vld [vmem:[#allocation26 + $0xb38] sm:$0xff]
    %v4080 = vld [vmem:[#allocation26 + $0xb40] sm:$0xff]
    %v4081 = vld [vmem:[#allocation26 + $0xb48] sm:$0xff]
    %v4082 = vld [vmem:[#allocation26 + $0xb50] sm:$0xff]
    %v4083 = vld [vmem:[#allocation26 + $0xb58] sm:$0xff]
    %v4084 = vld [vmem:[#allocation26 + $0xb60] sm:$0xff]
    %v4085 = vld [vmem:[#allocation26 + $0xb68] sm:$0xff]
    %v4086 = vld [vmem:[#allocation26 + $0xb70] sm:$0xff]
    %v4087 = vld [vmem:[#allocation26 + $0xb78] sm:$0xff]
    %v4088 = vld [vmem:[#allocation26 + $0xb80] sm:$0xff]
    %v4089 = vld [vmem:[#allocation26 + $0xb88] sm:$0xff]
    %v4090 = vld [vmem:[#allocation26 + $0xb90] sm:$0xff]
    %v4091 = vld [vmem:[#allocation26 + $0xb98] sm:$0xff]
    %v4092 = vld [vmem:[#allocation26 + $0xba0] sm:$0xff]
    %v4093 = vld [vmem:[#allocation26 + $0xba8] sm:$0xff]
    %v4094 = vld [vmem:[#allocation26 + $0xbb0] sm:$0xff]
    %v4095 = vld [vmem:[#allocation26 + $0xbb8] sm:$0xff]
    %v4096 = vld [vmem:[#allocation26 + $0xbc0] sm:$0xff]
    %v4097 = vld [vmem:[#allocation26 + $0xbc8] sm:$0xff]
    %v4098 = vld [vmem:[#allocation26 + $0xbd0] sm:$0xff]
    %v4099 = vld [vmem:[#allocation26 + $0xbd8] sm:$0xff]
    %v4100 = vld [vmem:[#allocation26 + $0xbe0] sm:$0xff]
    %v4101 = vld [vmem:[#allocation26 + $0xbe8] sm:$0xff]
    %v4102 = vld [vmem:[#allocation26 + $0xbf0] sm:$0xff]
    %v4103 = vld [vmem:[#allocation26 + $0xbf8] sm:$0xff]
    %v4104 = vld [vmem:[#allocation28] sm:$0x3f]
    %v4106 = vlaneseq
    %v4107 = vshrl.u32 %v4106, 7
    %v4108 = vsub.s32 0, %v4107
    %v4109 = vrot.slane %v4104, %v4108
    %v4110 = vlaneseq
    %v4111 = vshrl.u32 %v4110, 7
    %v4112 = vsub.s32 1, %v4111
    %v4113 = vrot.slane %v4104, %v4112
    %v4114 = vlaneseq
    %v4115 = vshrl.u32 %v4114, 7
    %v4116 = vsub.s32 2, %v4115
    %v4117 = vrot.slane %v4104, %v4116
    %v4118 = vlaneseq
    %v4119 = vshrl.u32 %v4118, 7
    %v4120 = vsub.s32 3, %v4119
    %v4121 = vrot.slane %v4104, %v4120
    %v4122 = vlaneseq
    %v4123 = vshrl.u32 %v4122, 7
    %v4124 = vsub.s32 4, %v4123
    %v4125 = vrot.slane %v4104, %v4124
    %v4126 = vlaneseq
    %v4127 = vshrl.u32 %v4126, 7
    %v4128 = vsub.s32 5, %v4127
    %v4129 = vrot.slane %v4104, %v4128
    %v4520 = vunpack.c.l.b16 %v3720
    %v4521 = vunpack.c.h.b16 %v3720
    %v4522 = vunpack.c.l.b16 %v3721
    %v4523 = vunpack.c.h.b16 %v3721
    %v4524 = vunpack.c.l.b16 %v3722
    %v4525 = vunpack.c.h.b16 %v3722
    %v4526 = vunpack.c.l.b16 %v3723
    %v4527 = vunpack.c.h.b16 %v3723
    %v4528 = vunpack.c.l.b16 %v3724
    %v4529 = vunpack.c.h.b16 %v3724
    %v4530 = vunpack.c.l.b16 %v3725
    %v4531 = vunpack.c.h.b16 %v3725
    %v4532 = vunpack.c.l.b16 %v3726
    %v4533 = vunpack.c.h.b16 %v3726
    %v4534 = vunpack.c.l.b16 %v3727
    %v4535 = vunpack.c.h.b16 %v3727
    %v4536 = vunpack.c.l.b16 %v3728
    %v4537 = vunpack.c.h.b16 %v3728
    %v4538 = vunpack.c.l.b16 %v3729
    %v4539 = vunpack.c.h.b16 %v3729
    %v4540 = vunpack.c.l.b16 %v3730
    %v4541 = vunpack.c.h.b16 %v3730
    %v4542 = vunpack.c.l.b16 %v3731
    %v4543 = vunpack.c.h.b16 %v3731
    %v4544 = vunpack.c.l.b16 %v3732
    %v4545 = vunpack.c.h.b16 %v3732
    %v4546 = vunpack.c.l.b16 %v3733
    %v4547 = vunpack.c.h.b16 %v3733
    %v4548 = vunpack.c.l.b16 %v3734
    %v4549 = vunpack.c.h.b16 %v3734
    %v4550 = vunpack.c.l.b16 %v3735
    %v4551 = vunpack.c.h.b16 %v3735
    %v4552 = vunpack.c.l.b16 %v3736
    %v4553 = vunpack.c.h.b16 %v3736
    %v4554 = vunpack.c.l.b16 %v3737
    %v4555 = vunpack.c.h.b16 %v3737
    %v4556 = vunpack.c.l.b16 %v3738
    %v4557 = vunpack.c.h.b16 %v3738
    %v4558 = vunpack.c.l.b16 %v3739
    %v4559 = vunpack.c.h.b16 %v3739
    %v4560 = vunpack.c.l.b16 %v3740
    %v4561 = vunpack.c.h.b16 %v3740
    %v4562 = vunpack.c.l.b16 %v3741
    %v4563 = vunpack.c.h.b16 %v3741
    %v4564 = vunpack.c.l.b16 %v3742
    %v4565 = vunpack.c.h.b16 %v3742
    %v4566 = vunpack.c.l.b16 %v3743
    %v4567 = vunpack.c.h.b16 %v3743
    %v4568 = vunpack.c.l.b16 %v3744
    %v4569 = vunpack.c.h.b16 %v3744
    %v4570 = vunpack.c.l.b16 %v3745
    %v4571 = vunpack.c.h.b16 %v3745
    %v4572 = vunpack.c.l.b16 %v3746
    %v4573 = vunpack.c.h.b16 %v3746
    %v4574 = vunpack.c.l.b16 %v3747
    %v4575 = vunpack.c.h.b16 %v3747
    %v4576 = vunpack.c.l.b16 %v3748
    %v4577 = vunpack.c.h.b16 %v3748
    %v4578 = vunpack.c.l.b16 %v3749
    %v4579 = vunpack.c.h.b16 %v3749
    %v4580 = vunpack.c.l.b16 %v3750
    %v4581 = vunpack.c.h.b16 %v3750
    %v4582 = vunpack.c.l.b16 %v3751
    %v4583 = vunpack.c.h.b16 %v3751
    %v4584 = vunpack.c.l.b16 %v3752
    %v4585 = vunpack.c.h.b16 %v3752
    %v4586 = vunpack.c.l.b16 %v3753
    %v4587 = vunpack.c.h.b16 %v3753
    %v4588 = vunpack.c.l.b16 %v3754
    %v4589 = vunpack.c.h.b16 %v3754
    %v4590 = vunpack.c.l.b16 %v3755
    %v4591 = vunpack.c.h.b16 %v3755
    %v4592 = vunpack.c.l.b16 %v3756
    %v4593 = vunpack.c.h.b16 %v3756
    %v4594 = vunpack.c.l.b16 %v3757
    %v4595 = vunpack.c.h.b16 %v3757
    %v4596 = vunpack.c.l.b16 %v3758
    %v4597 = vunpack.c.h.b16 %v3758
    %v4598 = vunpack.c.l.b16 %v3759
    %v4599 = vunpack.c.h.b16 %v3759
    %v4600 = vunpack.c.l.b16 %v3760
    %v4601 = vunpack.c.h.b16 %v3760
    %v4602 = vunpack.c.l.b16 %v3761
    %v4603 = vunpack.c.h.b16 %v3761
    %v4604 = vunpack.c.l.b16 %v3762
    %v4605 = vunpack.c.h.b16 %v3762
    %v4606 = vunpack.c.l.b16 %v3763
    %v4607 = vunpack.c.h.b16 %v3763
    %v4608 = vunpack.c.l.b16 %v3764
    %v4609 = vunpack.c.h.b16 %v3764
    %v4610 = vunpack.c.l.b16 %v3765
    %v4611 = vunpack.c.h.b16 %v3765
    %v4612 = vunpack.c.l.b16 %v3766
    %v4613 = vunpack.c.h.b16 %v3766
    %v4614 = vunpack.c.l.b16 %v3767
    %v4615 = vunpack.c.h.b16 %v3767
    %v4616 = vunpack.c.l.b16 %v3768
    %v4617 = vunpack.c.h.b16 %v3768
    %v4618 = vunpack.c.l.b16 %v3769
    %v4619 = vunpack.c.h.b16 %v3769
    %v4620 = vunpack.c.l.b16 %v3770
    %v4621 = vunpack.c.h.b16 %v3770
    %v4622 = vunpack.c.l.b16 %v3771
    %v4623 = vunpack.c.h.b16 %v3771
    %v4624 = vunpack.c.l.b16 %v3772
    %v4625 = vunpack.c.h.b16 %v3772
    %v4626 = vunpack.c.l.b16 %v3773
    %v4627 = vunpack.c.h.b16 %v3773
    %v4628 = vunpack.c.l.b16 %v3774
    %v4629 = vunpack.c.h.b16 %v3774
    %v4630 = vunpack.c.l.b16 %v3775
    %v4631 = vunpack.c.h.b16 %v3775
    %v4632 = vunpack.c.l.b16 %v3776
    %v4633 = vunpack.c.h.b16 %v3776
    %v4634 = vunpack.c.l.b16 %v3777
    %v4635 = vunpack.c.h.b16 %v3777
    %v4636 = vunpack.c.l.b16 %v3778
    %v4637 = vunpack.c.h.b16 %v3778
    %v4638 = vunpack.c.l.b16 %v3779
    %v4639 = vunpack.c.h.b16 %v3779
    %v4640 = vunpack.c.l.b16 %v3780
    %v4641 = vunpack.c.h.b16 %v3780
    %v4642 = vunpack.c.l.b16 %v3781
    %v4643 = vunpack.c.h.b16 %v3781
    %v4644 = vunpack.c.l.b16 %v3782
    %v4645 = vunpack.c.h.b16 %v3782
    %v4646 = vunpack.c.l.b16 %v3783
    %v4647 = vunpack.c.h.b16 %v3783
    %v4648 = vunpack.c.l.b16 %v3784
    %v4649 = vunpack.c.h.b16 %v3784
    %v4650 = vunpack.c.l.b16 %v3785
    %v4651 = vunpack.c.h.b16 %v3785
    %v4652 = vunpack.c.l.b16 %v3786
    %v4653 = vunpack.c.h.b16 %v3786
    %v4654 = vunpack.c.l.b16 %v3787
    %v4655 = vunpack.c.h.b16 %v3787
    %v4656 = vunpack.c.l.b16 %v3788
    %v4657 = vunpack.c.h.b16 %v3788
    %v4658 = vunpack.c.l.b16 %v3789
    %v4659 = vunpack.c.h.b16 %v3789
    %v4660 = vunpack.c.l.b16 %v3790
    %v4661 = vunpack.c.h.b16 %v3790
    %v4662 = vunpack.c.l.b16 %v3791
    %v4663 = vunpack.c.h.b16 %v3791
    %v4664 = vunpack.c.l.b16 %v3792
    %v4665 = vunpack.c.h.b16 %v3792
    %v4666 = vunpack.c.l.b16 %v3793
    %v4667 = vunpack.c.h.b16 %v3793
    %v4668 = vunpack.c.l.b16 %v3794
    %v4669 = vunpack.c.h.b16 %v3794
    %v4670 = vunpack.c.l.b16 %v3795
    %v4671 = vunpack.c.h.b16 %v3795
    %v4672 = vunpack.c.l.b16 %v3796
    %v4673 = vunpack.c.h.b16 %v3796
    %v4674 = vunpack.c.l.b16 %v3797
    %v4675 = vunpack.c.h.b16 %v3797
    %v4676 = vunpack.c.l.b16 %v3798
    %v4677 = vunpack.c.h.b16 %v3798
    %v4678 = vunpack.c.l.b16 %v3799
    %v4679 = vunpack.c.h.b16 %v3799
    %v4680 = vunpack.c.l.b16 %v3800
    %v4681 = vunpack.c.h.b16 %v3800
    %v4682 = vunpack.c.l.b16 %v3801
    %v4683 = vunpack.c.h.b16 %v3801
    %v4684 = vunpack.c.l.b16 %v3802
    %v4685 = vunpack.c.h.b16 %v3802
    %v4686 = vunpack.c.l.b16 %v3803
    %v4687 = vunpack.c.h.b16 %v3803
    %v4688 = vunpack.c.l.b16 %v3804
    %v4689 = vunpack.c.h.b16 %v3804
    %v4690 = vunpack.c.l.b16 %v3805
    %v4691 = vunpack.c.h.b16 %v3805
    %v4692 = vunpack.c.l.b16 %v3806
    %v4693 = vunpack.c.h.b16 %v3806
    %v4694 = vunpack.c.l.b16 %v3807
    %v4695 = vunpack.c.h.b16 %v3807
    %v4696 = vunpack.c.l.b16 %v3808
    %v4697 = vunpack.c.h.b16 %v3808
    %v4698 = vunpack.c.l.b16 %v3809
    %v4699 = vunpack.c.h.b16 %v3809
    %v4700 = vunpack.c.l.b16 %v3810
    %v4701 = vunpack.c.h.b16 %v3810
    %v4702 = vunpack.c.l.b16 %v3811
    %v4703 = vunpack.c.h.b16 %v3811
    %v4704 = vunpack.c.l.b16 %v3812
    %v4705 = vunpack.c.h.b16 %v3812
    %v4706 = vunpack.c.l.b16 %v3813
    %v4707 = vunpack.c.h.b16 %v3813
    %v4708 = vunpack.c.l.b16 %v3814
    %v4709 = vunpack.c.h.b16 %v3814
    %v4710 = vunpack.c.l.b16 %v3815
    %v4711 = vunpack.c.h.b16 %v3815
    %v4712 = vunpack.c.l.b16 %v3816
    %v4713 = vunpack.c.h.b16 %v3816
    %v4714 = vunpack.c.l.b16 %v3817
    %v4715 = vunpack.c.h.b16 %v3817
    %v4716 = vunpack.c.l.b16 %v3818
    %v4717 = vunpack.c.h.b16 %v3818
    %v4718 = vunpack.c.l.b16 %v3819
    %v4719 = vunpack.c.h.b16 %v3819
    %v4720 = vunpack.c.l.b16 %v3820
    %v4721 = vunpack.c.h.b16 %v3820
    %v4722 = vunpack.c.l.b16 %v3821
    %v4723 = vunpack.c.h.b16 %v3821
    %v4724 = vunpack.c.l.b16 %v3822
    %v4725 = vunpack.c.h.b16 %v3822
    %v4726 = vunpack.c.l.b16 %v3823
    %v4727 = vunpack.c.h.b16 %v3823
    %v4728 = vunpack.c.l.b16 %v3824
    %v4729 = vunpack.c.h.b16 %v3824
    %v4730 = vunpack.c.l.b16 %v3825
    %v4731 = vunpack.c.h.b16 %v3825
    %v4732 = vunpack.c.l.b16 %v3826
    %v4733 = vunpack.c.h.b16 %v3826
    %v4734 = vunpack.c.l.b16 %v3827
    %v4735 = vunpack.c.h.b16 %v3827
    %v4736 = vunpack.c.l.b16 %v3828
    %v4737 = vunpack.c.h.b16 %v3828
    %v4738 = vunpack.c.l.b16 %v3829
    %v4739 = vunpack.c.h.b16 %v3829
    %v4740 = vunpack.c.l.b16 %v3830
    %v4741 = vunpack.c.h.b16 %v3830
    %v4742 = vunpack.c.l.b16 %v3831
    %v4743 = vunpack.c.h.b16 %v3831
    %v4744 = vunpack.c.l.b16 %v3832
    %v4745 = vunpack.c.h.b16 %v3832
    %v4746 = vunpack.c.l.b16 %v3833
    %v4747 = vunpack.c.h.b16 %v3833
    %v4748 = vunpack.c.l.b16 %v3834
    %v4749 = vunpack.c.h.b16 %v3834
    %v4750 = vunpack.c.l.b16 %v3835
    %v4751 = vunpack.c.h.b16 %v3835
    %v4752 = vunpack.c.l.b16 %v3836
    %v4753 = vunpack.c.h.b16 %v3836
    %v4754 = vunpack.c.l.b16 %v3837
    %v4755 = vunpack.c.h.b16 %v3837
    %v4756 = vunpack.c.l.b16 %v3838
    %v4757 = vunpack.c.h.b16 %v3838
    %v4758 = vunpack.c.l.b16 %v3839
    %v4759 = vunpack.c.h.b16 %v3839
    %v4760 = vunpack.c.l.b16 %v3840
    %v4761 = vunpack.c.h.b16 %v3840
    %v4762 = vunpack.c.l.b16 %v3841
    %v4763 = vunpack.c.h.b16 %v3841
    %v4764 = vunpack.c.l.b16 %v3842
    %v4765 = vunpack.c.h.b16 %v3842
    %v4766 = vunpack.c.l.b16 %v3843
    %v4767 = vunpack.c.h.b16 %v3843
    %v4768 = vunpack.c.l.b16 %v3844
    %v4769 = vunpack.c.h.b16 %v3844
    %v4770 = vunpack.c.l.b16 %v3845
    %v4771 = vunpack.c.h.b16 %v3845
    %v4772 = vunpack.c.l.b16 %v3846
    %v4773 = vunpack.c.h.b16 %v3846
    %v4774 = vunpack.c.l.b16 %v3847
    %v4775 = vunpack.c.h.b16 %v3847
    %v4776 = vunpack.c.l.b16 %v3848
    %v4777 = vunpack.c.h.b16 %v3848
    %v4778 = vunpack.c.l.b16 %v3849
    %v4779 = vunpack.c.h.b16 %v3849
    %v4780 = vunpack.c.l.b16 %v3850
    %v4781 = vunpack.c.h.b16 %v3850
    %v4782 = vunpack.c.l.b16 %v3851
    %v4783 = vunpack.c.h.b16 %v3851
    %v4784 = vunpack.c.l.b16 %v3852
    %v4785 = vunpack.c.h.b16 %v3852
    %v4786 = vunpack.c.l.b16 %v3853
    %v4787 = vunpack.c.h.b16 %v3853
    %v4788 = vunpack.c.l.b16 %v3854
    %v4789 = vunpack.c.h.b16 %v3854
    %v4790 = vunpack.c.l.b16 %v3855
    %v4791 = vunpack.c.h.b16 %v3855
    %v4792 = vunpack.c.l.b16 %v3856
    %v4793 = vunpack.c.h.b16 %v3856
    %v4794 = vunpack.c.l.b16 %v3857
    %v4795 = vunpack.c.h.b16 %v3857
    %v4796 = vunpack.c.l.b16 %v3858
    %v4797 = vunpack.c.h.b16 %v3858
    %v4798 = vunpack.c.l.b16 %v3859
    %v4799 = vunpack.c.h.b16 %v3859
    %v4800 = vunpack.c.l.b16 %v3860
    %v4801 = vunpack.c.h.b16 %v3860
    %v4802 = vunpack.c.l.b16 %v3861
    %v4803 = vunpack.c.h.b16 %v3861
    %v4804 = vunpack.c.l.b16 %v3862
    %v4805 = vunpack.c.h.b16 %v3862
    %v4806 = vunpack.c.l.b16 %v3863
    %v4807 = vunpack.c.h.b16 %v3863
    %v4808 = vunpack.c.l.b16 %v3864
    %v4809 = vunpack.c.h.b16 %v3864
    %v4810 = vunpack.c.l.b16 %v3865
    %v4811 = vunpack.c.h.b16 %v3865
    %v4812 = vunpack.c.l.b16 %v3866
    %v4813 = vunpack.c.h.b16 %v3866
    %v4814 = vunpack.c.l.b16 %v3867
    %v4815 = vunpack.c.h.b16 %v3867
    %v4816 = vunpack.c.l.b16 %v3868
    %v4817 = vunpack.c.h.b16 %v3868
    %v4818 = vunpack.c.l.b16 %v3869
    %v4819 = vunpack.c.h.b16 %v3869
    %v4820 = vunpack.c.l.b16 %v3870
    %v4821 = vunpack.c.h.b16 %v3870
    %v4822 = vunpack.c.l.b16 %v3871
    %v4823 = vunpack.c.h.b16 %v3871
    %v4824 = vunpack.c.l.b16 %v3872
    %v4825 = vunpack.c.h.b16 %v3872
    %v4826 = vunpack.c.l.b16 %v3873
    %v4827 = vunpack.c.h.b16 %v3873
    %v4828 = vunpack.c.l.b16 %v3874
    %v4829 = vunpack.c.h.b16 %v3874
    %v4830 = vunpack.c.l.b16 %v3875
    %v4831 = vunpack.c.h.b16 %v3875
    %v4832 = vunpack.c.l.b16 %v3876
    %v4833 = vunpack.c.h.b16 %v3876
    %v4834 = vunpack.c.l.b16 %v3877
    %v4835 = vunpack.c.h.b16 %v3877
    %v4836 = vunpack.c.l.b16 %v3878
    %v4837 = vunpack.c.h.b16 %v3878
    %v4838 = vunpack.c.l.b16 %v3879
    %v4839 = vunpack.c.h.b16 %v3879
    %v4840 = vunpack.c.l.b16 %v3880
    %v4841 = vunpack.c.h.b16 %v3880
    %v4842 = vunpack.c.l.b16 %v3881
    %v4843 = vunpack.c.h.b16 %v3881
    %v4844 = vunpack.c.l.b16 %v3882
    %v4845 = vunpack.c.h.b16 %v3882
    %v4846 = vunpack.c.l.b16 %v3883
    %v4847 = vunpack.c.h.b16 %v3883
    %v4848 = vunpack.c.l.b16 %v3884
    %v4849 = vunpack.c.h.b16 %v3884
    %v4850 = vunpack.c.l.b16 %v3885
    %v4851 = vunpack.c.h.b16 %v3885
    %v4852 = vunpack.c.l.b16 %v3886
    %v4853 = vunpack.c.h.b16 %v3886
    %v4854 = vunpack.c.l.b16 %v3887
    %v4855 = vunpack.c.h.b16 %v3887
    %v4856 = vunpack.c.l.b16 %v3888
    %v4857 = vunpack.c.h.b16 %v3888
    %v4858 = vunpack.c.l.b16 %v3889
    %v4859 = vunpack.c.h.b16 %v3889
    %v4860 = vunpack.c.l.b16 %v3890
    %v4861 = vunpack.c.h.b16 %v3890
    %v4862 = vunpack.c.l.b16 %v3891
    %v4863 = vunpack.c.h.b16 %v3891
    %v4864 = vunpack.c.l.b16 %v3892
    %v4865 = vunpack.c.h.b16 %v3892
    %v4866 = vunpack.c.l.b16 %v3893
    %v4867 = vunpack.c.h.b16 %v3893
    %v4868 = vunpack.c.l.b16 %v3894
    %v4869 = vunpack.c.h.b16 %v3894
    %v4870 = vunpack.c.l.b16 %v3895
    %v4871 = vunpack.c.h.b16 %v3895
    %v4872 = vunpack.c.l.b16 %v3896
    %v4873 = vunpack.c.h.b16 %v3896
    %v4874 = vunpack.c.l.b16 %v3897
    %v4875 = vunpack.c.h.b16 %v3897
    %v4876 = vunpack.c.l.b16 %v3898
    %v4877 = vunpack.c.h.b16 %v3898
    %v4878 = vunpack.c.l.b16 %v3899
    %v4879 = vunpack.c.h.b16 %v3899
    %v4880 = vunpack.c.l.b16 %v3900
    %v4881 = vunpack.c.h.b16 %v3900
    %v4882 = vunpack.c.l.b16 %v3901
    %v4883 = vunpack.c.h.b16 %v3901
    %v4884 = vunpack.c.l.b16 %v3902
    %v4885 = vunpack.c.h.b16 %v3902
    %v4886 = vunpack.c.l.b16 %v3903
    %v4887 = vunpack.c.h.b16 %v3903
    %v4888 = vunpack.c.l.b16 %v3904
    %v4889 = vunpack.c.h.b16 %v3904
    %v4890 = vunpack.c.l.b16 %v3905
    %v4891 = vunpack.c.h.b16 %v3905
    %v4892 = vunpack.c.l.b16 %v3906
    %v4893 = vunpack.c.h.b16 %v3906
    %v4894 = vunpack.c.l.b16 %v3907
    %v4895 = vunpack.c.h.b16 %v3907
    %v4896 = vunpack.c.l.b16 %v3908
    %v4897 = vunpack.c.h.b16 %v3908
    %v4898 = vunpack.c.l.b16 %v3909
    %v4899 = vunpack.c.h.b16 %v3909
    %v4900 = vunpack.c.l.b16 %v3910
    %v4901 = vunpack.c.h.b16 %v3910
    %v4902 = vunpack.c.l.b16 %v3911
    %v4903 = vunpack.c.h.b16 %v3911
    %v4904 = vunpack.c.l.b16 %v3912
    %v4905 = vunpack.c.h.b16 %v3912
    %v4906 = vunpack.c.l.b16 %v3913
    %v4907 = vunpack.c.h.b16 %v3913
    %v4908 = vunpack.c.l.b16 %v3914
    %v4909 = vunpack.c.h.b16 %v3914
    %v4910 = vunpack.c.l.b16 %v3915
    %v4911 = vunpack.c.h.b16 %v3915
    %v4912 = vunpack.c.l.b16 %v3916
    %v4913 = vunpack.c.h.b16 %v3916
    %v4914 = vunpack.c.l.b16 %v3917
    %v4915 = vunpack.c.h.b16 %v3917
    %v4916 = vunpack.c.l.b16 %v3918
    %v4917 = vunpack.c.h.b16 %v3918
    %v4918 = vunpack.c.l.b16 %v3919
    %v4919 = vunpack.c.h.b16 %v3919
    %v4920 = vunpack.c.l.b16 %v3920
    %v4921 = vunpack.c.h.b16 %v3920
    %v4922 = vunpack.c.l.b16 %v3921
    %v4923 = vunpack.c.h.b16 %v3921
    %v4924 = vunpack.c.l.b16 %v3922
    %v4925 = vunpack.c.h.b16 %v3922
    %v4926 = vunpack.c.l.b16 %v3923
    %v4927 = vunpack.c.h.b16 %v3923
    %v4928 = vunpack.c.l.b16 %v3924
    %v4929 = vunpack.c.h.b16 %v3924
    %v4930 = vunpack.c.l.b16 %v3925
    %v4931 = vunpack.c.h.b16 %v3925
    %v4932 = vunpack.c.l.b16 %v3926
    %v4933 = vunpack.c.h.b16 %v3926
    %v4934 = vunpack.c.l.b16 %v3927
    %v4935 = vunpack.c.h.b16 %v3927
    %v4936 = vunpack.c.l.b16 %v3928
    %v4937 = vunpack.c.h.b16 %v3928
    %v4938 = vunpack.c.l.b16 %v3929
    %v4939 = vunpack.c.h.b16 %v3929
    %v4940 = vunpack.c.l.b16 %v3930
    %v4941 = vunpack.c.h.b16 %v3930
    %v4942 = vunpack.c.l.b16 %v3931
    %v4943 = vunpack.c.h.b16 %v3931
    %v4944 = vunpack.c.l.b16 %v3932
    %v4945 = vunpack.c.h.b16 %v3932
    %v4946 = vunpack.c.l.b16 %v3933
    %v4947 = vunpack.c.h.b16 %v3933
    %v4948 = vunpack.c.l.b16 %v3934
    %v4949 = vunpack.c.h.b16 %v3934
    %v4950 = vunpack.c.l.b16 %v3935
    %v4951 = vunpack.c.h.b16 %v3935
    %v4952 = vunpack.c.l.b16 %v3936
    %v4953 = vunpack.c.h.b16 %v3936
    %v4954 = vunpack.c.l.b16 %v3937
    %v4955 = vunpack.c.h.b16 %v3937
    %v4956 = vunpack.c.l.b16 %v3938
    %v4957 = vunpack.c.h.b16 %v3938
    %v4958 = vunpack.c.l.b16 %v3939
    %v4959 = vunpack.c.h.b16 %v3939
    %v4960 = vunpack.c.l.b16 %v3940
    %v4961 = vunpack.c.h.b16 %v3940
    %v4962 = vunpack.c.l.b16 %v3941
    %v4963 = vunpack.c.h.b16 %v3941
    %v4964 = vunpack.c.l.b16 %v3942
    %v4965 = vunpack.c.h.b16 %v3942
    %v4966 = vunpack.c.l.b16 %v3943
    %v4967 = vunpack.c.h.b16 %v3943
    %v4968 = vunpack.c.l.b16 %v3944
    %v4969 = vunpack.c.h.b16 %v3944
    %v4970 = vunpack.c.l.b16 %v3945
    %v4971 = vunpack.c.h.b16 %v3945
    %v4972 = vunpack.c.l.b16 %v3946
    %v4973 = vunpack.c.h.b16 %v3946
    %v4974 = vunpack.c.l.b16 %v3947
    %v4975 = vunpack.c.h.b16 %v3947
    %v4976 = vunpack.c.l.b16 %v3948
    %v4977 = vunpack.c.h.b16 %v3948
    %v4978 = vunpack.c.l.b16 %v3949
    %v4979 = vunpack.c.h.b16 %v3949
    %v4980 = vunpack.c.l.b16 %v3950
    %v4981 = vunpack.c.h.b16 %v3950
    %v4982 = vunpack.c.l.b16 %v3951
    %v4983 = vunpack.c.h.b16 %v3951
    %v4984 = vunpack.c.l.b16 %v3952
    %v4985 = vunpack.c.h.b16 %v3952
    %v4986 = vunpack.c.l.b16 %v3953
    %v4987 = vunpack.c.h.b16 %v3953
    %v4988 = vunpack.c.l.b16 %v3954
    %v4989 = vunpack.c.h.b16 %v3954
    %v4990 = vunpack.c.l.b16 %v3955
    %v4991 = vunpack.c.h.b16 %v3955
    %v4992 = vunpack.c.l.b16 %v3956
    %v4993 = vunpack.c.h.b16 %v3956
    %v4994 = vunpack.c.l.b16 %v3957
    %v4995 = vunpack.c.h.b16 %v3957
    %v4996 = vunpack.c.l.b16 %v3958
    %v4997 = vunpack.c.h.b16 %v3958
    %v4998 = vunpack.c.l.b16 %v3959
    %v4999 = vunpack.c.h.b16 %v3959
    %v5000 = vunpack.c.l.b16 %v3960
    %v5001 = vunpack.c.h.b16 %v3960
    %v5002 = vunpack.c.l.b16 %v3961
    %v5003 = vunpack.c.h.b16 %v3961
    %v5004 = vunpack.c.l.b16 %v3962
    %v5005 = vunpack.c.h.b16 %v3962
    %v5006 = vunpack.c.l.b16 %v3963
    %v5007 = vunpack.c.h.b16 %v3963
    %v5008 = vunpack.c.l.b16 %v3964
    %v5009 = vunpack.c.h.b16 %v3964
    %v5010 = vunpack.c.l.b16 %v3965
    %v5011 = vunpack.c.h.b16 %v3965
    %v5012 = vunpack.c.l.b16 %v3966
    %v5013 = vunpack.c.h.b16 %v3966
    %v5014 = vunpack.c.l.b16 %v3967
    %v5015 = vunpack.c.h.b16 %v3967
    %v5016 = vunpack.c.l.b16 %v3968
    %v5017 = vunpack.c.h.b16 %v3968
    %v5018 = vunpack.c.l.b16 %v3969
    %v5019 = vunpack.c.h.b16 %v3969
    %v5020 = vunpack.c.l.b16 %v3970
    %v5021 = vunpack.c.h.b16 %v3970
    %v5022 = vunpack.c.l.b16 %v3971
    %v5023 = vunpack.c.h.b16 %v3971
    %v5024 = vunpack.c.l.b16 %v3972
    %v5025 = vunpack.c.h.b16 %v3972
    %v5026 = vunpack.c.l.b16 %v3973
    %v5027 = vunpack.c.h.b16 %v3973
    %v5028 = vunpack.c.l.b16 %v3974
    %v5029 = vunpack.c.h.b16 %v3974
    %v5030 = vunpack.c.l.b16 %v3975
    %v5031 = vunpack.c.h.b16 %v3975
    %v5032 = vunpack.c.l.b16 %v3976
    %v5033 = vunpack.c.h.b16 %v3976
    %v5034 = vunpack.c.l.b16 %v3977
    %v5035 = vunpack.c.h.b16 %v3977
    %v5036 = vunpack.c.l.b16 %v3978
    %v5037 = vunpack.c.h.b16 %v3978
    %v5038 = vunpack.c.l.b16 %v3979
    %v5039 = vunpack.c.h.b16 %v3979
    %v5040 = vunpack.c.l.b16 %v3980
    %v5041 = vunpack.c.h.b16 %v3980
    %v5042 = vunpack.c.l.b16 %v3981
    %v5043 = vunpack.c.h.b16 %v3981
    %v5044 = vunpack.c.l.b16 %v3982
    %v5045 = vunpack.c.h.b16 %v3982
    %v5046 = vunpack.c.l.b16 %v3983
    %v5047 = vunpack.c.h.b16 %v3983
    %v5048 = vunpack.c.l.b16 %v3984
    %v5049 = vunpack.c.h.b16 %v3984
    %v5050 = vunpack.c.l.b16 %v3985
    %v5051 = vunpack.c.h.b16 %v3985
    %v5052 = vunpack.c.l.b16 %v3986
    %v5053 = vunpack.c.h.b16 %v3986
    %v5054 = vunpack.c.l.b16 %v3987
    %v5055 = vunpack.c.h.b16 %v3987
    %v5056 = vunpack.c.l.b16 %v3988
    %v5057 = vunpack.c.h.b16 %v3988
    %v5058 = vunpack.c.l.b16 %v3989
    %v5059 = vunpack.c.h.b16 %v3989
    %v5060 = vunpack.c.l.b16 %v3990
    %v5061 = vunpack.c.h.b16 %v3990
    %v5062 = vunpack.c.l.b16 %v3991
    %v5063 = vunpack.c.h.b16 %v3991
    %v5064 = vunpack.c.l.b16 %v3992
    %v5065 = vunpack.c.h.b16 %v3992
    %v5066 = vunpack.c.l.b16 %v3993
    %v5067 = vunpack.c.h.b16 %v3993
    %v5068 = vunpack.c.l.b16 %v3994
    %v5069 = vunpack.c.h.b16 %v3994
    %v5070 = vunpack.c.l.b16 %v3995
    %v5071 = vunpack.c.h.b16 %v3995
    %v5072 = vunpack.c.l.b16 %v3996
    %v5073 = vunpack.c.h.b16 %v3996
    %v5074 = vunpack.c.l.b16 %v3997
    %v5075 = vunpack.c.h.b16 %v3997
    %v5076 = vunpack.c.l.b16 %v3998
    %v5077 = vunpack.c.h.b16 %v3998
    %v5078 = vunpack.c.l.b16 %v3999
    %v5079 = vunpack.c.h.b16 %v3999
    %v5080 = vunpack.c.l.b16 %v4000
    %v5081 = vunpack.c.h.b16 %v4000
    %v5082 = vunpack.c.l.b16 %v4001
    %v5083 = vunpack.c.h.b16 %v4001
    %v5084 = vunpack.c.l.b16 %v4002
    %v5085 = vunpack.c.h.b16 %v4002
    %v5086 = vunpack.c.l.b16 %v4003
    %v5087 = vunpack.c.h.b16 %v4003
    %v5088 = vunpack.c.l.b16 %v4004
    %v5089 = vunpack.c.h.b16 %v4004
    %v5090 = vunpack.c.l.b16 %v4005
    %v5091 = vunpack.c.h.b16 %v4005
    %v5092 = vunpack.c.l.b16 %v4006
    %v5093 = vunpack.c.h.b16 %v4006
    %v5094 = vunpack.c.l.b16 %v4007
    %v5095 = vunpack.c.h.b16 %v4007
    %v5096 = vunpack.c.l.b16 %v4008
    %v5097 = vunpack.c.h.b16 %v4008
    %v5098 = vunpack.c.l.b16 %v4009
    %v5099 = vunpack.c.h.b16 %v4009
    %v5100 = vunpack.c.l.b16 %v4010
    %v5101 = vunpack.c.h.b16 %v4010
    %v5102 = vunpack.c.l.b16 %v4011
    %v5103 = vunpack.c.h.b16 %v4011
    %v5104 = vunpack.c.l.b16 %v4012
    %v5105 = vunpack.c.h.b16 %v4012
    %v5106 = vunpack.c.l.b16 %v4013
    %v5107 = vunpack.c.h.b16 %v4013
    %v5108 = vunpack.c.l.b16 %v4014
    %v5109 = vunpack.c.h.b16 %v4014
    %v5110 = vunpack.c.l.b16 %v4015
    %v5111 = vunpack.c.h.b16 %v4015
    %v5112 = vunpack.c.l.b16 %v4016
    %v5113 = vunpack.c.h.b16 %v4016
    %v5114 = vunpack.c.l.b16 %v4017
    %v5115 = vunpack.c.h.b16 %v4017
    %v5116 = vunpack.c.l.b16 %v4018
    %v5117 = vunpack.c.h.b16 %v4018
    %v5118 = vunpack.c.l.b16 %v4019
    %v5119 = vunpack.c.h.b16 %v4019
    %v5120 = vunpack.c.l.b16 %v4020
    %v5121 = vunpack.c.h.b16 %v4020
    %v5122 = vunpack.c.l.b16 %v4021
    %v5123 = vunpack.c.h.b16 %v4021
    %v5124 = vunpack.c.l.b16 %v4022
    %v5125 = vunpack.c.h.b16 %v4022
    %v5126 = vunpack.c.l.b16 %v4023
    %v5127 = vunpack.c.h.b16 %v4023
    %v5128 = vunpack.c.l.b16 %v4024
    %v5129 = vunpack.c.h.b16 %v4024
    %v5130 = vunpack.c.l.b16 %v4025
    %v5131 = vunpack.c.h.b16 %v4025
    %v5132 = vunpack.c.l.b16 %v4026
    %v5133 = vunpack.c.h.b16 %v4026
    %v5134 = vunpack.c.l.b16 %v4027
    %v5135 = vunpack.c.h.b16 %v4027
    %v5136 = vunpack.c.l.b16 %v4028
    %v5137 = vunpack.c.h.b16 %v4028
    %v5138 = vunpack.c.l.b16 %v4029
    %v5139 = vunpack.c.h.b16 %v4029
    %v5140 = vunpack.c.l.b16 %v4030
    %v5141 = vunpack.c.h.b16 %v4030
    %v5142 = vunpack.c.l.b16 %v4031
    %v5143 = vunpack.c.h.b16 %v4031
    %v5144 = vunpack.c.l.b16 %v4032
    %v5145 = vunpack.c.h.b16 %v4032
    %v5146 = vunpack.c.l.b16 %v4033
    %v5147 = vunpack.c.h.b16 %v4033
    %v5148 = vunpack.c.l.b16 %v4034
    %v5149 = vunpack.c.h.b16 %v4034
    %v5150 = vunpack.c.l.b16 %v4035
    %v5151 = vunpack.c.h.b16 %v4035
    %v5152 = vunpack.c.l.b16 %v4036
    %v5153 = vunpack.c.h.b16 %v4036
    %v5154 = vunpack.c.l.b16 %v4037
    %v5155 = vunpack.c.h.b16 %v4037
    %v5156 = vunpack.c.l.b16 %v4038
    %v5157 = vunpack.c.h.b16 %v4038
    %v5158 = vunpack.c.l.b16 %v4039
    %v5159 = vunpack.c.h.b16 %v4039
    %v5160 = vunpack.c.l.b16 %v4040
    %v5161 = vunpack.c.h.b16 %v4040
    %v5162 = vunpack.c.l.b16 %v4041
    %v5163 = vunpack.c.h.b16 %v4041
    %v5164 = vunpack.c.l.b16 %v4042
    %v5165 = vunpack.c.h.b16 %v4042
    %v5166 = vunpack.c.l.b16 %v4043
    %v5167 = vunpack.c.h.b16 %v4043
    %v5168 = vunpack.c.l.b16 %v4044
    %v5169 = vunpack.c.h.b16 %v4044
    %v5170 = vunpack.c.l.b16 %v4045
    %v5171 = vunpack.c.h.b16 %v4045
    %v5172 = vunpack.c.l.b16 %v4046
    %v5173 = vunpack.c.h.b16 %v4046
    %v5174 = vunpack.c.l.b16 %v4047
    %v5175 = vunpack.c.h.b16 %v4047
    %v5176 = vunpack.c.l.b16 %v4048
    %v5177 = vunpack.c.h.b16 %v4048
    %v5178 = vunpack.c.l.b16 %v4049
    %v5179 = vunpack.c.h.b16 %v4049
    %v5180 = vunpack.c.l.b16 %v4050
    %v5181 = vunpack.c.h.b16 %v4050
    %v5182 = vunpack.c.l.b16 %v4051
    %v5183 = vunpack.c.h.b16 %v4051
    %v5184 = vunpack.c.l.b16 %v4052
    %v5185 = vunpack.c.h.b16 %v4052
    %v5186 = vunpack.c.l.b16 %v4053
    %v5187 = vunpack.c.h.b16 %v4053
    %v5188 = vunpack.c.l.b16 %v4054
    %v5189 = vunpack.c.h.b16 %v4054
    %v5190 = vunpack.c.l.b16 %v4055
    %v5191 = vunpack.c.h.b16 %v4055
    %v5192 = vunpack.c.l.b16 %v4056
    %v5193 = vunpack.c.h.b16 %v4056
    %v5194 = vunpack.c.l.b16 %v4057
    %v5195 = vunpack.c.h.b16 %v4057
    %v5196 = vunpack.c.l.b16 %v4058
    %v5197 = vunpack.c.h.b16 %v4058
    %v5198 = vunpack.c.l.b16 %v4059
    %v5199 = vunpack.c.h.b16 %v4059
    %v5200 = vunpack.c.l.b16 %v4060
    %v5201 = vunpack.c.h.b16 %v4060
    %v5202 = vunpack.c.l.b16 %v4061
    %v5203 = vunpack.c.h.b16 %v4061
    %v5204 = vunpack.c.l.b16 %v4062
    %v5205 = vunpack.c.h.b16 %v4062
    %v5206 = vunpack.c.l.b16 %v4063
    %v5207 = vunpack.c.h.b16 %v4063
    %v5208 = vunpack.c.l.b16 %v4064
    %v5209 = vunpack.c.h.b16 %v4064
    %v5210 = vunpack.c.l.b16 %v4065
    %v5211 = vunpack.c.h.b16 %v4065
    %v5212 = vunpack.c.l.b16 %v4066
    %v5213 = vunpack.c.h.b16 %v4066
    %v5214 = vunpack.c.l.b16 %v4067
    %v5215 = vunpack.c.h.b16 %v4067
    %v5216 = vunpack.c.l.b16 %v4068
    %v5217 = vunpack.c.h.b16 %v4068
    %v5218 = vunpack.c.l.b16 %v4069
    %v5219 = vunpack.c.h.b16 %v4069
    %v5220 = vunpack.c.l.b16 %v4070
    %v5221 = vunpack.c.h.b16 %v4070
    %v5222 = vunpack.c.l.b16 %v4071
    %v5223 = vunpack.c.h.b16 %v4071
    %v5224 = vunpack.c.l.b16 %v4072
    %v5225 = vunpack.c.h.b16 %v4072
    %v5226 = vunpack.c.l.b16 %v4073
    %v5227 = vunpack.c.h.b16 %v4073
    %v5228 = vunpack.c.l.b16 %v4074
    %v5229 = vunpack.c.h.b16 %v4074
    %v5230 = vunpack.c.l.b16 %v4075
    %v5231 = vunpack.c.h.b16 %v4075
    %v5232 = vunpack.c.l.b16 %v4076
    %v5233 = vunpack.c.h.b16 %v4076
    %v5234 = vunpack.c.l.b16 %v4077
    %v5235 = vunpack.c.h.b16 %v4077
    %v5236 = vunpack.c.l.b16 %v4078
    %v5237 = vunpack.c.h.b16 %v4078
    %v5238 = vunpack.c.l.b16 %v4079
    %v5239 = vunpack.c.h.b16 %v4079
    %v5240 = vunpack.c.l.b16 %v4080
    %v5241 = vunpack.c.h.b16 %v4080
    %v5242 = vunpack.c.l.b16 %v4081
    %v5243 = vunpack.c.h.b16 %v4081
    %v5244 = vunpack.c.l.b16 %v4082
    %v5245 = vunpack.c.h.b16 %v4082
    %v5246 = vunpack.c.l.b16 %v4083
    %v5247 = vunpack.c.h.b16 %v4083
    %v5248 = vunpack.c.l.b16 %v4084
    %v5249 = vunpack.c.h.b16 %v4084
    %v5250 = vunpack.c.l.b16 %v4085
    %v5251 = vunpack.c.h.b16 %v4085
    %v5252 = vunpack.c.l.b16 %v4086
    %v5253 = vunpack.c.h.b16 %v4086
    %v5254 = vunpack.c.l.b16 %v4087
    %v5255 = vunpack.c.h.b16 %v4087
    %v5256 = vunpack.c.l.b16 %v4088
    %v5257 = vunpack.c.h.b16 %v4088
    %v5258 = vunpack.c.l.b16 %v4089
    %v5259 = vunpack.c.h.b16 %v4089
    %v5260 = vunpack.c.l.b16 %v4090
    %v5261 = vunpack.c.h.b16 %v4090
    %v5262 = vunpack.c.l.b16 %v4091
    %v5263 = vunpack.c.h.b16 %v4091
    %v5264 = vunpack.c.l.b16 %v4092
    %v5265 = vunpack.c.h.b16 %v4092
    %v5266 = vunpack.c.l.b16 %v4093
    %v5267 = vunpack.c.h.b16 %v4093
    %v5268 = vunpack.c.l.b16 %v4094
    %v5269 = vunpack.c.h.b16 %v4094
    %v5270 = vunpack.c.l.b16 %v4095
    %v5271 = vunpack.c.h.b16 %v4095
    %v5272 = vunpack.c.l.b16 %v4096
    %v5273 = vunpack.c.h.b16 %v4096
    %v5274 = vunpack.c.l.b16 %v4097
    %v5275 = vunpack.c.h.b16 %v4097
    %v5276 = vunpack.c.l.b16 %v4098
    %v5277 = vunpack.c.h.b16 %v4098
    %v5278 = vunpack.c.l.b16 %v4099
    %v5279 = vunpack.c.h.b16 %v4099
    %v5280 = vunpack.c.l.b16 %v4100
    %v5281 = vunpack.c.h.b16 %v4100
    %v5282 = vunpack.c.l.b16 %v4101
    %v5283 = vunpack.c.h.b16 %v4101
    %v5284 = vunpack.c.l.b16 %v4102
    %v5285 = vunpack.c.h.b16 %v4102
    %v5286 = vunpack.c.l.b16 %v4103
    %v5287 = vunpack.c.h.b16 %v4103
    %v5288 = vpack.c.b16 %v4526, %v4520
    %v5289 = vpack.c.b16 %v4527, %v4521
    %v5290 = vpack.c.b16 %v4528, %v4522
    %v5291 = vpack.c.b16 %v4529, %v4523
    %v5292 = vpack.c.b16 %v4530, %v4524
    %v5293 = vpack.c.b16 %v4531, %v4525
    %v5294 = vpack.c.b16 %v4538, %v4532
    %v5295 = vpack.c.b16 %v4539, %v4533
    %v5296 = vpack.c.b16 %v4540, %v4534
    %v5297 = vpack.c.b16 %v4541, %v4535
    %v5298 = vpack.c.b16 %v4542, %v4536
    %v5299 = vpack.c.b16 %v4543, %v4537
    %v5300 = vpack.c.b16 %v4550, %v4544
    %v5301 = vpack.c.b16 %v4551, %v4545
    %v5302 = vpack.c.b16 %v4552, %v4546
    %v5303 = vpack.c.b16 %v4553, %v4547
    %v5304 = vpack.c.b16 %v4554, %v4548
    %v5305 = vpack.c.b16 %v4555, %v4549
    %v5306 = vpack.c.b16 %v4562, %v4556
    %v5307 = vpack.c.b16 %v4563, %v4557
    %v5308 = vpack.c.b16 %v4564, %v4558
    %v5309 = vpack.c.b16 %v4565, %v4559
    %v5310 = vpack.c.b16 %v4566, %v4560
    %v5311 = vpack.c.b16 %v4567, %v4561
    %v5312 = vpack.c.b16 %v4574, %v4568
    %v5313 = vpack.c.b16 %v4575, %v4569
    %v5314 = vpack.c.b16 %v4576, %v4570
    %v5315 = vpack.c.b16 %v4577, %v4571
    %v5316 = vpack.c.b16 %v4578, %v4572
    %v5317 = vpack.c.b16 %v4579, %v4573
    %v5318 = vpack.c.b16 %v4586, %v4580
    %v5319 = vpack.c.b16 %v4587, %v4581
    %v5320 = vpack.c.b16 %v4588, %v4582
    %v5321 = vpack.c.b16 %v4589, %v4583
    %v5322 = vpack.c.b16 %v4590, %v4584
    %v5323 = vpack.c.b16 %v4591, %v4585
    %v5324 = vpack.c.b16 %v4598, %v4592
    %v5325 = vpack.c.b16 %v4599, %v4593
    %v5326 = vpack.c.b16 %v4600, %v4594
    %v5327 = vpack.c.b16 %v4601, %v4595
    %v5328 = vpack.c.b16 %v4602, %v4596
    %v5329 = vpack.c.b16 %v4603, %v4597
    %v5330 = vpack.c.b16 %v4610, %v4604
    %v5331 = vpack.c.b16 %v4611, %v4605
    %v5332 = vpack.c.b16 %v4612, %v4606
    %v5333 = vpack.c.b16 %v4613, %v4607
    %v5334 = vpack.c.b16 %v4614, %v4608
    %v5335 = vpack.c.b16 %v4615, %v4609
    %v5336 = vpack.c.b16 %v4622, %v4616
    %v5337 = vpack.c.b16 %v4623, %v4617
    %v5338 = vpack.c.b16 %v4624, %v4618
    %v5339 = vpack.c.b16 %v4625, %v4619
    %v5340 = vpack.c.b16 %v4626, %v4620
    %v5341 = vpack.c.b16 %v4627, %v4621
    %v5342 = vpack.c.b16 %v4634, %v4628
    %v5343 = vpack.c.b16 %v4635, %v4629
    %v5344 = vpack.c.b16 %v4636, %v4630
    %v5345 = vpack.c.b16 %v4637, %v4631
    %v5346 = vpack.c.b16 %v4638, %v4632
    %v5347 = vpack.c.b16 %v4639, %v4633
    %v5348 = vpack.c.b16 %v4646, %v4640
    %v5349 = vpack.c.b16 %v4647, %v4641
    %v5350 = vpack.c.b16 %v4648, %v4642
    %v5351 = vpack.c.b16 %v4649, %v4643
    %v5352 = vpack.c.b16 %v4650, %v4644
    %v5353 = vpack.c.b16 %v4651, %v4645
    %v5354 = vpack.c.b16 %v4658, %v4652
    %v5355 = vpack.c.b16 %v4659, %v4653
    %v5356 = vpack.c.b16 %v4660, %v4654
    %v5357 = vpack.c.b16 %v4661, %v4655
    %v5358 = vpack.c.b16 %v4662, %v4656
    %v5359 = vpack.c.b16 %v4663, %v4657
    %v5360 = vpack.c.b16 %v4670, %v4664
    %v5361 = vpack.c.b16 %v4671, %v4665
    %v5362 = vpack.c.b16 %v4672, %v4666
    %v5363 = vpack.c.b16 %v4673, %v4667
    %v5364 = vpack.c.b16 %v4674, %v4668
    %v5365 = vpack.c.b16 %v4675, %v4669
    %v5366 = vpack.c.b16 %v4682, %v4676
    %v5367 = vpack.c.b16 %v4683, %v4677
    %v5368 = vpack.c.b16 %v4684, %v4678
    %v5369 = vpack.c.b16 %v4685, %v4679
    %v5370 = vpack.c.b16 %v4686, %v4680
    %v5371 = vpack.c.b16 %v4687, %v4681
    %v5372 = vpack.c.b16 %v4694, %v4688
    %v5373 = vpack.c.b16 %v4695, %v4689
    %v5374 = vpack.c.b16 %v4696, %v4690
    %v5375 = vpack.c.b16 %v4697, %v4691
    %v5376 = vpack.c.b16 %v4698, %v4692
    %v5377 = vpack.c.b16 %v4699, %v4693
    %v5378 = vpack.c.b16 %v4706, %v4700
    %v5379 = vpack.c.b16 %v4707, %v4701
    %v5380 = vpack.c.b16 %v4708, %v4702
    %v5381 = vpack.c.b16 %v4709, %v4703
    %v5382 = vpack.c.b16 %v4710, %v4704
    %v5383 = vpack.c.b16 %v4711, %v4705
    %v5384 = vpack.c.b16 %v4718, %v4712
    %v5385 = vpack.c.b16 %v4719, %v4713
    %v5386 = vpack.c.b16 %v4720, %v4714
    %v5387 = vpack.c.b16 %v4721, %v4715
    %v5388 = vpack.c.b16 %v4722, %v4716
    %v5389 = vpack.c.b16 %v4723, %v4717
    %v5390 = vpack.c.b16 %v4730, %v4724
    %v5391 = vpack.c.b16 %v4731, %v4725
    %v5392 = vpack.c.b16 %v4732, %v4726
    %v5393 = vpack.c.b16 %v4733, %v4727
    %v5394 = vpack.c.b16 %v4734, %v4728
    %v5395 = vpack.c.b16 %v4735, %v4729
    %v5396 = vpack.c.b16 %v4742, %v4736
    %v5397 = vpack.c.b16 %v4743, %v4737
    %v5398 = vpack.c.b16 %v4744, %v4738
    %v5399 = vpack.c.b16 %v4745, %v4739
    %v5400 = vpack.c.b16 %v4746, %v4740
    %v5401 = vpack.c.b16 %v4747, %v4741
    %v5402 = vpack.c.b16 %v4754, %v4748
    %v5403 = vpack.c.b16 %v4755, %v4749
    %v5404 = vpack.c.b16 %v4756, %v4750
    %v5405 = vpack.c.b16 %v4757, %v4751
    %v5406 = vpack.c.b16 %v4758, %v4752
    %v5407 = vpack.c.b16 %v4759, %v4753
    %v5408 = vpack.c.b16 %v4766, %v4760
    %v5409 = vpack.c.b16 %v4767, %v4761
    %v5410 = vpack.c.b16 %v4768, %v4762
    %v5411 = vpack.c.b16 %v4769, %v4763
    %v5412 = vpack.c.b16 %v4770, %v4764
    %v5413 = vpack.c.b16 %v4771, %v4765
    %v5414 = vpack.c.b16 %v4778, %v4772
    %v5415 = vpack.c.b16 %v4779, %v4773
    %v5416 = vpack.c.b16 %v4780, %v4774
    %v5417 = vpack.c.b16 %v4781, %v4775
    %v5418 = vpack.c.b16 %v4782, %v4776
    %v5419 = vpack.c.b16 %v4783, %v4777
    %v5420 = vpack.c.b16 %v4790, %v4784
    %v5421 = vpack.c.b16 %v4791, %v4785
    %v5422 = vpack.c.b16 %v4792, %v4786
    %v5423 = vpack.c.b16 %v4793, %v4787
    %v5424 = vpack.c.b16 %v4794, %v4788
    %v5425 = vpack.c.b16 %v4795, %v4789
    %v5426 = vpack.c.b16 %v4802, %v4796
    %v5427 = vpack.c.b16 %v4803, %v4797
    %v5428 = vpack.c.b16 %v4804, %v4798
    %v5429 = vpack.c.b16 %v4805, %v4799
    %v5430 = vpack.c.b16 %v4806, %v4800
    %v5431 = vpack.c.b16 %v4807, %v4801
    %v5432 = vpack.c.b16 %v4814, %v4808
    %v5433 = vpack.c.b16 %v4815, %v4809
    %v5434 = vpack.c.b16 %v4816, %v4810
    %v5435 = vpack.c.b16 %v4817, %v4811
    %v5436 = vpack.c.b16 %v4818, %v4812
    %v5437 = vpack.c.b16 %v4819, %v4813
    %v5438 = vpack.c.b16 %v4826, %v4820
    %v5439 = vpack.c.b16 %v4827, %v4821
    %v5440 = vpack.c.b16 %v4828, %v4822
    %v5441 = vpack.c.b16 %v4829, %v4823
    %v5442 = vpack.c.b16 %v4830, %v4824
    %v5443 = vpack.c.b16 %v4831, %v4825
    %v5444 = vpack.c.b16 %v4838, %v4832
    %v5445 = vpack.c.b16 %v4839, %v4833
    %v5446 = vpack.c.b16 %v4840, %v4834
    %v5447 = vpack.c.b16 %v4841, %v4835
    %v5448 = vpack.c.b16 %v4842, %v4836
    %v5449 = vpack.c.b16 %v4843, %v4837
    %v5450 = vpack.c.b16 %v4850, %v4844
    %v5451 = vpack.c.b16 %v4851, %v4845
    %v5452 = vpack.c.b16 %v4852, %v4846
    %v5453 = vpack.c.b16 %v4853, %v4847
    %v5454 = vpack.c.b16 %v4854, %v4848
    %v5455 = vpack.c.b16 %v4855, %v4849
    %v5456 = vpack.c.b16 %v4862, %v4856
    %v5457 = vpack.c.b16 %v4863, %v4857
    %v5458 = vpack.c.b16 %v4864, %v4858
    %v5459 = vpack.c.b16 %v4865, %v4859
    %v5460 = vpack.c.b16 %v4866, %v4860
    %v5461 = vpack.c.b16 %v4867, %v4861
    %v5462 = vpack.c.b16 %v4874, %v4868
    %v5463 = vpack.c.b16 %v4875, %v4869
    %v5464 = vpack.c.b16 %v4876, %v4870
    %v5465 = vpack.c.b16 %v4877, %v4871
    %v5466 = vpack.c.b16 %v4878, %v4872
    %v5467 = vpack.c.b16 %v4879, %v4873
    %v5468 = vpack.c.b16 %v4886, %v4880
    %v5469 = vpack.c.b16 %v4887, %v4881
    %v5470 = vpack.c.b16 %v4888, %v4882
    %v5471 = vpack.c.b16 %v4889, %v4883
    %v5472 = vpack.c.b16 %v4890, %v4884
    %v5473 = vpack.c.b16 %v4891, %v4885
    %v5474 = vpack.c.b16 %v4898, %v4892
    %v5475 = vpack.c.b16 %v4899, %v4893
    %v5476 = vpack.c.b16 %v4900, %v4894
    %v5477 = vpack.c.b16 %v4901, %v4895
    %v5478 = vpack.c.b16 %v4902, %v4896
    %v5479 = vpack.c.b16 %v4903, %v4897
    %v5480 = vpack.c.b16 %v4910, %v4904
    %v5481 = vpack.c.b16 %v4911, %v4905
    %v5482 = vpack.c.b16 %v4912, %v4906
    %v5483 = vpack.c.b16 %v4913, %v4907
    %v5484 = vpack.c.b16 %v4914, %v4908
    %v5485 = vpack.c.b16 %v4915, %v4909
    %v5486 = vpack.c.b16 %v4922, %v4916
    %v5487 = vpack.c.b16 %v4923, %v4917
    %v5488 = vpack.c.b16 %v4924, %v4918
    %v5489 = vpack.c.b16 %v4925, %v4919
    %v5490 = vpack.c.b16 %v4926, %v4920
    %v5491 = vpack.c.b16 %v4927, %v4921
    %v5492 = vpack.c.b16 %v4934, %v4928
    %v5493 = vpack.c.b16 %v4935, %v4929
    %v5494 = vpack.c.b16 %v4936, %v4930
    %v5495 = vpack.c.b16 %v4937, %v4931
    %v5496 = vpack.c.b16 %v4938, %v4932
    %v5497 = vpack.c.b16 %v4939, %v4933
    %v5498 = vpack.c.b16 %v4946, %v4940
    %v5499 = vpack.c.b16 %v4947, %v4941
    %v5500 = vpack.c.b16 %v4948, %v4942
    %v5501 = vpack.c.b16 %v4949, %v4943
    %v5502 = vpack.c.b16 %v4950, %v4944
    %v5503 = vpack.c.b16 %v4951, %v4945
    %v5504 = vpack.c.b16 %v4958, %v4952
    %v5505 = vpack.c.b16 %v4959, %v4953
    %v5506 = vpack.c.b16 %v4960, %v4954
    %v5507 = vpack.c.b16 %v4961, %v4955
    %v5508 = vpack.c.b16 %v4962, %v4956
    %v5509 = vpack.c.b16 %v4963, %v4957
    %v5510 = vpack.c.b16 %v4970, %v4964
    %v5511 = vpack.c.b16 %v4971, %v4965
    %v5512 = vpack.c.b16 %v4972, %v4966
    %v5513 = vpack.c.b16 %v4973, %v4967
    %v5514 = vpack.c.b16 %v4974, %v4968
    %v5515 = vpack.c.b16 %v4975, %v4969
    %v5516 = vpack.c.b16 %v4982, %v4976
    %v5517 = vpack.c.b16 %v4983, %v4977
    %v5518 = vpack.c.b16 %v4984, %v4978
    %v5519 = vpack.c.b16 %v4985, %v4979
    %v5520 = vpack.c.b16 %v4986, %v4980
    %v5521 = vpack.c.b16 %v4987, %v4981
    %v5522 = vpack.c.b16 %v4994, %v4988
    %v5523 = vpack.c.b16 %v4995, %v4989
    %v5524 = vpack.c.b16 %v4996, %v4990
    %v5525 = vpack.c.b16 %v4997, %v4991
    %v5526 = vpack.c.b16 %v4998, %v4992
    %v5527 = vpack.c.b16 %v4999, %v4993
    %v5528 = vpack.c.b16 %v5006, %v5000
    %v5529 = vpack.c.b16 %v5007, %v5001
    %v5530 = vpack.c.b16 %v5008, %v5002
    %v5531 = vpack.c.b16 %v5009, %v5003
    %v5532 = vpack.c.b16 %v5010, %v5004
    %v5533 = vpack.c.b16 %v5011, %v5005
    %v5534 = vpack.c.b16 %v5018, %v5012
    %v5535 = vpack.c.b16 %v5019, %v5013
    %v5536 = vpack.c.b16 %v5020, %v5014
    %v5537 = vpack.c.b16 %v5021, %v5015
    %v5538 = vpack.c.b16 %v5022, %v5016
    %v5539 = vpack.c.b16 %v5023, %v5017
    %v5540 = vpack.c.b16 %v5030, %v5024
    %v5541 = vpack.c.b16 %v5031, %v5025
    %v5542 = vpack.c.b16 %v5032, %v5026
    %v5543 = vpack.c.b16 %v5033, %v5027
    %v5544 = vpack.c.b16 %v5034, %v5028
    %v5545 = vpack.c.b16 %v5035, %v5029
    %v5546 = vpack.c.b16 %v5042, %v5036
    %v5547 = vpack.c.b16 %v5043, %v5037
    %v5548 = vpack.c.b16 %v5044, %v5038
    %v5549 = vpack.c.b16 %v5045, %v5039
    %v5550 = vpack.c.b16 %v5046, %v5040
    %v5551 = vpack.c.b16 %v5047, %v5041
    %v5552 = vpack.c.b16 %v5054, %v5048
    %v5553 = vpack.c.b16 %v5055, %v5049
    %v5554 = vpack.c.b16 %v5056, %v5050
    %v5555 = vpack.c.b16 %v5057, %v5051
    %v5556 = vpack.c.b16 %v5058, %v5052
    %v5557 = vpack.c.b16 %v5059, %v5053
    %v5558 = vpack.c.b16 %v5066, %v5060
    %v5559 = vpack.c.b16 %v5067, %v5061
    %v5560 = vpack.c.b16 %v5068, %v5062
    %v5561 = vpack.c.b16 %v5069, %v5063
    %v5562 = vpack.c.b16 %v5070, %v5064
    %v5563 = vpack.c.b16 %v5071, %v5065
    %v5564 = vpack.c.b16 %v5078, %v5072
    %v5565 = vpack.c.b16 %v5079, %v5073
    %v5566 = vpack.c.b16 %v5080, %v5074
    %v5567 = vpack.c.b16 %v5081, %v5075
    %v5568 = vpack.c.b16 %v5082, %v5076
    %v5569 = vpack.c.b16 %v5083, %v5077
    %v5570 = vpack.c.b16 %v5090, %v5084
    %v5571 = vpack.c.b16 %v5091, %v5085
    %v5572 = vpack.c.b16 %v5092, %v5086
    %v5573 = vpack.c.b16 %v5093, %v5087
    %v5574 = vpack.c.b16 %v5094, %v5088
    %v5575 = vpack.c.b16 %v5095, %v5089
    %v5576 = vpack.c.b16 %v5102, %v5096
    %v5577 = vpack.c.b16 %v5103, %v5097
    %v5578 = vpack.c.b16 %v5104, %v5098
    %v5579 = vpack.c.b16 %v5105, %v5099
    %v5580 = vpack.c.b16 %v5106, %v5100
    %v5581 = vpack.c.b16 %v5107, %v5101
    %v5582 = vpack.c.b16 %v5114, %v5108
    %v5583 = vpack.c.b16 %v5115, %v5109
    %v5584 = vpack.c.b16 %v5116, %v5110
    %v5585 = vpack.c.b16 %v5117, %v5111
    %v5586 = vpack.c.b16 %v5118, %v5112
    %v5587 = vpack.c.b16 %v5119, %v5113
    %v5588 = vpack.c.b16 %v5126, %v5120
    %v5589 = vpack.c.b16 %v5127, %v5121
    %v5590 = vpack.c.b16 %v5128, %v5122
    %v5591 = vpack.c.b16 %v5129, %v5123
    %v5592 = vpack.c.b16 %v5130, %v5124
    %v5593 = vpack.c.b16 %v5131, %v5125
    %v5594 = vpack.c.b16 %v5138, %v5132
    %v5595 = vpack.c.b16 %v5139, %v5133
    %v5596 = vpack.c.b16 %v5140, %v5134
    %v5597 = vpack.c.b16 %v5141, %v5135
    %v5598 = vpack.c.b16 %v5142, %v5136
    %v5599 = vpack.c.b16 %v5143, %v5137
    %v5600 = vpack.c.b16 %v5150, %v5144
    %v5601 = vpack.c.b16 %v5151, %v5145
    %v5602 = vpack.c.b16 %v5152, %v5146
    %v5603 = vpack.c.b16 %v5153, %v5147
    %v5604 = vpack.c.b16 %v5154, %v5148
    %v5605 = vpack.c.b16 %v5155, %v5149
    %v5606 = vpack.c.b16 %v5162, %v5156
    %v5607 = vpack.c.b16 %v5163, %v5157
    %v5608 = vpack.c.b16 %v5164, %v5158
    %v5609 = vpack.c.b16 %v5165, %v5159
    %v5610 = vpack.c.b16 %v5166, %v5160
    %v5611 = vpack.c.b16 %v5167, %v5161
    %v5612 = vpack.c.b16 %v5174, %v5168
    %v5613 = vpack.c.b16 %v5175, %v5169
    %v5614 = vpack.c.b16 %v5176, %v5170
    %v5615 = vpack.c.b16 %v5177, %v5171
    %v5616 = vpack.c.b16 %v5178, %v5172
    %v5617 = vpack.c.b16 %v5179, %v5173
    %v5618 = vpack.c.b16 %v5186, %v5180
    %v5619 = vpack.c.b16 %v5187, %v5181
    %v5620 = vpack.c.b16 %v5188, %v5182
    %v5621 = vpack.c.b16 %v5189, %v5183
    %v5622 = vpack.c.b16 %v5190, %v5184
    %v5623 = vpack.c.b16 %v5191, %v5185
    %v5624 = vpack.c.b16 %v5198, %v5192
    %v5625 = vpack.c.b16 %v5199, %v5193
    %v5626 = vpack.c.b16 %v5200, %v5194
    %v5627 = vpack.c.b16 %v5201, %v5195
    %v5628 = vpack.c.b16 %v5202, %v5196
    %v5629 = vpack.c.b16 %v5203, %v5197
    %v5630 = vpack.c.b16 %v5210, %v5204
    %v5631 = vpack.c.b16 %v5211, %v5205
    %v5632 = vpack.c.b16 %v5212, %v5206
    %v5633 = vpack.c.b16 %v5213, %v5207
    %v5634 = vpack.c.b16 %v5214, %v5208
    %v5635 = vpack.c.b16 %v5215, %v5209
    %v5636 = vpack.c.b16 %v5222, %v5216
    %v5637 = vpack.c.b16 %v5223, %v5217
    %v5638 = vpack.c.b16 %v5224, %v5218
    %v5639 = vpack.c.b16 %v5225, %v5219
    %v5640 = vpack.c.b16 %v5226, %v5220
    %v5641 = vpack.c.b16 %v5227, %v5221
    %v5642 = vpack.c.b16 %v5234, %v5228
    %v5643 = vpack.c.b16 %v5235, %v5229
    %v5644 = vpack.c.b16 %v5236, %v5230
    %v5645 = vpack.c.b16 %v5237, %v5231
    %v5646 = vpack.c.b16 %v5238, %v5232
    %v5647 = vpack.c.b16 %v5239, %v5233
    %v5648 = vpack.c.b16 %v5246, %v5240
    %v5649 = vpack.c.b16 %v5247, %v5241
    %v5650 = vpack.c.b16 %v5248, %v5242
    %v5651 = vpack.c.b16 %v5249, %v5243
    %v5652 = vpack.c.b16 %v5250, %v5244
    %v5653 = vpack.c.b16 %v5251, %v5245
    %v5654 = vpack.c.b16 %v5258, %v5252
    %v5655 = vpack.c.b16 %v5259, %v5253
    %v5656 = vpack.c.b16 %v5260, %v5254
    %v5657 = vpack.c.b16 %v5261, %v5255
    %v5658 = vpack.c.b16 %v5262, %v5256
    %v5659 = vpack.c.b16 %v5263, %v5257
    %v5660 = vpack.c.b16 %v5270, %v5264
    %v5661 = vpack.c.b16 %v5271, %v5265
    %v5662 = vpack.c.b16 %v5272, %v5266
    %v5663 = vpack.c.b16 %v5273, %v5267
    %v5664 = vpack.c.b16 %v5274, %v5268
    %v5665 = vpack.c.b16 %v5275, %v5269
    %v5666 = vpack.c.b16 %v5282, %v5276
    %v5667 = vpack.c.b16 %v5283, %v5277
    %v5668 = vpack.c.b16 %v5284, %v5278
    %v5669 = vpack.c.b16 %v5285, %v5279
    %v5670 = vpack.c.b16 %v5286, %v5280
    %v5671 = vpack.c.b16 %v5287, %v5281
    %6056 = vmatprep.subr.bf16.mxu0 %v5289
    %6057 = vmatpush1.bf16.msra.mxu0 %v5288
    %6058 = vmatprep.subr.bf16.mxu0 %v5295
    %6059 = vmatpush1.bf16.msra.mxu0 %v5294
    %6060 = vmatprep.subr.bf16.mxu0 %v5301
    %6061 = vmatpush1.bf16.msra.mxu0 %v5300
    %6062 = vmatprep.subr.bf16.mxu0 %v5307
    %6063 = vmatpush1.bf16.msra.mxu0 %v5306
    %6064 = vmatprep.subr.bf16.mxu0 %v5313
    %6065 = vmatpush1.bf16.msra.mxu0 %v5312
    %6066 = vmatprep.subr.bf16.mxu0 %v5319
    %6067 = vmatpush1.bf16.msra.mxu0 %v5318
    %6068 = vmatprep.subr.bf16.mxu0 %v5325
    %6069 = vmatpush1.bf16.msra.mxu0 %v5324
    %6070 = vmatprep.subr.bf16.mxu0 %v5331
    %6071 = vmatpush1.bf16.msra.mxu0 %v5330
    %6072 = vmatprep.subr.bf16.mxu0 %v5337
    %6073 = vmatpush1.bf16.msra.mxu0 %v5336
    %6074 = vmatprep.subr.bf16.mxu0 %v5343
    %6075 = vmatpush1.bf16.msra.mxu0 %v5342
    %6076 = vmatprep.subr.bf16.mxu0 %v5349
    %6077 = vmatpush1.bf16.msra.mxu0 %v5348
    %6078 = vmatprep.subr.bf16.mxu0 %v5355
    %6079 = vmatpush1.bf16.msra.mxu0 %v5354
    %6080 = vmatprep.subr.bf16.mxu0 %v5361
    %6081 = vmatpush1.bf16.msra.mxu0 %v5360
    %6082 = vmatprep.subr.bf16.mxu0 %v5367
    %6083 = vmatpush1.bf16.msra.mxu0 %v5366
    %6084 = vmatprep.subr.bf16.mxu0 %v5373
    %6085 = vmatpush1.bf16.msra.mxu0 %v5372
    %6086 = vmatprep.subr.bf16.mxu0 %v5379
    %6087 = vmatpush1.bf16.msra.mxu0 %v5378
    %6088 = vmatprep.mubr.bf16.mxu0 %v3713
    %6089 = vmatmul.mubr.bf16.gmra.mrb[0].mxu0 %v3712
    %v6090 = vpop.f32.mrb[0].mxu0
    %v6091 = vadd.f32 %v4109, %v6090
    %v6092 = vpop.f32.mrb[0].mxu0
    %v6093 = vadd.f32 %v4113, %v6092
    %v6094 = vpop.f32.mrb[0].mxu0
    %v6095 = vpop.f32.mrb[0].mxu0
    %6096 = vdwg.mxu0
    %6097 = vmatprep.subr.bf16.mxu0 %v5385
    %6098 = vmatpush1.bf16.msra.mxu0 %v5384
    %6099 = vmatprep.subr.bf16.mxu0 %v5391
    %6100 = vmatpush1.bf16.msra.mxu0 %v5390
    %6101 = vmatprep.subr.bf16.mxu0 %v5397
    %6102 = vmatpush1.bf16.msra.mxu0 %v5396
    %6103 = vmatprep.subr.bf16.mxu0 %v5403
    %6104 = vmatpush1.bf16.msra.mxu0 %v5402
    %6105 = vmatprep.subr.bf16.mxu0 %v5409
    %6106 = vmatpush1.bf16.msra.mxu0 %v5408
    %6107 = vmatprep.subr.bf16.mxu0 %v5415
    %6108 = vmatpush1.bf16.msra.mxu0 %v5414
    %6109 = vmatprep.subr.bf16.mxu0 %v5421
    %6110 = vmatpush1.bf16.msra.mxu0 %v5420
    %6111 = vmatprep.subr.bf16.mxu0 %v5427
    %6112 = vmatpush1.bf16.msra.mxu0 %v5426
    %6113 = vmatprep.subr.bf16.mxu0 %v5433
    %6114 = vmatpush1.bf16.msra.mxu0 %v5432
    %6115 = vmatprep.subr.bf16.mxu0 %v5439
    %6116 = vmatpush1.bf16.msra.mxu0 %v5438
    %6117 = vmatprep.subr.bf16.mxu0 %v5445
    %6118 = vmatpush1.bf16.msra.mxu0 %v5444
    %6119 = vmatprep.subr.bf16.mxu0 %v5451
    %6120 = vmatpush1.bf16.msra.mxu0 %v5450
    %6121 = vmatprep.subr.bf16.mxu0 %v5457
    %6122 = vmatpush1.bf16.msra.mxu0 %v5456
    %6123 = vmatprep.subr.bf16.mxu0 %v5463
    %6124 = vmatpush1.bf16.msra.mxu0 %v5462
    %6125 = vmatprep.subr.bf16.mxu0 %v5469
    %6126 = vmatpush1.bf16.msra.mxu0 %v5468
    %6127 = vmatprep.subr.bf16.mxu0 %v5475
    %6128 = vmatpush1.bf16.msra.mxu0 %v5474
    %6129 = vmatprep.mubr.bf16.mxu0 %v3715
    %6130 = vmatmul.mubr.bf16.gmra.mrb[0].mxu0 %v3714
    %v6131 = vpop.f32.mrb[0].mxu0
    %v6132 = vadd.f32 %v6091, %v6131
    %v6133 = vpop.f32.mrb[0].mxu0
    %v6134 = vadd.f32 %v6093, %v6133
    %v6135 = vpop.f32.mrb[0].mxu0
    %v6136 = vpop.f32.mrb[0].mxu0
    %6137 = vdwg.mxu0
    %6138 = vmatprep.subr.bf16.mxu0 %v5481
    %6139 = vmatpush1.bf16.msra.mxu0 %v5480
    %6140 = vmatprep.subr.bf16.mxu0 %v5487
    %6141 = vmatpush1.bf16.msra.mxu0 %v5486
    %6142 = vmatprep.subr.bf16.mxu0 %v5493
    %6143 = vmatpush1.bf16.msra.mxu0 %v5492
    %6144 = vmatprep.subr.bf16.mxu0 %v5499
    %6145 = vmatpush1.bf16.msra.mxu0 %v5498
    %6146 = vmatprep.subr.bf16.mxu0 %v5505
    %6147 = vmatpush1.bf16.msra.mxu0 %v5504
    %6148 = vmatprep.subr.bf16.mxu0 %v5511
    %6149 = vmatpush1.bf16.msra.mxu0 %v5510
    %6150 = vmatprep.subr.bf16.mxu0 %v5517
    %6151 = vmatpush1.bf16.msra.mxu0 %v5516
    %6152 = vmatprep.subr.bf16.mxu0 %v5523
    %6153 = vmatpush1.bf16.msra.mxu0 %v5522
    %6154 = vmatprep.subr.bf16.mxu0 %v5529
    %6155 = vmatpush1.bf16.msra.mxu0 %v5528
    %6156 = vmatprep.subr.bf16.mxu0 %v5535
    %6157 = vmatpush1.bf16.msra.mxu0 %v5534
    %6158 = vmatprep.subr.bf16.mxu0 %v5541
    %6159 = vmatpush1.bf16.msra.mxu0 %v5540
    %6160 = vmatprep.subr.bf16.mxu0 %v5547
    %6161 = vmatpush1.bf16.msra.mxu0 %v5546
    %6162 = vmatprep.subr.bf16.mxu0 %v5553
    %6163 = vmatpush1.bf16.msra.mxu0 %v5552
    %6164 = vmatprep.subr.bf16.mxu0 %v5559
    %6165 = vmatpush1.bf16.msra.mxu0 %v5558
    %6166 = vmatprep.subr.bf16.mxu0 %v5565
    %6167 = vmatpush1.bf16.msra.mxu0 %v5564
    %6168 = vmatprep.subr.bf16.mxu0 %v5571
    %6169 = vmatpush1.bf16.msra.mxu0 %v5570
    %6170 = vmatprep.mubr.bf16.mxu0 %v3717
    %6171 = vmatmul.mubr.bf16.gmra.mrb[0].mxu0 %v3716
    %v6172 = vpop.f32.mrb[0].mxu0
    %v6173 = vadd.f32 %v6132, %v6172
    %v6174 = vpop.f32.mrb[0].mxu0
    %v6175 = vadd.f32 %v6134, %v6174
    %v6176 = vpop.f32.mrb[0].mxu0
    %v6177 = vpop.f32.mrb[0].mxu0
    %6178 = vdwg.mxu0
    %6179 = vmatprep.subr.bf16.mxu0 %v5577
    %6180 = vmatpush1.bf16.msra.mxu0 %v5576
    %6181 = vmatprep.subr.bf16.mxu0 %v5583
    %6182 = vmatpush1.bf16.msra.mxu0 %v5582
    %6183 = vmatprep.subr.bf16.mxu0 %v5589
    %6184 = vmatpush1.bf16.msra.mxu0 %v5588
    %6185 = vmatprep.subr.bf16.mxu0 %v5595
    %6186 = vmatpush1.bf16.msra.mxu0 %v5594
    %6187 = vmatprep.subr.bf16.mxu0 %v5601
    %6188 = vmatpush1.bf16.msra.mxu0 %v5600
    %6189 = vmatprep.subr.bf16.mxu0 %v5607
    %6190 = vmatpush1.bf16.msra.mxu0 %v5606
    %6191 = vmatprep.subr.bf16.mxu0 %v5613
    %6192 = vmatpush1.bf16.msra.mxu0 %v5612
    %6193 = vmatprep.subr.bf16.mxu0 %v5619
    %6194 = vmatpush1.bf16.msra.mxu0 %v5618
    %6195 = vmatprep.subr.bf16.mxu0 %v5625
    %6196 = vmatpush1.bf16.msra.mxu0 %v5624
    %6197 = vmatprep.subr.bf16.mxu0 %v5631
    %6198 = vmatpush1.bf16.msra.mxu0 %v5630
    %6199 = vmatprep.subr.bf16.mxu0 %v5637
    %6200 = vmatpush1.bf16.msra.mxu0 %v5636
    %6201 = vmatprep.subr.bf16.mxu0 %v5643
    %6202 = vmatpush1.bf16.msra.mxu0 %v5642
    %6203 = vmatprep.subr.bf16.mxu0 %v5649
    %6204 = vmatpush1.bf16.msra.mxu0 %v5648
    %6205 = vmatprep.subr.bf16.mxu0 %v5655
    %6206 = vmatpush1.bf16.msra.mxu0 %v5654
    %6207 = vmatprep.subr.bf16.mxu0 %v5661
    %6208 = vmatpush1.bf16.msra.mxu0 %v5660
    %6209 = vmatprep.subr.bf16.mxu0 %v5667
    %6210 = vmatpush1.bf16.msra.mxu0 %v5666
    %6211 = vmatprep.mubr.bf16.mxu0 %v3719
    %6212 = vmatmul.mubr.bf16.gmra.mrb[0].mxu0 %v3718
    %v6213 = vpop.f32.mrb[0].mxu0
    %v6214 = vadd.f32 %v6173, %v6213
    %v6215 = vpop.f32.mrb[0].mxu0
    %v6216 = vadd.f32 %v6175, %v6215
    %v6217 = vpop.f32.mrb[0].mxu0
    %v6218 = vpop.f32.mrb[0].mxu0
    %6219 = vdwg.mxu0
    %6220 = vmatprep.subr.bf16.mxu0 %v5291
    %6221 = vmatpush1.bf16.msra.mxu0 %v5290
    %6222 = vmatprep.subr.bf16.mxu0 %v5297
    %6223 = vmatpush1.bf16.msra.mxu0 %v5296
    %6224 = vmatprep.subr.bf16.mxu0 %v5303
    %6225 = vmatpush1.bf16.msra.mxu0 %v5302
    %6226 = vmatprep.subr.bf16.mxu0 %v5309
    %6227 = vmatpush1.bf16.msra.mxu0 %v5308
    %6228 = vmatprep.subr.bf16.mxu0 %v5315
    %6229 = vmatpush1.bf16.msra.mxu0 %v5314
    %6230 = vmatprep.subr.bf16.mxu0 %v5321
    %6231 = vmatpush1.bf16.msra.mxu0 %v5320
    %6232 = vmatprep.subr.bf16.mxu0 %v5327
    %6233 = vmatpush1.bf16.msra.mxu0 %v5326
    %6234 = vmatprep.subr.bf16.mxu0 %v5333
    %6235 = vmatpush1.bf16.msra.mxu0 %v5332
    %6236 = vmatprep.subr.bf16.mxu0 %v5339
    %6237 = vmatpush1.bf16.msra.mxu0 %v5338
    %6238 = vmatprep.subr.bf16.mxu0 %v5345
    %6239 = vmatpush1.bf16.msra.mxu0 %v5344
    %6240 = vmatprep.subr.bf16.mxu0 %v5351
    %6241 = vmatpush1.bf16.msra.mxu0 %v5350
    %6242 = vmatprep.subr.bf16.mxu0 %v5357
    %6243 = vmatpush1.bf16.msra.mxu0 %v5356
    %6244 = vmatprep.subr.bf16.mxu0 %v5363
    %6245 = vmatpush1.bf16.msra.mxu0 %v5362
    %6246 = vmatprep.subr.bf16.mxu0 %v5369
    %6247 = vmatpush1.bf16.msra.mxu0 %v5368
    %6248 = vmatprep.subr.bf16.mxu0 %v5375
    %6249 = vmatpush1.bf16.msra.mxu0 %v5374
    %6250 = vmatprep.subr.bf16.mxu0 %v5381
    %6251 = vmatpush1.bf16.msra.mxu0 %v5380
    %6252 = vmatprep.mubr.bf16.mxu0 %v3713
    %6253 = vmatmul.mubr.bf16.gmra.mrb[0].mxu0 %v3712
    %v6254 = vpop.f32.mrb[0].mxu0
    %v6255 = vadd.f32 %v4117, %v6254
    %v6256 = vpop.f32.mrb[0].mxu0
    %v6257 = vadd.f32 %v4121, %v6256
    %v6258 = vpop.f32.mrb[0].mxu0
    %v6259 = vpop.f32.mrb[0].mxu0
    %6260 = vdwg.mxu0
    %6261 = vmatprep.subr.bf16.mxu0 %v5387
    %6262 = vmatpush1.bf16.msra.mxu0 %v5386
    %6263 = vmatprep.subr.bf16.mxu0 %v5393
    %6264 = vmatpush1.bf16.msra.mxu0 %v5392
    %6265 = vmatprep.subr.bf16.mxu0 %v5399
    %6266 = vmatpush1.bf16.msra.mxu0 %v5398
    %6267 = vmatprep.subr.bf16.mxu0 %v5405
    %6268 = vmatpush1.bf16.msra.mxu0 %v5404
    %6269 = vmatprep.subr.bf16.mxu0 %v5411
    %6270 = vmatpush1.bf16.msra.mxu0 %v5410
    %6271 = vmatprep.subr.bf16.mxu0 %v5417
    %6272 = vmatpush1.bf16.msra.mxu0 %v5416
    %6273 = vmatprep.subr.bf16.mxu0 %v5423
    %6274 = vmatpush1.bf16.msra.mxu0 %v5422
    %6275 = vmatprep.subr.bf16.mxu0 %v5429
    %6276 = vmatpush1.bf16.msra.mxu0 %v5428
    %6277 = vmatprep.subr.bf16.mxu0 %v5435
    %6278 = vmatpush1.bf16.msra.mxu0 %v5434
    %6279 = vmatprep.subr.bf16.mxu0 %v5441
    %6280 = vmatpush1.bf16.msra.mxu0 %v5440
    %6281 = vmatprep.subr.bf16.mxu0 %v5447
    %6282 = vmatpush1.bf16.msra.mxu0 %v5446
    %6283 = vmatprep.subr.bf16.mxu0 %v5453
    %6284 = vmatpush1.bf16.msra.mxu0 %v5452
    %6285 = vmatprep.subr.bf16.mxu0 %v5459
    %6286 = vmatpush1.bf16.msra.mxu0 %v5458
    %6287 = vmatprep.subr.bf16.mxu0 %v5465
    %6288 = vmatpush1.bf16.msra.mxu0 %v5464
    %6289 = vmatprep.subr.bf16.mxu0 %v5471
    %6290 = vmatpush1.bf16.msra.mxu0 %v5470
    %6291 = vmatprep.subr.bf16.mxu0 %v5477
    %6292 = vmatpush1.bf16.msra.mxu0 %v5476
    %6293 = vmatprep.mubr.bf16.mxu0 %v3715
    %6294 = vmatmul.mubr.bf16.gmra.mrb[0].mxu0 %v3714
    %v6295 = vpop.f32.mrb[0].mxu0
    %v6296 = vadd.f32 %v6255, %v6295
    %v6297 = vpop.f32.mrb[0].mxu0
    %v6298 = vadd.f32 %v6257, %v6297
    %v6299 = vpop.f32.mrb[0].mxu0
    %v6300 = vpop.f32.mrb[0].mxu0
    %6301 = vdwg.mxu0
    %6302 = vmatprep.subr.bf16.mxu0 %v5483
    %6303 = vmatpush1.bf16.msra.mxu0 %v5482
    %6304 = vmatprep.subr.bf16.mxu0 %v5489
    %6305 = vmatpush1.bf16.msra.mxu0 %v5488
    %6306 = vmatprep.subr.bf16.mxu0 %v5495
    %6307 = vmatpush1.bf16.msra.mxu0 %v5494
    %6308 = vmatprep.subr.bf16.mxu0 %v5501
    %6309 = vmatpush1.bf16.msra.mxu0 %v5500
    %6310 = vmatprep.subr.bf16.mxu0 %v5507
    %6311 = vmatpush1.bf16.msra.mxu0 %v5506
    %6312 = vmatprep.subr.bf16.mxu0 %v5513
    %6313 = vmatpush1.bf16.msra.mxu0 %v5512
    %6314 = vmatprep.subr.bf16.mxu0 %v5519
    %6315 = vmatpush1.bf16.msra.mxu0 %v5518
    %6316 = vmatprep.subr.bf16.mxu0 %v5525
    %6317 = vmatpush1.bf16.msra.mxu0 %v5524
    %6318 = vmatprep.subr.bf16.mxu0 %v5531
    %6319 = vmatpush1.bf16.msra.mxu0 %v5530
    %6320 = vmatprep.subr.bf16.mxu0 %v5537
    %6321 = vmatpush1.bf16.msra.mxu0 %v5536
    %6322 = vmatprep.subr.bf16.mxu0 %v5543
    %6323 = vmatpush1.bf16.msra.mxu0 %v5542
    %6324 = vmatprep.subr.bf16.mxu0 %v5549
    %6325 = vmatpush1.bf16.msra.mxu0 %v5548
    %6326 = vmatprep.subr.bf16.mxu0 %v5555
    %6327 = vmatpush1.bf16.msra.mxu0 %v5554
    %6328 = vmatprep.subr.bf16.mxu0 %v5561
    %6329 = vmatpush1.bf16.msra.mxu0 %v5560
    %6330 = vmatprep.subr.bf16.mxu0 %v5567
    %6331 = vmatpush1.bf16.msra.mxu0 %v5566
    %6332 = vmatprep.subr.bf16.mxu0 %v5573
    %6333 = vmatpush1.bf16.msra.mxu0 %v5572
    %6334 = vmatprep.mubr.bf16.mxu0 %v3717
    %6335 = vmatmul.mubr.bf16.gmra.mrb[0].mxu0 %v3716
    %v6336 = vpop.f32.mrb[0].mxu0
    %v6337 = vadd.f32 %v6296, %v6336
    %v6338 = vpop.f32.mrb[0].mxu0
    %v6339 = vadd.f32 %v6298, %v6338
    %v6340 = vpop.f32.mrb[0].mxu0
    %v6341 = vpop.f32.mrb[0].mxu0
    %6342 = vdwg.mxu0
    %6343 = vmatprep.subr.bf16.mxu0 %v5579
    %6344 = vmatpush1.bf16.msra.mxu0 %v5578
    %6345 = vmatprep.subr.bf16.mxu0 %v5585
    %6346 = vmatpush1.bf16.msra.mxu0 %v5584
    %6347 = vmatprep.subr.bf16.mxu0 %v5591
    %6348 = vmatpush1.bf16.msra.mxu0 %v5590
    %6349 = vmatprep.subr.bf16.mxu0 %v5597
    %6350 = vmatpush1.bf16.msra.mxu0 %v5596
    %6351 = vmatprep.subr.bf16.mxu0 %v5603
    %6352 = vmatpush1.bf16.msra.mxu0 %v5602
    %6353 = vmatprep.subr.bf16.mxu0 %v5609
    %6354 = vmatpush1.bf16.msra.mxu0 %v5608
    %6355 = vmatprep.subr.bf16.mxu0 %v5615
    %6356 = vmatpush1.bf16.msra.mxu0 %v5614
    %6357 = vmatprep.subr.bf16.mxu0 %v5621
    %6358 = vmatpush1.bf16.msra.mxu0 %v5620
    %6359 = vmatprep.subr.bf16.mxu0 %v5627
    %6360 = vmatpush1.bf16.msra.mxu0 %v5626
    %6361 = vmatprep.subr.bf16.mxu0 %v5633
    %6362 = vmatpush1.bf16.msra.mxu0 %v5632
    %6363 = vmatprep.subr.bf16.mxu0 %v5639
    %6364 = vmatpush1.bf16.msra.mxu0 %v5638
    %6365 = vmatprep.subr.bf16.mxu0 %v5645
    %6366 = vmatpush1.bf16.msra.mxu0 %v5644
    %6367 = vmatprep.subr.bf16.mxu0 %v5651
    %6368 = vmatpush1.bf16.msra.mxu0 %v5650
    %6369 = vmatprep.subr.bf16.mxu0 %v5657
    %6370 = vmatpush1.bf16.msra.mxu0 %v5656
    %6371 = vmatprep.subr.bf16.mxu0 %v5663
    %6372 = vmatpush1.bf16.msra.mxu0 %v5662
    %6373 = vmatprep.subr.bf16.mxu0 %v5669
    %6374 = vmatpush1.bf16.msra.mxu0 %v5668
    %6375 = vmatprep.mubr.bf16.mxu0 %v3719
    %6376 = vmatmul.mubr.bf16.gmra.mrb[0].mxu0 %v3718
    %v6377 = vpop.f32.mrb[0].mxu0
    %v6378 = vadd.f32 %v6337, %v6377
    %v6379 = vpop.f32.mrb[0].mxu0
    %v6380 = vadd.f32 %v6339, %v6379
    %v6381 = vpop.f32.mrb[0].mxu0
    %v6382 = vpop.f32.mrb[0].mxu0
    %6383 = vdwg.mxu0
    %6384 = vmatprep.subr.bf16.mxu0 %v5293
    %6385 = vmatpush1.bf16.msra.mxu0 %v5292
    %6386 = vmatprep.subr.bf16.mxu0 %v5299
    %6387 = vmatpush1.bf16.msra.mxu0 %v5298
    %6388 = vmatprep.subr.bf16.mxu0 %v5305
    %6389 = vmatpush1.bf16.msra.mxu0 %v5304
    %6390 = vmatprep.subr.bf16.mxu0 %v5311
    %6391 = vmatpush1.bf16.msra.mxu0 %v5310
    %6392 = vmatprep.subr.bf16.mxu0 %v5317
    %6393 = vmatpush1.bf16.msra.mxu0 %v5316
    %6394 = vmatprep.subr.bf16.mxu0 %v5323
    %6395 = vmatpush1.bf16.msra.mxu0 %v5322
    %6396 = vmatprep.subr.bf16.mxu0 %v5329
    %6397 = vmatpush1.bf16.msra.mxu0 %v5328
    %6398 = vmatprep.subr.bf16.mxu0 %v5335
    %6399 = vmatpush1.bf16.msra.mxu0 %v5334
    %6400 = vmatprep.subr.bf16.mxu0 %v5341
    %6401 = vmatpush1.bf16.msra.mxu0 %v5340
    %6402 = vmatprep.subr.bf16.mxu0 %v5347
    %6403 = vmatpush1.bf16.msra.mxu0 %v5346
    %6404 = vmatprep.subr.bf16.mxu0 %v5353
    %6405 = vmatpush1.bf16.msra.mxu0 %v5352
    %6406 = vmatprep.subr.bf16.mxu0 %v5359
    %6407 = vmatpush1.bf16.msra.mxu0 %v5358
    %6408 = vmatprep.subr.bf16.mxu0 %v5365
    %6409 = vmatpush1.bf16.msra.mxu0 %v5364
    %6410 = vmatprep.subr.bf16.mxu0 %v5371
    %6411 = vmatpush1.bf16.msra.mxu0 %v5370
    %6412 = vmatprep.subr.bf16.mxu0 %v5377
    %6413 = vmatpush1.bf16.msra.mxu0 %v5376
    %6414 = vmatprep.subr.bf16.mxu0 %v5383
    %6415 = vmatpush1.bf16.msra.mxu0 %v5382
    %6416 = vmatprep.mubr.bf16.mxu0 %v3713
    %6417 = vmatmul.mubr.bf16.gmra.mrb[0].mxu0 %v3712
    %v6418 = vpop.f32.mrb[0].mxu0
    %v6419 = vadd.f32 %v4125, %v6418
    %v6420 = vpop.f32.mrb[0].mxu0
    %v6421 = vadd.f32 %v4129, %v6420
    %v6422 = vpop.f32.mrb[0].mxu0
    %v6423 = vpop.f32.mrb[0].mxu0
    %6424 = vdwg.mxu0
    %6425 = vmatprep.subr.bf16.mxu0 %v5389
    %6426 = vmatpush1.bf16.msra.mxu0 %v5388
    %6427 = vmatprep.subr.bf16.mxu0 %v5395
    %6428 = vmatpush1.bf16.msra.mxu0 %v5394
    %6429 = vmatprep.subr.bf16.mxu0 %v5401
    %6430 = vmatpush1.bf16.msra.mxu0 %v5400
    %6431 = vmatprep.subr.bf16.mxu0 %v5407
    %6432 = vmatpush1.bf16.msra.mxu0 %v5406
    %6433 = vmatprep.subr.bf16.mxu0 %v5413
    %6434 = vmatpush1.bf16.msra.mxu0 %v5412
    %6435 = vmatprep.subr.bf16.mxu0 %v5419
    %6436 = vmatpush1.bf16.msra.mxu0 %v5418
    %6437 = vmatprep.subr.bf16.mxu0 %v5425
    %6438 = vmatpush1.bf16.msra.mxu0 %v5424
    %6439 = vmatprep.subr.bf16.mxu0 %v5431
    %6440 = vmatpush1.bf16.msra.mxu0 %v5430
    %6441 = vmatprep.subr.bf16.mxu0 %v5437
    %6442 = vmatpush1.bf16.msra.mxu0 %v5436
    %6443 = vmatprep.subr.bf16.mxu0 %v5443
    %6444 = vmatpush1.bf16.msra.mxu0 %v5442
    %6445 = vmatprep.subr.bf16.mxu0 %v5449
    %6446 = vmatpush1.bf16.msra.mxu0 %v5448
    %6447 = vmatprep.subr.bf16.mxu0 %v5455
    %6448 = vmatpush1.bf16.msra.mxu0 %v5454
    %6449 = vmatprep.subr.bf16.mxu0 %v5461
    %6450 = vmatpush1.bf16.msra.mxu0 %v5460
    %6451 = vmatprep.subr.bf16.mxu0 %v5467
    %6452 = vmatpush1.bf16.msra.mxu0 %v5466
    %6453 = vmatprep.subr.bf16.mxu0 %v5473
    %6454 = vmatpush1.bf16.msra.mxu0 %v5472
    %6455 = vmatprep.subr.bf16.mxu0 %v5479
    %6456 = vmatpush1.bf16.msra.mxu0 %v5478
    %6457 = vmatprep.mubr.bf16.mxu0 %v3715
    %6458 = vmatmul.mubr.bf16.gmra.mrb[0].mxu0 %v3714
    %v6459 = vpop.f32.mrb[0].mxu0
    %v6460 = vadd.f32 %v6419, %v6459
    %v6461 = vpop.f32.mrb[0].mxu0
    %v6462 = vadd.f32 %v6421, %v6461
    %v6463 = vpop.f32.mrb[0].mxu0
    %v6464 = vpop.f32.mrb[0].mxu0
    %6465 = vdwg.mxu0
    %6466 = vmatprep.subr.bf16.mxu0 %v5485
    %6467 = vmatpush1.bf16.msra.mxu0 %v5484
    %6468 = vmatprep.subr.bf16.mxu0 %v5491
    %6469 = vmatpush1.bf16.msra.mxu0 %v5490
    %6470 = vmatprep.subr.bf16.mxu0 %v5497
    %6471 = vmatpush1.bf16.msra.mxu0 %v5496
    %6472 = vmatprep.subr.bf16.mxu0 %v5503
    %6473 = vmatpush1.bf16.msra.mxu0 %v5502
    %6474 = vmatprep.subr.bf16.mxu0 %v5509
    %6475 = vmatpush1.bf16.msra.mxu0 %v5508
    %6476 = vmatprep.subr.bf16.mxu0 %v5515
    %6477 = vmatpush1.bf16.msra.mxu0 %v5514
    %6478 = vmatprep.subr.bf16.mxu0 %v5521
    %6479 = vmatpush1.bf16.msra.mxu0 %v5520
    %6480 = vmatprep.subr.bf16.mxu0 %v5527
    %6481 = vmatpush1.bf16.msra.mxu0 %v5526
    %6482 = vmatprep.subr.bf16.mxu0 %v5533
    %6483 = vmatpush1.bf16.msra.mxu0 %v5532
    %6484 = vmatprep.subr.bf16.mxu0 %v5539
    %6485 = vmatpush1.bf16.msra.mxu0 %v5538
    %6486 = vmatprep.subr.bf16.mxu0 %v5545
    %6487 = vmatpush1.bf16.msra.mxu0 %v5544
    %6488 = vmatprep.subr.bf16.mxu0 %v5551
    %6489 = vmatpush1.bf16.msra.mxu0 %v5550
    %6490 = vmatprep.subr.bf16.mxu0 %v5557
    %6491 = vmatpush1.bf16.msra.mxu0 %v5556
    %6492 = vmatprep.subr.bf16.mxu0 %v5563
    %6493 = vmatpush1.bf16.msra.mxu0 %v5562
    %6494 = vmatprep.subr.bf16.mxu0 %v5569
    %6495 = vmatpush1.bf16.msra.mxu0 %v5568
    %6496 = vmatprep.subr.bf16.mxu0 %v5575
    %6497 = vmatpush1.bf16.msra.mxu0 %v5574
    %6498 = vmatprep.mubr.bf16.mxu0 %v3717
    %6499 = vmatmul.mubr.bf16.gmra.mrb[0].mxu0 %v3716
    %v6500 = vpop.f32.mrb[0].mxu0
    %v6501 = vadd.f32 %v6460, %v6500
    %v6502 = vpop.f32.mrb[0].mxu0
    %v6503 = vadd.f32 %v6462, %v6502
    %v6504 = vpop.f32.mrb[0].mxu0
    %v6505 = vpop.f32.mrb[0].mxu0
    %6506 = vdwg.mxu0
    %6507 = vmatprep.subr.bf16.mxu0 %v5581
    %6508 = vmatpush1.bf16.msra.mxu0 %v5580
    %6509 = vmatprep.subr.bf16.mxu0 %v5587
    %6510 = vmatpush1.bf16.msra.mxu0 %v5586
    %6511 = vmatprep.subr.bf16.mxu0 %v5593
    %6512 = vmatpush1.bf16.msra.mxu0 %v5592
    %6513 = vmatprep.subr.bf16.mxu0 %v5599
    %6514 = vmatpush1.bf16.msra.mxu0 %v5598
    %6515 = vmatprep.subr.bf16.mxu0 %v5605
    %6516 = vmatpush1.bf16.msra.mxu0 %v5604
    %6517 = vmatprep.subr.bf16.mxu0 %v5611
    %6518 = vmatpush1.bf16.msra.mxu0 %v5610
    %6519 = vmatprep.subr.bf16.mxu0 %v5617
    %6520 = vmatpush1.bf16.msra.mxu0 %v5616
    %6521 = vmatprep.subr.bf16.mxu0 %v5623
    %6522 = vmatpush1.bf16.msra.mxu0 %v5622
    %6523 = vmatprep.subr.bf16.mxu0 %v5629
    %6524 = vmatpush1.bf16.msra.mxu0 %v5628
    %6525 = vmatprep.subr.bf16.mxu0 %v5635
    %6526 = vmatpush1.bf16.msra.mxu0 %v5634
    %6527 = vmatprep.subr.bf16.mxu0 %v5641
    %6528 = vmatpush1.bf16.msra.mxu0 %v5640
    %6529 = vmatprep.subr.bf16.mxu0 %v5647
    %6530 = vmatpush1.bf16.msra.mxu0 %v5646
    %6531 = vmatprep.subr.bf16.mxu0 %v5653
    %6532 = vmatpush1.bf16.msra.mxu0 %v5652
    %6533 = vmatprep.subr.bf16.mxu0 %v5659
    %6534 = vmatpush1.bf16.msra.mxu0 %v5658
    %6535 = vmatprep.subr.bf16.mxu0 %v5665
    %6536 = vmatpush1.bf16.msra.mxu0 %v5664
    %6537 = vmatprep.subr.bf16.mxu0 %v5671
    %6538 = vmatpush1.bf16.msra.mxu0 %v5670
    %6539 = vmatprep.mubr.bf16.mxu0 %v3719
    %6540 = vmatmul.mubr.bf16.gmra.mrb[0].mxu0 %v3718
    %v6541 = vpop.f32.mrb[0].mxu0
    %v6542 = vadd.f32 %v6501, %v6541
    %v6543 = vpop.f32.mrb[0].mxu0
    %v6544 = vadd.f32 %v6503, %v6543
    %v6545 = vpop.f32.mrb[0].mxu0
    %v6546 = vpop.f32.mrb[0].mxu0
    %6547 = vdwg.mxu0
    %v6548 = vtanh.pop %v6214
    %v6549 = vtanh.pop %v6216
    %v6550 = vtanh.pop %v6378
    %v6551 = vtanh.pop %v6380
    %v6552 = vtanh.pop %v6542
    %v6553 = vtanh.pop %v6544
    %6554 = vst [vmem:[#allocation29] sm:$0xff] %v6548
    %6555 = vst [vmem:[#allocation29 + $0x8] sm:$0xff] %v6549
    %6556 = vst [vmem:[#allocation29 + $0x10] sm:$0xff] %v6550
    %6557 = vst [vmem:[#allocation29 + $0x18] sm:$0xff] %v6551
    %6558 = vst [vmem:[#allocation29 + $0x20] sm:$0xff] %v6552
    %6559 = vst [vmem:[#allocation29 + $0x28] sm:$0xff] %v6553
    // Predicated region
    $region138: #{tpu_custom_call.1} parent=1 // pred_check
      _
    $region139: #{tpu_custom_call.1} parent=1 // pred_check_branch
      %6561 = sbr.rel (0) target = $region141
    $region140: #{tpu_custom_call.1} parent=1 // pred_region
      %s6563 = ssub.s32 768, 768
      %6564 = vsyncadd [#allocation4], %s6563
      %s6566 = sshll.u32 [#allocation29], 4
      %s6567 = int_to_ptr.vmem [resolvable:$true] %s6566
      %6569 = dma.vmem_to_hbm [thread:$0]  %s6567, 768, %s17, [#allocation4]
    $region141: #{tpu_custom_call.1} parent=1 // pred_fallthru
      _
    // Predicated region
    $region142: #{tpu_custom_call.1} parent=1 // pred_check
      _
    $region143: #{tpu_custom_call.1} parent=1 // pred_check_branch
      %6571 = sbr.rel (0) target = $region145
    $region144: #{tpu_custom_call.1} parent=1 // pred_region
      %6572 = dma.done [#allocation4], 768
    $region145: #{tpu_custom_call.1} parent=1 // pred_fallthru
      _
    %6573 = vsyncpa [#allocation3], 1
    %6574 = vsyncpa [#allocation6], 1
    %6575 = vsyncpa [#allocation9], 1
    %6576 = vsyncpa [#allocation12], 1
    %6577 = vsyncpa [#allocation15], 1
    %6578 = vsyncpa [#allocation18], 1
    %6579 = vsyncpa [#allocation21], 1
    %6580 = vsyncpa [#allocation24], 1
    %6581 = vsyncpa [#allocation27], 1
    %6582 = vsyncpa [#allocation4], 1

</llo_original>
